<compile_context>
chip_gen: v7x
topology: tpu7x:2x2x1
jax: 0.10.0
libtpu: 0.0.40
codegen_flags: <defaults>
</compile_context>

<pallas_src>
import functools

import jax
import jax.numpy as jnp
from jax.experimental import pallas as pl
from jax.experimental.pallas import tpu as pltpu


# ---------------------------------------------------------------------------
# Fused forward kernel: encoder (L layers) -> decoder (L layers, autoregressive,
# one dot per cell) -> MLP_pred, all in one grid-less pallas_call.
# ---------------------------------------------------------------------------
def _make_fused_kernel(T, B, F, H, L, n_mlp, K):
    G = 4 * H
    TB = T * B

    def kernel(*refs):
        # refs: x_tm, L*(wih, whh, b) enc, L*(wcat, b) dec, n_mlp*(w, b),
        #       hidden_out, pred_out, seq_scratch (VMEM)
        idx = 0
        x_ref = refs[idx]; idx += 1                              # (T*B, F) time-major
        enc_refs = [refs[idx + 3 * l: idx + 3 * (l + 1)] for l in range(L)]
        idx += 3 * L
        dec_refs = [refs[idx + 2 * l: idx + 2 * (l + 1)] for l in range(L)]
        idx += 2 * L
        mlp_refs = [refs[idx + 2 * i: idx + 2 * (i + 1)] for i in range(n_mlp)]
        idx += 2 * n_mlp
        hidden_ref = refs[idx]; pred_ref = refs[idx + 1]; idx += 2
        seq_ref = refs[idx]                                      # VMEM (T*B, H) scratch

        f32, bf16 = jnp.float32, jnp.bfloat16
        dot = functools.partial(jnp.dot, preferred_element_type=f32)

        # ---- hoisted per-lane constants: one tanh pass per cell -------------
        # sigma(x) = 0.5 * tanh(0.5 * x) + 0.5 on i/f/o lanes; plain tanh on g.
        lane = jax.lax.broadcasted_iota(jnp.int32, (B, G), 1)
        is_g = jnp.logical_and(lane >= 2 * H, lane < 3 * H)
        g_scale = jnp.where(is_g, f32(1.0), f32(0.5))            # pre- AND post-scale
        g_shift = jnp.where(is_g, f32(0.0), f32(0.5))

        def cell(gates, c):
            act = jnp.tanh(gates * g_scale) * g_scale + g_shift  # 1 EUP pass (VPU fixup)
            i = act[:, 0 * H:1 * H]
            f = act[:, 1 * H:2 * H]
            g = act[:, 2 * H:3 * H]
            o = act[:, 3 * H:4 * H]
            c_new = f * c + i * g
            h_new = o * jnp.tanh(c_new)
            return h_new, c_new

        zeros = jnp.zeros((B, H), f32)

        # ----------------------- Encoder (stacked LSTM) ----------------------
        for l in range(L):
            wih_b = enc_refs[l][0][...].astype(bf16)             # (IN, 4H) bf16 once
            whh_b = enc_refs[l][1][...].astype(bf16)             # (H, 4H)
            bias = enc_refs[l][2][...]                           # (1, 4H) f32
            src = x_ref[...] if l == 0 else seq_ref[...]         # (T*B, IN)
            # hoisted input projection for the whole sequence (off the serial path)
            xg = dot(src.astype(bf16), wih_b) + bias             # (T*B, 4H) f32
            h = zeros
            c = zeros
            for t in range(T):                                   # serial recurrence
                gates = xg[t * B:(t + 1) * B, :] + dot(h.astype(bf16), whh_b)
                h, c = cell(gates, c)
                if l + 1 < L:                                    # next layer's input slab
                    seq_ref[t * B:(t + 1) * B, :] = h
        hidden = h                                               # enc_h_state[-1]
        hidden_ref[...] = hidden                                 # single bulk store

        # --------------- Decoder (autoregressive, ONE dot per cell) ----------
        dec_w = [(dec_refs[l][0][...].astype(bf16),              # W_cat (2H, 4H) bf16
                  jnp.broadcast_to(dec_refs[l][1][...], (B, G)))  # bias (B, 4H) hoisted
                 for l in range(L)]
        hs = [zeros] * L
        cs = [zeros] * L
        inp = hidden                                             # dec_input at t == 0
        for t in range(T):
            for l in range(L):
                wcat_b, bb = dec_w[l]
                xh = jnp.concatenate([inp, hs[l]], axis=1)       # (B, 2H) [inp | h]
                gates = dot(xh.astype(bf16), wcat_b) + bb        # one MXU round-trip
                hs[l], cs[l] = cell(gates, cs[l])
                inp = hs[l]
            seq_ref[t * B:(t + 1) * B, :] = inp                  # top-layer output slab

        # ----------------------------- MLP_pred ------------------------------
        # norm=False, Dropout(p=0) are identities: Linear -> Tanh -> Linear.
        y = seq_ref[...]                                         # (T*B, H) contiguous
        for i in range(n_mlp):
            w_b = mlp_refs[i][0][...].astype(bf16)
            bb = mlp_refs[i][1][...]
            y = dot(y.astype(bf16), w_b) + bb
            if i + 1 < n_mlp:
                y = jnp.tanh(y)
        pred_ref[...] = y                                        # ONE bulk (T*B, K) store

    return kernel


@jax.jit
def lstm_ae_forward(x_btf, enc, dec, mlp_w, mlp_b):
    """x_btf: (B, T, F) -> (hidden (B, H), pred_out (B, T, K)). Single pallas_call."""
    B, T, F = x_btf.shape
    H = enc[0]["whh"].shape[0]
    L = len(enc)
    n_mlp = len(mlp_w)
    K = mlp_w[-1].shape[1]

    # wrapper-side layout work (a few hundred bytes): time-major input slab,
    # merged decoder weights, and the final (B, T, K) un-transpose.
    x_tm = x_btf.transpose(1, 0, 2).reshape(T * B, F)

    args = [x_tm]
    for layer in enc:
        args += [layer["wih"], layer["whh"], layer["b"]]
    for layer in dec:
        wcat = jnp.concatenate([layer["wih"], layer["whh"]], axis=0)   # (2H, 4H)
        args += [wcat, layer["b"]]
    for w, b in zip(mlp_w, mlp_b):
        args += [w, b]

    vmem_spec = pl.BlockSpec(memory_space=pltpu.MemorySpace.VMEM)
    hidden, pred_tm = pl.pallas_call(
        _make_fused_kernel(T, B, F, H, L, n_mlp, K),
        out_shape=(jax.ShapeDtypeStruct((B, H), jnp.float32),
                   jax.ShapeDtypeStruct((T * B, K), jnp.float32)),
        in_specs=[vmem_spec] * len(args),
        out_specs=(vmem_spec, vmem_spec),
        scratch_shapes=[pltpu.VMEM((T * B, H), jnp.float32)],
        compiler_params=pltpu.CompilerParams(vmem_limit_bytes=32 * 1024 * 1024),
    )(*args)

    pred = pred_tm.reshape(T, B, K).transpose(1, 0, 2)                 # (B, T, K)
    return hidden, pred


# ---------------------------------------------------------------------------
# Parameter init (deterministic, PyTorch-style uniform bounds).
# Weights pre-transposed to (IN, 4H); biases pre-combined (b_ih + b_hh), (1, 4H).
# ---------------------------------------------------------------------------
def init_params(key, feature_size, hidden, num_layers, mlp_dims):
    n_keys = 8 * num_layers + 2 * (len(mlp_dims) - 1)
    keys = iter(jax.random.split(key, n_keys))

    def u(shape, bound):
        return jax.random.uniform(next(keys), shape, jnp.float32, -bound, bound)

    k = 1.0 / float(hidden) ** 0.5
    enc, dec = [], []
    in_sz = feature_size
    for _ in range(num_layers):
        wih = u((4 * hidden, in_sz), k)
        whh = u((4 * hidden, hidden), k)
        bih = u((4 * hidden,), k)
        bhh = u((4 * hidden,), k)
        enc.append(dict(wih=wih.T, whh=whh.T, b=(bih + bhh).reshape(1, -1)))
        in_sz = hidden
    for _ in range(num_layers):
        wih = u((4 * hidden, hidden), k)
        whh = u((4 * hidden, hidden), k)
        bih = u((4 * hidden,), k)
        bhh = u((4 * hidden,), k)
        dec.append(dict(wih=wih.T, whh=whh.T, b=(bih + bhh).reshape(1, -1)))
    mlp_w, mlp_b = [], []
    for i in range(len(mlp_dims) - 1):
        bound = 1.0 / float(mlp_dims[i]) ** 0.5
        w = u((mlp_dims[i + 1], mlp_dims[i]), bound)
        b = u((mlp_dims[i + 1],), bound)
        mlp_w.append(w.T)
        mlp_b.append(b.reshape(1, -1))
    return enc, dec, mlp_w, mlp_b


# ---------------------------------------------------------------------------
# Pure-JAX reference (mirrors the PyTorch forward). mxu_bf16=True reproduces the
# kernel's bf16-operand / f32-accumulate matmuls for a tight structural check.
# ---------------------------------------------------------------------------
def lstm_ae_ref(x_btf, enc, dec, mlp_w, mlp_b, *, mxu_bf16=False):
    B, T, _ = x_btf.shape
    H = enc[0]["whh"].shape[0]

    def mm(a, w):
        if mxu_bf16:
            return jnp.dot(a.astype(jnp.bfloat16), w.astype(jnp.bfloat16),
                           preferred_element_type=jnp.float32)
        return jnp.dot(a, w, preferred_element_type=jnp.float32)

    def cell(x, h, c, wih, whh, b):
        gates = mm(x, wih) + mm(h, whh) + b
        i, f, g, o = jnp.split(gates, 4, axis=-1)
        c = jax.nn.sigmoid(f) * c + jax.nn.sigmoid(i) * jnp.tanh(g)
        h = jax.nn.sigmoid(o) * jnp.tanh(c)
        return h, c

    seq = x_btf
    for layer in enc:
        h = jnp.zeros((B, H)); c = jnp.zeros((B, H))
        outs = []
        for t in range(T):
            h, c = cell(seq[:, t, :], h, c, layer["wih"], layer["whh"], layer["b"])
            outs.append(h)
        seq = jnp.stack(outs, axis=1)
    hidden = h

    L = len(dec)
    hs = [jnp.zeros((B, H)) for _ in range(L)]
    cs = [jnp.zeros((B, H)) for _ in range(L)]
    x = hidden
    dec_outs = []
    for _ in range(T):
        inp = x
        for l in range(L):
            hs[l], cs[l] = cell(inp, hs[l], cs[l],
                                dec[l]["wih"], dec[l]["whh"], dec[l]["b"])
            inp = hs[l]
        x = inp
        dec_outs.append(x)
    y = jnp.stack(dec_outs, axis=1)                                    # (B, T, H)

    for li, (w, b) in enumerate(zip(mlp_w, mlp_b)):
        y = mm(y, w) + b
        if li < len(mlp_w) - 1:
            y = jnp.tanh(y)
    return hidden, y


if __name__ == "__main__":
    # LSTM_AE params (small, consistent with the module)
    B, T, F, H, L = 2, 8, 4, 32, 2          # batch, time_len, feature_size, hidden, layers
    MLP_DIMS = [H, 16, 5]                   # MLP_pred_dims (K_reasons = 5)

    key = jax.random.PRNGKey(0)
    k_x, k_p = jax.random.split(key)
    X = jax.random.normal(k_x, (B, T, F), dtype=jnp.float32)
    enc, dec, mlp_w, mlp_b = init_params(k_p, F, H, L, MLP_DIMS)

    hidden, pred_out = lstm_ae_forward(X, enc, dec, mlp_w, mlp_b)
    hidden = jax.block_until_ready(hidden)
    pred_out = jax.block_until_ready(pred_out)
    assert hidden.shape == (B, H) and pred_out.shape == (B, T, MLP_DIMS[-1])

    # (1) tight structural check vs a reference using the same bf16 MXU operands
    h_bf, p_bf = lstm_ae_ref(X, enc, dec, mlp_w, mlp_b, mxu_bf16=True)
    assert jnp.allclose(hidden, h_bf, rtol=5e-3, atol=5e-3)
    assert jnp.allclose(pred_out, p_bf, rtol=5e-3, atol=5e-3)

    # (2) semantic fidelity vs the full-f32 reference (bound on bf16 operand rounding)
    h_f32, p_f32 = lstm_ae_ref(X, enc, dec, mlp_w, mlp_b, mxu_bf16=False)
    assert jnp.allclose(hidden, h_f32, rtol=5e-2, atol=5e-2)
    assert jnp.allclose(pred_out, p_f32, rtol=5e-2, atol=5e-2)

    # TODO(synk): nn.Dropout(p=0) and the disabled BatchNorm are identities in
    # this forward configuration, so they are intentionally omitted.
    print("KERNEL_OK")
</pallas_src>

<mosaic_0001>
module attributes {stable_mosaic.version = 11 : i64} {
  func.func @kernel(%arg0: memref<16x4xf32, #tpu.memory_space<vmem>>, %arg1: memref<4x128xf32, #tpu.memory_space<vmem>>, %arg2: memref<32x128xf32, #tpu.memory_space<vmem>>, %arg3: memref<1x128xf32, #tpu.memory_space<vmem>>, %arg4: memref<32x128xf32, #tpu.memory_space<vmem>>, %arg5: memref<32x128xf32, #tpu.memory_space<vmem>>, %arg6: memref<1x128xf32, #tpu.memory_space<vmem>>, %arg7: memref<64x128xf32, #tpu.memory_space<vmem>>, %arg8: memref<1x128xf32, #tpu.memory_space<vmem>>, %arg9: memref<64x128xf32, #tpu.memory_space<vmem>>, %arg10: memref<1x128xf32, #tpu.memory_space<vmem>>, %arg11: memref<32x16xf32, #tpu.memory_space<vmem>>, %arg12: memref<1x16xf32, #tpu.memory_space<vmem>>, %arg13: memref<16x5xf32, #tpu.memory_space<vmem>>, %arg14: memref<1x5xf32, #tpu.memory_space<vmem>>, %arg15: memref<2x32xf32, #tpu.memory_space<vmem>>, %arg16: memref<16x5xf32, #tpu.memory_space<vmem>>, %arg17: memref<16x32xf32, #tpu.memory_space<vmem>>) attributes {dimension_semantics = [], scalar_prefetch = 0 : i64, scratch_operands = 1 : i64, tpu.core_type = #tpu.core_type<tc>} {
    %0 = tpu.iota {dimensions = array<i32: 1>} : vector<2x128xi32>
    %c64_i32 = arith.constant 64 : i32
    %1 = vector.broadcast %c64_i32 : i32 to vector<2x128xi32>
    %2 = arith.cmpi sge, %0, %1 : vector<2x128xi32>
    %c96_i32 = arith.constant 96 : i32
    %3 = vector.broadcast %c96_i32 : i32 to vector<2x128xi32>
    %4 = arith.cmpi slt, %0, %3 : vector<2x128xi32>
    %5 = arith.andi %2, %4 : vector<2x128xi1>
    %cst = arith.constant 1.000000e+00 : f32
    %cst_0 = arith.constant 5.000000e-01 : f32
    %6 = vector.broadcast %cst : f32 to vector<2x128xf32>
    %7 = vector.broadcast %cst_0 : f32 to vector<2x128xf32>
    %8 = arith.select %5, %6, %7 : vector<2x128xi1>, vector<2x128xf32>
    %cst_1 = arith.constant 0.000000e+00 : f32
    %cst_2 = arith.constant 5.000000e-01 : f32
    %9 = vector.broadcast %cst_1 : f32 to vector<2x128xf32>
    %10 = vector.broadcast %cst_2 : f32 to vector<2x128xf32>
    %11 = arith.select %5, %9, %10 : vector<2x128xi1>, vector<2x128xf32>
    %cst_3 = arith.constant 0.000000e+00 : f32
    %12 = vector.broadcast %cst_3 : f32 to vector<2x32xf32>
    %c0 = arith.constant 0 : index
    %c0_4 = arith.constant 0 : index
    %13 = vector.load %arg1[%c0, %c0_4] : memref<4x128xf32, #tpu.memory_space<vmem>>, vector<4x128xf32>
    %14 = arith.truncf %13 : vector<4x128xf32> to vector<4x128xbf16>
    %c0_5 = arith.constant 0 : index
    %c0_6 = arith.constant 0 : index
    %15 = vector.load %arg2[%c0_5, %c0_6] : memref<32x128xf32, #tpu.memory_space<vmem>>, vector<32x128xf32>
    %16 = arith.truncf %15 : vector<32x128xf32> to vector<32x128xbf16>
    %c0_7 = arith.constant 0 : index
    %c0_8 = arith.constant 0 : index
    %17 = vector.load %arg3[%c0_7, %c0_8] : memref<1x128xf32, #tpu.memory_space<vmem>>, vector<1x128xf32>
    %c0_9 = arith.constant 0 : index
    %c0_10 = arith.constant 0 : index
    %18 = vector.load %arg0[%c0_9, %c0_10] : memref<16x4xf32, #tpu.memory_space<vmem>>, vector<16x4xf32>
    %19 = arith.truncf %18 : vector<16x4xf32> to vector<16x4xbf16>
    %cst_11 = arith.constant dense<0.000000e+00> : vector<16x128xf32>
    %20 = tpu.matmul %19, %14, %cst_11 {dimension_numbers = #tpu.dot_dimension_numbers<[1], [0], [0], [1], [0, 0, 1, 1], [], []>} : vector<16x4xbf16>, vector<4x128xbf16>, vector<16x128xf32> -> vector<16x128xf32>
    %21 = vector.broadcast %17 : vector<1x128xf32> to vector<16x128xf32>
    %22 = arith.addf %20, %21 : vector<16x128xf32>
    %23 = vector.extract_strided_slice %22 {offsets = [0, 0], sizes = [2, 128], strides = [1, 1]} : vector<16x128xf32> to vector<2x128xf32>
    %24 = arith.truncf %12 : vector<2x32xf32> to vector<2x32xbf16>
    %cst_12 = arith.constant dense<0.000000e+00> : vector<2x128xf32>
    %25 = tpu.matmul %24, %16, %cst_12 {dimension_numbers = #tpu.dot_dimension_numbers<[1], [0], [0], [1], [0, 0, 1, 1], [], []>} : vector<2x32xbf16>, vector<32x128xbf16>, vector<2x128xf32> -> vector<2x128xf32>
    %26 = arith.addf %23, %25 : vector<2x128xf32>
    %27 = arith.mulf %26, %8 : vector<2x128xf32>
    %28 = math.tanh %27 : vector<2x128xf32>
    %29 = arith.mulf %28, %8 : vector<2x128xf32>
    %30 = arith.addf %29, %11 : vector<2x128xf32>
    %31 = vector.extract_strided_slice %30 {offsets = [0, 0], sizes = [2, 32], strides = [1, 1]} : vector<2x128xf32> to vector<2x32xf32>
    %32 = vector.extract_strided_slice %30 {offsets = [0, 32], sizes = [2, 32], strides = [1, 1]} : vector<2x128xf32> to vector<2x32xf32>
    %33 = vector.extract_strided_slice %30 {offsets = [0, 64], sizes = [2, 32], strides = [1, 1]} : vector<2x128xf32> to vector<2x32xf32>
    %34 = vector.extract_strided_slice %30 {offsets = [0, 96], sizes = [2, 32], strides = [1, 1]} : vector<2x128xf32> to vector<2x32xf32>
    %35 = arith.mulf %32, %12 : vector<2x32xf32>
    %36 = arith.mulf %31, %33 : vector<2x32xf32>
    %37 = arith.addf %35, %36 : vector<2x32xf32>
    %38 = math.tanh %37 : vector<2x32xf32>
    %39 = arith.mulf %34, %38 : vector<2x32xf32>
    %c0_13 = arith.constant 0 : index
    %c0_14 = arith.constant 0 : index
    %40 = vector.load %arg17[%c0_13, %c0_14] : memref<16x32xf32, #tpu.memory_space<vmem>>, vector<2x32xf32>
    tpu.vector_store %arg17[%c0_13, %c0_14], %39 {strides = array<i32>} : memref<16x32xf32, #tpu.memory_space<vmem>>, vector<2x32xf32>,
    %41 = vector.extract_strided_slice %22 {offsets = [2, 0], sizes = [2, 128], strides = [1, 1]} : vector<16x128xf32> to vector<2x128xf32>
    %42 = arith.truncf %39 : vector<2x32xf32> to vector<2x32xbf16>
    %cst_15 = arith.constant dense<0.000000e+00> : vector<2x128xf32>
    %43 = tpu.matmul %42, %16, %cst_15 {dimension_numbers = #tpu.dot_dimension_numbers<[1], [0], [0], [1], [0, 0, 1, 1], [], []>} : vector<2x32xbf16>, vector<32x128xbf16>, vector<2x128xf32> -> vector<2x128xf32>
    %44 = arith.addf %41, %43 : vector<2x128xf32>
    %45 = arith.mulf %44, %8 : vector<2x128xf32>
    %46 = math.tanh %45 : vector<2x128xf32>
    %47 = arith.mulf %46, %8 : vector<2x128xf32>
    %48 = arith.addf %47, %11 : vector<2x128xf32>
    %49 = vector.extract_strided_slice %48 {offsets = [0, 0], sizes = [2, 32], strides = [1, 1]} : vector<2x128xf32> to vector<2x32xf32>
    %50 = vector.extract_strided_slice %48 {offsets = [0, 32], sizes = [2, 32], strides = [1, 1]} : vector<2x128xf32> to vector<2x32xf32>
    %51 = vector.extract_strided_slice %48 {offsets = [0, 64], sizes = [2, 32], strides = [1, 1]} : vector<2x128xf32> to vector<2x32xf32>
    %52 = vector.extract_strided_slice %48 {offsets = [0, 96], sizes = [2, 32], strides = [1, 1]} : vector<2x128xf32> to vector<2x32xf32>
    %53 = arith.mulf %50, %37 : vector<2x32xf32>
    %54 = arith.mulf %49, %51 : vector<2x32xf32>
    %55 = arith.addf %53, %54 : vector<2x32xf32>
    %56 = math.tanh %55 : vector<2x32xf32>
    %57 = arith.mulf %52, %56 : vector<2x32xf32>
    %c2 = arith.constant 2 : index
    %c0_16 = arith.constant 0 : index
    %58 = vector.load %arg17[%c2, %c0_16] : memref<16x32xf32, #tpu.memory_space<vmem>>, vector<2x32xf32>
    tpu.vector_store %arg17[%c2, %c0_16], %57 {strides = array<i32>} : memref<16x32xf32, #tpu.memory_space<vmem>>, vector<2x32xf32>,
    %59 = vector.extract_strided_slice %22 {offsets = [4, 0], sizes = [2, 128], strides = [1, 1]} : vector<16x128xf32> to vector<2x128xf32>
    %60 = arith.truncf %57 : vector<2x32xf32> to vector<2x32xbf16>
    %cst_17 = arith.constant dense<0.000000e+00> : vector<2x128xf32>
    %61 = tpu.matmul %60, %16, %cst_17 {dimension_numbers = #tpu.dot_dimension_numbers<[1], [0], [0], [1], [0, 0, 1, 1], [], []>} : vector<2x32xbf16>, vector<32x128xbf16>, vector<2x128xf32> -> vector<2x128xf32>
    %62 = arith.addf %59, %61 : vector<2x128xf32>
    %63 = arith.mulf %62, %8 : vector<2x128xf32>
    %64 = math.tanh %63 : vector<2x128xf32>
    %65 = arith.mulf %64, %8 : vector<2x128xf32>
    %66 = arith.addf %65, %11 : vector<2x128xf32>
    %67 = vector.extract_strided_slice %66 {offsets = [0, 0], sizes = [2, 32], strides = [1, 1]} : vector<2x128xf32> to vector<2x32xf32>
    %68 = vector.extract_strided_slice %66 {offsets = [0, 32], sizes = [2, 32], strides = [1, 1]} : vector<2x128xf32> to vector<2x32xf32>
    %69 = vector.extract_strided_slice %66 {offsets = [0, 64], sizes = [2, 32], strides = [1, 1]} : vector<2x128xf32> to vector<2x32xf32>
    %70 = vector.extract_strided_slice %66 {offsets = [0, 96], sizes = [2, 32], strides = [1, 1]} : vector<2x128xf32> to vector<2x32xf32>
    %71 = arith.mulf %68, %55 : vector<2x32xf32>
    %72 = arith.mulf %67, %69 : vector<2x32xf32>
    %73 = arith.addf %71, %72 : vector<2x32xf32>
    %74 = math.tanh %73 : vector<2x32xf32>
    %75 = arith.mulf %70, %74 : vector<2x32xf32>
    %c4 = arith.constant 4 : index
    %c0_18 = arith.constant 0 : index
    %76 = vector.load %arg17[%c4, %c0_18] : memref<16x32xf32, #tpu.memory_space<vmem>>, vector<2x32xf32>
    tpu.vector_store %arg17[%c4, %c0_18], %75 {strides = array<i32>} : memref<16x32xf32, #tpu.memory_space<vmem>>, vector<2x32xf32>,
    %77 = vector.extract_strided_slice %22 {offsets = [6, 0], sizes = [2, 128], strides = [1, 1]} : vector<16x128xf32> to vector<2x128xf32>
    %78 = arith.truncf %75 : vector<2x32xf32> to vector<2x32xbf16>
    %cst_19 = arith.constant dense<0.000000e+00> : vector<2x128xf32>
    %79 = tpu.matmul %78, %16, %cst_19 {dimension_numbers = #tpu.dot_dimension_numbers<[1], [0], [0], [1], [0, 0, 1, 1], [], []>} : vector<2x32xbf16>, vector<32x128xbf16>, vector<2x128xf32> -> vector<2x128xf32>
    %80 = arith.addf %77, %79 : vector<2x128xf32>
    %81 = arith.mulf %80, %8 : vector<2x128xf32>
    %82 = math.tanh %81 : vector<2x128xf32>
    %83 = arith.mulf %82, %8 : vector<2x128xf32>
    %84 = arith.addf %83, %11 : vector<2x128xf32>
    %85 = vector.extract_strided_slice %84 {offsets = [0, 0], sizes = [2, 32], strides = [1, 1]} : vector<2x128xf32> to vector<2x32xf32>
    %86 = vector.extract_strided_slice %84 {offsets = [0, 32], sizes = [2, 32], strides = [1, 1]} : vector<2x128xf32> to vector<2x32xf32>
    %87 = vector.extract_strided_slice %84 {offsets = [0, 64], sizes = [2, 32], strides = [1, 1]} : vector<2x128xf32> to vector<2x32xf32>
    %88 = vector.extract_strided_slice %84 {offsets = [0, 96], sizes = [2, 32], strides = [1, 1]} : vector<2x128xf32> to vector<2x32xf32>
    %89 = arith.mulf %86, %73 : vector<2x32xf32>
    %90 = arith.mulf %85, %87 : vector<2x32xf32>
    %91 = arith.addf %89, %90 : vector<2x32xf32>
    %92 = math.tanh %91 : vector<2x32xf32>
    %93 = arith.mulf %88, %92 : vector<2x32xf32>
    %c6 = arith.constant 6 : index
    %c0_20 = arith.constant 0 : index
    %94 = vector.load %arg17[%c6, %c0_20] : memref<16x32xf32, #tpu.memory_space<vmem>>, vector<2x32xf32>
    tpu.vector_store %arg17[%c6, %c0_20], %93 {strides = array<i32>} : memref<16x32xf32, #tpu.memory_space<vmem>>, vector<2x32xf32>,
    %95 = vector.extract_strided_slice %22 {offsets = [8, 0], sizes = [2, 128], strides = [1, 1]} : vector<16x128xf32> to vector<2x128xf32>
    %96 = arith.truncf %93 : vector<2x32xf32> to vector<2x32xbf16>
    %cst_21 = arith.constant dense<0.000000e+00> : vector<2x128xf32>
    %97 = tpu.matmul %96, %16, %cst_21 {dimension_numbers = #tpu.dot_dimension_numbers<[1], [0], [0], [1], [0, 0, 1, 1], [], []>} : vector<2x32xbf16>, vector<32x128xbf16>, vector<2x128xf32> -> vector<2x128xf32>
    %98 = arith.addf %95, %97 : vector<2x128xf32>
    %99 = arith.mulf %98, %8 : vector<2x128xf32>
    %100 = math.tanh %99 : vector<2x128xf32>
    %101 = arith.mulf %100, %8 : vector<2x128xf32>
    %102 = arith.addf %101, %11 : vector<2x128xf32>
    %103 = vector.extract_strided_slice %102 {offsets = [0, 0], sizes = [2, 32], strides = [1, 1]} : vector<2x128xf32> to vector<2x32xf32>
    %104 = vector.extract_strided_slice %102 {offsets = [0, 32], sizes = [2, 32], strides = [1, 1]} : vector<2x128xf32> to vector<2x32xf32>
    %105 = vector.extract_strided_slice %102 {offsets = [0, 64], sizes = [2, 32], strides = [1, 1]} : vector<2x128xf32> to vector<2x32xf32>
    %106 = vector.extract_strided_slice %102 {offsets = [0, 96], sizes = [2, 32], strides = [1, 1]} : vector<2x128xf32> to vector<2x32xf32>
    %107 = arith.mulf %104, %91 : vector<2x32xf32>
    %108 = arith.mulf %103, %105 : vector<2x32xf32>
    %109 = arith.addf %107, %108 : vector<2x32xf32>
    %110 = math.tanh %109 : vector<2x32xf32>
    %111 = arith.mulf %106, %110 : vector<2x32xf32>
    %c8 = arith.constant 8 : index
    %c0_22 = arith.constant 0 : index
    %112 = vector.load %arg17[%c8, %c0_22] : memref<16x32xf32, #tpu.memory_space<vmem>>, vector<2x32xf32>
    tpu.vector_store %arg17[%c8, %c0_22], %111 {strides = array<i32>} : memref<16x32xf32, #tpu.memory_space<vmem>>, vector<2x32xf32>,
    %113 = vector.extract_strided_slice %22 {offsets = [10, 0], sizes = [2, 128], strides = [1, 1]} : vector<16x128xf32> to vector<2x128xf32>
    %114 = arith.truncf %111 : vector<2x32xf32> to vector<2x32xbf16>
    %cst_23 = arith.constant dense<0.000000e+00> : vector<2x128xf32>
    %115 = tpu.matmul %114, %16, %cst_23 {dimension_numbers = #tpu.dot_dimension_numbers<[1], [0], [0], [1], [0, 0, 1, 1], [], []>} : vector<2x32xbf16>, vector<32x128xbf16>, vector<2x128xf32> -> vector<2x128xf32>
    %116 = arith.addf %113, %115 : vector<2x128xf32>
    %117 = arith.mulf %116, %8 : vector<2x128xf32>
    %118 = math.tanh %117 : vector<2x128xf32>
    %119 = arith.mulf %118, %8 : vector<2x128xf32>
    %120 = arith.addf %119, %11 : vector<2x128xf32>
    %121 = vector.extract_strided_slice %120 {offsets = [0, 0], sizes = [2, 32], strides = [1, 1]} : vector<2x128xf32> to vector<2x32xf32>
    %122 = vector.extract_strided_slice %120 {offsets = [0, 32], sizes = [2, 32], strides = [1, 1]} : vector<2x128xf32> to vector<2x32xf32>
    %123 = vector.extract_strided_slice %120 {offsets = [0, 64], sizes = [2, 32], strides = [1, 1]} : vector<2x128xf32> to vector<2x32xf32>
    %124 = vector.extract_strided_slice %120 {offsets = [0, 96], sizes = [2, 32], strides = [1, 1]} : vector<2x128xf32> to vector<2x32xf32>
    %125 = arith.mulf %122, %109 : vector<2x32xf32>
    %126 = arith.mulf %121, %123 : vector<2x32xf32>
    %127 = arith.addf %125, %126 : vector<2x32xf32>
    %128 = math.tanh %127 : vector<2x32xf32>
    %129 = arith.mulf %124, %128 : vector<2x32xf32>
    %c10 = arith.constant 10 : index
    %c0_24 = arith.constant 0 : index
    %130 = vector.load %arg17[%c10, %c0_24] : memref<16x32xf32, #tpu.memory_space<vmem>>, vector<2x32xf32>
    tpu.vector_store %arg17[%c10, %c0_24], %129 {strides = array<i32>} : memref<16x32xf32, #tpu.memory_space<vmem>>, vector<2x32xf32>,
    %131 = vector.extract_strided_slice %22 {offsets = [12, 0], sizes = [2, 128], strides = [1, 1]} : vector<16x128xf32> to vector<2x128xf32>
    %132 = arith.truncf %129 : vector<2x32xf32> to vector<2x32xbf16>
    %cst_25 = arith.constant dense<0.000000e+00> : vector<2x128xf32>
    %133 = tpu.matmul %132, %16, %cst_25 {dimension_numbers = #tpu.dot_dimension_numbers<[1], [0], [0], [1], [0, 0, 1, 1], [], []>} : vector<2x32xbf16>, vector<32x128xbf16>, vector<2x128xf32> -> vector<2x128xf32>
    %134 = arith.addf %131, %133 : vector<2x128xf32>
    %135 = arith.mulf %134, %8 : vector<2x128xf32>
    %136 = math.tanh %135 : vector<2x128xf32>
    %137 = arith.mulf %136, %8 : vector<2x128xf32>
    %138 = arith.addf %137, %11 : vector<2x128xf32>
    %139 = vector.extract_strided_slice %138 {offsets = [0, 0], sizes = [2, 32], strides = [1, 1]} : vector<2x128xf32> to vector<2x32xf32>
    %140 = vector.extract_strided_slice %138 {offsets = [0, 32], sizes = [2, 32], strides = [1, 1]} : vector<2x128xf32> to vector<2x32xf32>
    %141 = vector.extract_strided_slice %138 {offsets = [0, 64], sizes = [2, 32], strides = [1, 1]} : vector<2x128xf32> to vector<2x32xf32>
    %142 = vector.extract_strided_slice %138 {offsets = [0, 96], sizes = [2, 32], strides = [1, 1]} : vector<2x128xf32> to vector<2x32xf32>
    %143 = arith.mulf %140, %127 : vector<2x32xf32>
    %144 = arith.mulf %139, %141 : vector<2x32xf32>
    %145 = arith.addf %143, %144 : vector<2x32xf32>
    %146 = math.tanh %145 : vector<2x32xf32>
    %147 = arith.mulf %142, %146 : vector<2x32xf32>
    %c12 = arith.constant 12 : index
    %c0_26 = arith.constant 0 : index
    %148 = vector.load %arg17[%c12, %c0_26] : memref<16x32xf32, #tpu.memory_space<vmem>>, vector<2x32xf32>
    tpu.vector_store %arg17[%c12, %c0_26], %147 {strides = array<i32>} : memref<16x32xf32, #tpu.memory_space<vmem>>, vector<2x32xf32>,
    %149 = vector.extract_strided_slice %22 {offsets = [14, 0], sizes = [2, 128], strides = [1, 1]} : vector<16x128xf32> to vector<2x128xf32>
    %150 = arith.truncf %147 : vector<2x32xf32> to vector<2x32xbf16>
    %cst_27 = arith.constant dense<0.000000e+00> : vector<2x128xf32>
    %151 = tpu.matmul %150, %16, %cst_27 {dimension_numbers = #tpu.dot_dimension_numbers<[1], [0], [0], [1], [0, 0, 1, 1], [], []>} : vector<2x32xbf16>, vector<32x128xbf16>, vector<2x128xf32> -> vector<2x128xf32>
    %152 = arith.addf %149, %151 : vector<2x128xf32>
    %153 = arith.mulf %152, %8 : vector<2x128xf32>
    %154 = math.tanh %153 : vector<2x128xf32>
    %155 = arith.mulf %154, %8 : vector<2x128xf32>
    %156 = arith.addf %155, %11 : vector<2x128xf32>
    %157 = vector.extract_strided_slice %156 {offsets = [0, 0], sizes = [2, 32], strides = [1, 1]} : vector<2x128xf32> to vector<2x32xf32>
    %158 = vector.extract_strided_slice %156 {offsets = [0, 32], sizes = [2, 32], strides = [1, 1]} : vector<2x128xf32> to vector<2x32xf32>
    %159 = vector.extract_strided_slice %156 {offsets = [0, 64], sizes = [2, 32], strides = [1, 1]} : vector<2x128xf32> to vector<2x32xf32>
    %160 = vector.extract_strided_slice %156 {offsets = [0, 96], sizes = [2, 32], strides = [1, 1]} : vector<2x128xf32> to vector<2x32xf32>
    %161 = arith.mulf %158, %145 : vector<2x32xf32>
    %162 = arith.mulf %157, %159 : vector<2x32xf32>
    %163 = arith.addf %161, %162 : vector<2x32xf32>
    %164 = math.tanh %163 : vector<2x32xf32>
    %165 = arith.mulf %160, %164 : vector<2x32xf32>
    %c14 = arith.constant 14 : index
    %c0_28 = arith.constant 0 : index
    %166 = vector.load %arg17[%c14, %c0_28] : memref<16x32xf32, #tpu.memory_space<vmem>>, vector<2x32xf32>
    tpu.vector_store %arg17[%c14, %c0_28], %165 {strides = array<i32>} : memref<16x32xf32, #tpu.memory_space<vmem>>, vector<2x32xf32>,
    %c0_29 = arith.constant 0 : index
    %c0_30 = arith.constant 0 : index
    %167 = vector.load %arg4[%c0_29, %c0_30] : memref<32x128xf32, #tpu.memory_space<vmem>>, vector<32x128xf32>
    %168 = arith.truncf %167 : vector<32x128xf32> to vector<32x128xbf16>
    %c0_31 = arith.constant 0 : index
    %c0_32 = arith.constant 0 : index
    %169 = vector.load %arg5[%c0_31, %c0_32] : memref<32x128xf32, #tpu.memory_space<vmem>>, vector<32x128xf32>
    %170 = arith.truncf %169 : vector<32x128xf32> to vector<32x128xbf16>
    %c0_33 = arith.constant 0 : index
    %c0_34 = arith.constant 0 : index
    %171 = vector.load %arg6[%c0_33, %c0_34] : memref<1x128xf32, #tpu.memory_space<vmem>>, vector<1x128xf32>
    %c0_35 = arith.constant 0 : index
    %c0_36 = arith.constant 0 : index
    %172 = vector.load %arg17[%c0_35, %c0_36] : memref<16x32xf32, #tpu.memory_space<vmem>>, vector<16x32xf32>
    %173 = arith.truncf %172 : vector<16x32xf32> to vector<16x32xbf16>
    %cst_37 = arith.constant dense<0.000000e+00> : vector<16x128xf32>
    %174 = tpu.matmul %173, %168, %cst_37 {dimension_numbers = #tpu.dot_dimension_numbers<[1], [0], [0], [1], [0, 0, 1, 1], [], []>} : vector<16x32xbf16>, vector<32x128xbf16>, vector<16x128xf32> -> vector<16x128xf32>
    %175 = vector.broadcast %171 : vector<1x128xf32> to vector<16x128xf32>
    %176 = arith.addf %174, %175 : vector<16x128xf32>
    %177 = vector.extract_strided_slice %176 {offsets = [0, 0], sizes = [2, 128], strides = [1, 1]} : vector<16x128xf32> to vector<2x128xf32>
    %178 = arith.truncf %12 : vector<2x32xf32> to vector<2x32xbf16>
    %cst_38 = arith.constant dense<0.000000e+00> : vector<2x128xf32>
    %179 = tpu.matmul %178, %170, %cst_38 {dimension_numbers = #tpu.dot_dimension_numbers<[1], [0], [0], [1], [0, 0, 1, 1], [], []>} : vector<2x32xbf16>, vector<32x128xbf16>, vector<2x128xf32> -> vector<2x128xf32>
    %180 = arith.addf %177, %179 : vector<2x128xf32>
    %181 = arith.mulf %180, %8 : vector<2x128xf32>
    %182 = math.tanh %181 : vector<2x128xf32>
    %183 = arith.mulf %182, %8 : vector<2x128xf32>
    %184 = arith.addf %183, %11 : vector<2x128xf32>
    %185 = vector.extract_strided_slice %184 {offsets = [0, 0], sizes = [2, 32], strides = [1, 1]} : vector<2x128xf32> to vector<2x32xf32>
    %186 = vector.extract_strided_slice %184 {offsets = [0, 32], sizes = [2, 32], strides = [1, 1]} : vector<2x128xf32> to vector<2x32xf32>
    %187 = vector.extract_strided_slice %184 {offsets = [0, 64], sizes = [2, 32], strides = [1, 1]} : vector<2x128xf32> to vector<2x32xf32>
    %188 = vector.extract_strided_slice %184 {offsets = [0, 96], sizes = [2, 32], strides = [1, 1]} : vector<2x128xf32> to vector<2x32xf32>
    %189 = arith.mulf %186, %12 : vector<2x32xf32>
    %190 = arith.mulf %185, %187 : vector<2x32xf32>
    %191 = arith.addf %189, %190 : vector<2x32xf32>
    %192 = math.tanh %191 : vector<2x32xf32>
    %193 = arith.mulf %188, %192 : vector<2x32xf32>
    %194 = vector.extract_strided_slice %176 {offsets = [2, 0], sizes = [2, 128], strides = [1, 1]} : vector<16x128xf32> to vector<2x128xf32>
    %195 = arith.truncf %193 : vector<2x32xf32> to vector<2x32xbf16>
    %cst_39 = arith.constant dense<0.000000e+00> : vector<2x128xf32>
    %196 = tpu.matmul %195, %170, %cst_39 {dimension_numbers = #tpu.dot_dimension_numbers<[1], [0], [0], [1], [0, 0, 1, 1], [], []>} : vector<2x32xbf16>, vector<32x128xbf16>, vector<2x128xf32> -> vector<2x128xf32>
    %197 = arith.addf %194, %196 : vector<2x128xf32>
    %198 = arith.mulf %197, %8 : vector<2x128xf32>
    %199 = math.tanh %198 : vector<2x128xf32>
    %200 = arith.mulf %199, %8 : vector<2x128xf32>
    %201 = arith.addf %200, %11 : vector<2x128xf32>
    %202 = vector.extract_strided_slice %201 {offsets = [0, 0], sizes = [2, 32], strides = [1, 1]} : vector<2x128xf32> to vector<2x32xf32>
    %203 = vector.extract_strided_slice %201 {offsets = [0, 32], sizes = [2, 32], strides = [1, 1]} : vector<2x128xf32> to vector<2x32xf32>
    %204 = vector.extract_strided_slice %201 {offsets = [0, 64], sizes = [2, 32], strides = [1, 1]} : vector<2x128xf32> to vector<2x32xf32>
    %205 = vector.extract_strided_slice %201 {offsets = [0, 96], sizes = [2, 32], strides = [1, 1]} : vector<2x128xf32> to vector<2x32xf32>
    %206 = arith.mulf %203, %191 : vector<2x32xf32>
    %207 = arith.mulf %202, %204 : vector<2x32xf32>
    %208 = arith.addf %206, %207 : vector<2x32xf32>
    %209 = math.tanh %208 : vector<2x32xf32>
    %210 = arith.mulf %205, %209 : vector<2x32xf32>
    %211 = vector.extract_strided_slice %176 {offsets = [4, 0], sizes = [2, 128], strides = [1, 1]} : vector<16x128xf32> to vector<2x128xf32>
    %212 = arith.truncf %210 : vector<2x32xf32> to vector<2x32xbf16>
    %cst_40 = arith.constant dense<0.000000e+00> : vector<2x128xf32>
    %213 = tpu.matmul %212, %170, %cst_40 {dimension_numbers = #tpu.dot_dimension_numbers<[1], [0], [0], [1], [0, 0, 1, 1], [], []>} : vector<2x32xbf16>, vector<32x128xbf16>, vector<2x128xf32> -> vector<2x128xf32>
    %214 = arith.addf %211, %213 : vector<2x128xf32>
    %215 = arith.mulf %214, %8 : vector<2x128xf32>
    %216 = math.tanh %215 : vector<2x128xf32>
    %217 = arith.mulf %216, %8 : vector<2x128xf32>
    %218 = arith.addf %217, %11 : vector<2x128xf32>
    %219 = vector.extract_strided_slice %218 {offsets = [0, 0], sizes = [2, 32], strides = [1, 1]} : vector<2x128xf32> to vector<2x32xf32>
    %220 = vector.extract_strided_slice %218 {offsets = [0, 32], sizes = [2, 32], strides = [1, 1]} : vector<2x128xf32> to vector<2x32xf32>
    %221 = vector.extract_strided_slice %218 {offsets = [0, 64], sizes = [2, 32], strides = [1, 1]} : vector<2x128xf32> to vector<2x32xf32>
    %222 = vector.extract_strided_slice %218 {offsets = [0, 96], sizes = [2, 32], strides = [1, 1]} : vector<2x128xf32> to vector<2x32xf32>
    %223 = arith.mulf %220, %208 : vector<2x32xf32>
    %224 = arith.mulf %219, %221 : vector<2x32xf32>
    %225 = arith.addf %223, %224 : vector<2x32xf32>
    %226 = math.tanh %225 : vector<2x32xf32>
    %227 = arith.mulf %222, %226 : vector<2x32xf32>
    %228 = vector.extract_strided_slice %176 {offsets = [6, 0], sizes = [2, 128], strides = [1, 1]} : vector<16x128xf32> to vector<2x128xf32>
    %229 = arith.truncf %227 : vector<2x32xf32> to vector<2x32xbf16>
    %cst_41 = arith.constant dense<0.000000e+00> : vector<2x128xf32>
    %230 = tpu.matmul %229, %170, %cst_41 {dimension_numbers = #tpu.dot_dimension_numbers<[1], [0], [0], [1], [0, 0, 1, 1], [], []>} : vector<2x32xbf16>, vector<32x128xbf16>, vector<2x128xf32> -> vector<2x128xf32>
    %231 = arith.addf %228, %230 : vector<2x128xf32>
    %232 = arith.mulf %231, %8 : vector<2x128xf32>
    %233 = math.tanh %232 : vector<2x128xf32>
    %234 = arith.mulf %233, %8 : vector<2x128xf32>
    %235 = arith.addf %234, %11 : vector<2x128xf32>
    %236 = vector.extract_strided_slice %235 {offsets = [0, 0], sizes = [2, 32], strides = [1, 1]} : vector<2x128xf32> to vector<2x32xf32>
    %237 = vector.extract_strided_slice %235 {offsets = [0, 32], sizes = [2, 32], strides = [1, 1]} : vector<2x128xf32> to vector<2x32xf32>
    %238 = vector.extract_strided_slice %235 {offsets = [0, 64], sizes = [2, 32], strides = [1, 1]} : vector<2x128xf32> to vector<2x32xf32>
    %239 = vector.extract_strided_slice %235 {offsets = [0, 96], sizes = [2, 32], strides = [1, 1]} : vector<2x128xf32> to vector<2x32xf32>
    %240 = arith.mulf %237, %225 : vector<2x32xf32>
    %241 = arith.mulf %236, %238 : vector<2x32xf32>
    %242 = arith.addf %240, %241 : vector<2x32xf32>
    %243 = math.tanh %242 : vector<2x32xf32>
    %244 = arith.mulf %239, %243 : vector<2x32xf32>
    %245 = vector.extract_strided_slice %176 {offsets = [8, 0], sizes = [2, 128], strides = [1, 1]} : vector<16x128xf32> to vector<2x128xf32>
    %246 = arith.truncf %244 : vector<2x32xf32> to vector<2x32xbf16>
    %cst_42 = arith.constant dense<0.000000e+00> : vector<2x128xf32>
    %247 = tpu.matmul %246, %170, %cst_42 {dimension_numbers = #tpu.dot_dimension_numbers<[1], [0], [0], [1], [0, 0, 1, 1], [], []>} : vector<2x32xbf16>, vector<32x128xbf16>, vector<2x128xf32> -> vector<2x128xf32>
    %248 = arith.addf %245, %247 : vector<2x128xf32>
    %249 = arith.mulf %248, %8 : vector<2x128xf32>
    %250 = math.tanh %249 : vector<2x128xf32>
    %251 = arith.mulf %250, %8 : vector<2x128xf32>
    %252 = arith.addf %251, %11 : vector<2x128xf32>
    %253 = vector.extract_strided_slice %252 {offsets = [0, 0], sizes = [2, 32], strides = [1, 1]} : vector<2x128xf32> to vector<2x32xf32>
    %254 = vector.extract_strided_slice %252 {offsets = [0, 32], sizes = [2, 32], strides = [1, 1]} : vector<2x128xf32> to vector<2x32xf32>
    %255 = vector.extract_strided_slice %252 {offsets = [0, 64], sizes = [2, 32], strides = [1, 1]} : vector<2x128xf32> to vector<2x32xf32>
    %256 = vector.extract_strided_slice %252 {offsets = [0, 96], sizes = [2, 32], strides = [1, 1]} : vector<2x128xf32> to vector<2x32xf32>
    %257 = arith.mulf %254, %242 : vector<2x32xf32>
    %258 = arith.mulf %253, %255 : vector<2x32xf32>
    %259 = arith.addf %257, %258 : vector<2x32xf32>
    %260 = math.tanh %259 : vector<2x32xf32>
    %261 = arith.mulf %256, %260 : vector<2x32xf32>
    %262 = vector.extract_strided_slice %176 {offsets = [10, 0], sizes = [2, 128], strides = [1, 1]} : vector<16x128xf32> to vector<2x128xf32>
    %263 = arith.truncf %261 : vector<2x32xf32> to vector<2x32xbf16>
    %cst_43 = arith.constant dense<0.000000e+00> : vector<2x128xf32>
    %264 = tpu.matmul %263, %170, %cst_43 {dimension_numbers = #tpu.dot_dimension_numbers<[1], [0], [0], [1], [0, 0, 1, 1], [], []>} : vector<2x32xbf16>, vector<32x128xbf16>, vector<2x128xf32> -> vector<2x128xf32>
    %265 = arith.addf %262, %264 : vector<2x128xf32>
    %266 = arith.mulf %265, %8 : vector<2x128xf32>
    %267 = math.tanh %266 : vector<2x128xf32>
    %268 = arith.mulf %267, %8 : vector<2x128xf32>
    %269 = arith.addf %268, %11 : vector<2x128xf32>
    %270 = vector.extract_strided_slice %269 {offsets = [0, 0], sizes = [2, 32], strides = [1, 1]} : vector<2x128xf32> to vector<2x32xf32>
    %271 = vector.extract_strided_slice %269 {offsets = [0, 32], sizes = [2, 32], strides = [1, 1]} : vector<2x128xf32> to vector<2x32xf32>
    %272 = vector.extract_strided_slice %269 {offsets = [0, 64], sizes = [2, 32], strides = [1, 1]} : vector<2x128xf32> to vector<2x32xf32>
    %273 = vector.extract_strided_slice %269 {offsets = [0, 96], sizes = [2, 32], strides = [1, 1]} : vector<2x128xf32> to vector<2x32xf32>
    %274 = arith.mulf %271, %259 : vector<2x32xf32>
    %275 = arith.mulf %270, %272 : vector<2x32xf32>
    %276 = arith.addf %274, %275 : vector<2x32xf32>
    %277 = math.tanh %276 : vector<2x32xf32>
    %278 = arith.mulf %273, %277 : vector<2x32xf32>
    %279 = vector.extract_strided_slice %176 {offsets = [12, 0], sizes = [2, 128], strides = [1, 1]} : vector<16x128xf32> to vector<2x128xf32>
    %280 = arith.truncf %278 : vector<2x32xf32> to vector<2x32xbf16>
    %cst_44 = arith.constant dense<0.000000e+00> : vector<2x128xf32>
    %281 = tpu.matmul %280, %170, %cst_44 {dimension_numbers = #tpu.dot_dimension_numbers<[1], [0], [0], [1], [0, 0, 1, 1], [], []>} : vector<2x32xbf16>, vector<32x128xbf16>, vector<2x128xf32> -> vector<2x128xf32>
    %282 = arith.addf %279, %281 : vector<2x128xf32>
    %283 = arith.mulf %282, %8 : vector<2x128xf32>
    %284 = math.tanh %283 : vector<2x128xf32>
    %285 = arith.mulf %284, %8 : vector<2x128xf32>
    %286 = arith.addf %285, %11 : vector<2x128xf32>
    %287 = vector.extract_strided_slice %286 {offsets = [0, 0], sizes = [2, 32], strides = [1, 1]} : vector<2x128xf32> to vector<2x32xf32>
    %288 = vector.extract_strided_slice %286 {offsets = [0, 32], sizes = [2, 32], strides = [1, 1]} : vector<2x128xf32> to vector<2x32xf32>
    %289 = vector.extract_strided_slice %286 {offsets = [0, 64], sizes = [2, 32], strides = [1, 1]} : vector<2x128xf32> to vector<2x32xf32>
    %290 = vector.extract_strided_slice %286 {offsets = [0, 96], sizes = [2, 32], strides = [1, 1]} : vector<2x128xf32> to vector<2x32xf32>
    %291 = arith.mulf %288, %276 : vector<2x32xf32>
    %292 = arith.mulf %287, %289 : vector<2x32xf32>
    %293 = arith.addf %291, %292 : vector<2x32xf32>
    %294 = math.tanh %293 : vector<2x32xf32>
    %295 = arith.mulf %290, %294 : vector<2x32xf32>
    %296 = vector.extract_strided_slice %176 {offsets = [14, 0], sizes = [2, 128], strides = [1, 1]} : vector<16x128xf32> to vector<2x128xf32>
    %297 = arith.truncf %295 : vector<2x32xf32> to vector<2x32xbf16>
    %cst_45 = arith.constant dense<0.000000e+00> : vector<2x128xf32>
    %298 = tpu.matmul %297, %170, %cst_45 {dimension_numbers = #tpu.dot_dimension_numbers<[1], [0], [0], [1], [0, 0, 1, 1], [], []>} : vector<2x32xbf16>, vector<32x128xbf16>, vector<2x128xf32> -> vector<2x128xf32>
    %299 = arith.addf %296, %298 : vector<2x128xf32>
    %300 = arith.mulf %299, %8 : vector<2x128xf32>
    %301 = math.tanh %300 : vector<2x128xf32>
    %302 = arith.mulf %301, %8 : vector<2x128xf32>
    %303 = arith.addf %302, %11 : vector<2x128xf32>
    %304 = vector.extract_strided_slice %303 {offsets = [0, 0], sizes = [2, 32], strides = [1, 1]} : vector<2x128xf32> to vector<2x32xf32>
    %305 = vector.extract_strided_slice %303 {offsets = [0, 32], sizes = [2, 32], strides = [1, 1]} : vector<2x128xf32> to vector<2x32xf32>
    %306 = vector.extract_strided_slice %303 {offsets = [0, 64], sizes = [2, 32], strides = [1, 1]} : vector<2x128xf32> to vector<2x32xf32>
    %307 = vector.extract_strided_slice %303 {offsets = [0, 96], sizes = [2, 32], strides = [1, 1]} : vector<2x128xf32> to vector<2x32xf32>
    %308 = arith.mulf %305, %293 : vector<2x32xf32>
    %309 = arith.mulf %304, %306 : vector<2x32xf32>
    %310 = arith.addf %308, %309 : vector<2x32xf32>
    %311 = math.tanh %310 : vector<2x32xf32>
    %312 = arith.mulf %307, %311 : vector<2x32xf32>
    %c0_46 = arith.constant 0 : index
    %c0_47 = arith.constant 0 : index
    %313 = vector.load %arg15[%c0_46, %c0_47] : memref<2x32xf32, #tpu.memory_space<vmem>>, vector<2x32xf32>
    tpu.vector_store %arg15[%c0_46, %c0_47], %312 {strides = array<i32>} : memref<2x32xf32, #tpu.memory_space<vmem>>, vector<2x32xf32>,
    %c0_48 = arith.constant 0 : index
    %c0_49 = arith.constant 0 : index
    %314 = vector.load %arg7[%c0_48, %c0_49] : memref<64x128xf32, #tpu.memory_space<vmem>>, vector<64x128xf32>
    %315 = arith.truncf %314 : vector<64x128xf32> to vector<64x128xbf16>
    %c0_50 = arith.constant 0 : index
    %c0_51 = arith.constant 0 : index
    %316 = vector.load %arg8[%c0_50, %c0_51] : memref<1x128xf32, #tpu.memory_space<vmem>>, vector<1x128xf32>
    %317 = vector.shape_cast %316 : vector<1x128xf32> to vector<1x128xf32>
    %318 = vector.broadcast %317 : vector<1x128xf32> to vector<2x128xf32>
    %c0_52 = arith.constant 0 : index
    %c0_53 = arith.constant 0 : index
    %319 = vector.load %arg9[%c0_52, %c0_53] : memref<64x128xf32, #tpu.memory_space<vmem>>, vector<64x128xf32>
    %320 = arith.truncf %319 : vector<64x128xf32> to vector<64x128xbf16>
    %c0_54 = arith.constant 0 : index
    %c0_55 = arith.constant 0 : index
    %321 = vector.load %arg10[%c0_54, %c0_55] : memref<1x128xf32, #tpu.memory_space<vmem>>, vector<1x128xf32>
    %322 = vector.shape_cast %321 : vector<1x128xf32> to vector<1x128xf32>
    %323 = vector.broadcast %322 : vector<1x128xf32> to vector<2x128xf32>
    %324 = tpu.concatenate %312, %12 in 1 : vector<2x32xf32>, vector<2x32xf32> -> vector<2x64xf32>
    %325 = arith.truncf %324 : vector<2x64xf32> to vector<2x64xbf16>
    %cst_56 = arith.constant dense<0.000000e+00> : vector<2x128xf32>
    %326 = tpu.matmul %325, %315, %cst_56 {dimension_numbers = #tpu.dot_dimension_numbers<[1], [0], [0], [1], [0, 0, 1, 1], [], []>} : vector<2x64xbf16>, vector<64x128xbf16>, vector<2x128xf32> -> vector<2x128xf32>
    %327 = arith.addf %326, %318 : vector<2x128xf32>
    %328 = arith.mulf %327, %8 : vector<2x128xf32>
    %329 = math.tanh %328 : vector<2x128xf32>
    %330 = arith.mulf %329, %8 : vector<2x128xf32>
    %331 = arith.addf %330, %11 : vector<2x128xf32>
    %332 = vector.extract_strided_slice %331 {offsets = [0, 0], sizes = [2, 32], strides = [1, 1]} : vector<2x128xf32> to vector<2x32xf32>
    %333 = vector.extract_strided_slice %331 {offsets = [0, 32], sizes = [2, 32], strides = [1, 1]} : vector<2x128xf32> to vector<2x32xf32>
    %334 = vector.extract_strided_slice %331 {offsets = [0, 64], sizes = [2, 32], strides = [1, 1]} : vector<2x128xf32> to vector<2x32xf32>
    %335 = vector.extract_strided_slice %331 {offsets = [0, 96], sizes = [2, 32], strides = [1, 1]} : vector<2x128xf32> to vector<2x32xf32>
    %336 = arith.mulf %333, %12 : vector<2x32xf32>
    %337 = arith.mulf %332, %334 : vector<2x32xf32>
    %338 = arith.addf %336, %337 : vector<2x32xf32>
    %339 = math.tanh %338 : vector<2x32xf32>
    %340 = arith.mulf %335, %339 : vector<2x32xf32>
    %341 = tpu.concatenate %340, %12 in 1 : vector<2x32xf32>, vector<2x32xf32> -> vector<2x64xf32>
    %342 = arith.truncf %341 : vector<2x64xf32> to vector<2x64xbf16>
    %cst_57 = arith.constant dense<0.000000e+00> : vector<2x128xf32>
    %343 = tpu.matmul %342, %320, %cst_57 {dimension_numbers = #tpu.dot_dimension_numbers<[1], [0], [0], [1], [0, 0, 1, 1], [], []>} : vector<2x64xbf16>, vector<64x128xbf16>, vector<2x128xf32> -> vector<2x128xf32>
    %344 = arith.addf %343, %323 : vector<2x128xf32>
    %345 = arith.mulf %344, %8 : vector<2x128xf32>
    %346 = math.tanh %345 : vector<2x128xf32>
    %347 = arith.mulf %346, %8 : vector<2x128xf32>
    %348 = arith.addf %347, %11 : vector<2x128xf32>
    %349 = vector.extract_strided_slice %348 {offsets = [0, 0], sizes = [2, 32], strides = [1, 1]} : vector<2x128xf32> to vector<2x32xf32>
    %350 = vector.extract_strided_slice %348 {offsets = [0, 32], sizes = [2, 32], strides = [1, 1]} : vector<2x128xf32> to vector<2x32xf32>
    %351 = vector.extract_strided_slice %348 {offsets = [0, 64], sizes = [2, 32], strides = [1, 1]} : vector<2x128xf32> to vector<2x32xf32>
    %352 = vector.extract_strided_slice %348 {offsets = [0, 96], sizes = [2, 32], strides = [1, 1]} : vector<2x128xf32> to vector<2x32xf32>
    %353 = arith.mulf %350, %12 : vector<2x32xf32>
    %354 = arith.mulf %349, %351 : vector<2x32xf32>
    %355 = arith.addf %353, %354 : vector<2x32xf32>
    %356 = math.tanh %355 : vector<2x32xf32>
    %357 = arith.mulf %352, %356 : vector<2x32xf32>
    %c0_58 = arith.constant 0 : index
    %c0_59 = arith.constant 0 : index
    %358 = vector.load %arg17[%c0_58, %c0_59] : memref<16x32xf32, #tpu.memory_space<vmem>>, vector<2x32xf32>
    tpu.vector_store %arg17[%c0_58, %c0_59], %357 {strides = array<i32>} : memref<16x32xf32, #tpu.memory_space<vmem>>, vector<2x32xf32>,
    %359 = tpu.concatenate %357, %340 in 1 : vector<2x32xf32>, vector<2x32xf32> -> vector<2x64xf32>
    %360 = arith.truncf %359 : vector<2x64xf32> to vector<2x64xbf16>
    %cst_60 = arith.constant dense<0.000000e+00> : vector<2x128xf32>
    %361 = tpu.matmul %360, %315, %cst_60 {dimension_numbers = #tpu.dot_dimension_numbers<[1], [0], [0], [1], [0, 0, 1, 1], [], []>} : vector<2x64xbf16>, vector<64x128xbf16>, vector<2x128xf32> -> vector<2x128xf32>
    %362 = arith.addf %361, %318 : vector<2x128xf32>
    %363 = arith.mulf %362, %8 : vector<2x128xf32>
    %364 = math.tanh %363 : vector<2x128xf32>
    %365 = arith.mulf %364, %8 : vector<2x128xf32>
    %366 = arith.addf %365, %11 : vector<2x128xf32>
    %367 = vector.extract_strided_slice %366 {offsets = [0, 0], sizes = [2, 32], strides = [1, 1]} : vector<2x128xf32> to vector<2x32xf32>
    %368 = vector.extract_strided_slice %366 {offsets = [0, 32], sizes = [2, 32], strides = [1, 1]} : vector<2x128xf32> to vector<2x32xf32>
    %369 = vector.extract_strided_slice %366 {offsets = [0, 64], sizes = [2, 32], strides = [1, 1]} : vector<2x128xf32> to vector<2x32xf32>
    %370 = vector.extract_strided_slice %366 {offsets = [0, 96], sizes = [2, 32], strides = [1, 1]} : vector<2x128xf32> to vector<2x32xf32>
    %371 = arith.mulf %368, %338 : vector<2x32xf32>
    %372 = arith.mulf %367, %369 : vector<2x32xf32>
    %373 = arith.addf %371, %372 : vector<2x32xf32>
    %374 = math.tanh %373 : vector<2x32xf32>
    %375 = arith.mulf %370, %374 : vector<2x32xf32>
    %376 = tpu.concatenate %375, %357 in 1 : vector<2x32xf32>, vector<2x32xf32> -> vector<2x64xf32>
    %377 = arith.truncf %376 : vector<2x64xf32> to vector<2x64xbf16>
    %cst_61 = arith.constant dense<0.000000e+00> : vector<2x128xf32>
    %378 = tpu.matmul %377, %320, %cst_61 {dimension_numbers = #tpu.dot_dimension_numbers<[1], [0], [0], [1], [0, 0, 1, 1], [], []>} : vector<2x64xbf16>, vector<64x128xbf16>, vector<2x128xf32> -> vector<2x128xf32>
    %379 = arith.addf %378, %323 : vector<2x128xf32>
    %380 = arith.mulf %379, %8 : vector<2x128xf32>
    %381 = math.tanh %380 : vector<2x128xf32>
    %382 = arith.mulf %381, %8 : vector<2x128xf32>
    %383 = arith.addf %382, %11 : vector<2x128xf32>
    %384 = vector.extract_strided_slice %383 {offsets = [0, 0], sizes = [2, 32], strides = [1, 1]} : vector<2x128xf32> to vector<2x32xf32>
    %385 = vector.extract_strided_slice %383 {offsets = [0, 32], sizes = [2, 32], strides = [1, 1]} : vector<2x128xf32> to vector<2x32xf32>
    %386 = vector.extract_strided_slice %383 {offsets = [0, 64], sizes = [2, 32], strides = [1, 1]} : vector<2x128xf32> to vector<2x32xf32>
    %387 = vector.extract_strided_slice %383 {offsets = [0, 96], sizes = [2, 32], strides = [1, 1]} : vector<2x128xf32> to vector<2x32xf32>
    %388 = arith.mulf %385, %355 : vector<2x32xf32>
    %389 = arith.mulf %384, %386 : vector<2x32xf32>
    %390 = arith.addf %388, %389 : vector<2x32xf32>
    %391 = math.tanh %390 : vector<2x32xf32>
    %392 = arith.mulf %387, %391 : vector<2x32xf32>
    %c2_62 = arith.constant 2 : index
    %c0_63 = arith.constant 0 : index
    %393 = vector.load %arg17[%c2_62, %c0_63] : memref<16x32xf32, #tpu.memory_space<vmem>>, vector<2x32xf32>
    tpu.vector_store %arg17[%c2_62, %c0_63], %392 {strides = array<i32>} : memref<16x32xf32, #tpu.memory_space<vmem>>, vector<2x32xf32>,
    %394 = tpu.concatenate %392, %375 in 1 : vector<2x32xf32>, vector<2x32xf32> -> vector<2x64xf32>
    %395 = arith.truncf %394 : vector<2x64xf32> to vector<2x64xbf16>
    %cst_64 = arith.constant dense<0.000000e+00> : vector<2x128xf32>
    %396 = tpu.matmul %395, %315, %cst_64 {dimension_numbers = #tpu.dot_dimension_numbers<[1], [0], [0], [1], [0, 0, 1, 1], [], []>} : vector<2x64xbf16>, vector<64x128xbf16>, vector<2x128xf32> -> vector<2x128xf32>
    %397 = arith.addf %396, %318 : vector<2x128xf32>
    %398 = arith.mulf %397, %8 : vector<2x128xf32>
    %399 = math.tanh %398 : vector<2x128xf32>
    %400 = arith.mulf %399, %8 : vector<2x128xf32>
    %401 = arith.addf %400, %11 : vector<2x128xf32>
    %402 = vector.extract_strided_slice %401 {offsets = [0, 0], sizes = [2, 32], strides = [1, 1]} : vector<2x128xf32> to vector<2x32xf32>
    %403 = vector.extract_strided_slice %401 {offsets = [0, 32], sizes = [2, 32], strides = [1, 1]} : vector<2x128xf32> to vector<2x32xf32>
    %404 = vector.extract_strided_slice %401 {offsets = [0, 64], sizes = [2, 32], strides = [1, 1]} : vector<2x128xf32> to vector<2x32xf32>
    %405 = vector.extract_strided_slice %401 {offsets = [0, 96], sizes = [2, 32], strides = [1, 1]} : vector<2x128xf32> to vector<2x32xf32>
    %406 = arith.mulf %403, %373 : vector<2x32xf32>
    %407 = arith.mulf %402, %404 : vector<2x32xf32>
    %408 = arith.addf %406, %407 : vector<2x32xf32>
    %409 = math.tanh %408 : vector<2x32xf32>
    %410 = arith.mulf %405, %409 : vector<2x32xf32>
    %411 = tpu.concatenate %410, %392 in 1 : vector<2x32xf32>, vector<2x32xf32> -> vector<2x64xf32>
    %412 = arith.truncf %411 : vector<2x64xf32> to vector<2x64xbf16>
    %cst_65 = arith.constant dense<0.000000e+00> : vector<2x128xf32>
    %413 = tpu.matmul %412, %320, %cst_65 {dimension_numbers = #tpu.dot_dimension_numbers<[1], [0], [0], [1], [0, 0, 1, 1], [], []>} : vector<2x64xbf16>, vector<64x128xbf16>, vector<2x128xf32> -> vector<2x128xf32>
    %414 = arith.addf %413, %323 : vector<2x128xf32>
    %415 = arith.mulf %414, %8 : vector<2x128xf32>
    %416 = math.tanh %415 : vector<2x128xf32>
    %417 = arith.mulf %416, %8 : vector<2x128xf32>
    %418 = arith.addf %417, %11 : vector<2x128xf32>
    %419 = vector.extract_strided_slice %418 {offsets = [0, 0], sizes = [2, 32], strides = [1, 1]} : vector<2x128xf32> to vector<2x32xf32>
    %420 = vector.extract_strided_slice %418 {offsets = [0, 32], sizes = [2, 32], strides = [1, 1]} : vector<2x128xf32> to vector<2x32xf32>
    %421 = vector.extract_strided_slice %418 {offsets = [0, 64], sizes = [2, 32], strides = [1, 1]} : vector<2x128xf32> to vector<2x32xf32>
    %422 = vector.extract_strided_slice %418 {offsets = [0, 96], sizes = [2, 32], strides = [1, 1]} : vector<2x128xf32> to vector<2x32xf32>
    %423 = arith.mulf %420, %390 : vector<2x32xf32>
    %424 = arith.mulf %419, %421 : vector<2x32xf32>
    %425 = arith.addf %423, %424 : vector<2x32xf32>
    %426 = math.tanh %425 : vector<2x32xf32>
    %427 = arith.mulf %422, %426 : vector<2x32xf32>
    %c4_66 = arith.constant 4 : index
    %c0_67 = arith.constant 0 : index
    %428 = vector.load %arg17[%c4_66, %c0_67] : memref<16x32xf32, #tpu.memory_space<vmem>>, vector<2x32xf32>
    tpu.vector_store %arg17[%c4_66, %c0_67], %427 {strides = array<i32>} : memref<16x32xf32, #tpu.memory_space<vmem>>, vector<2x32xf32>,
    %429 = tpu.concatenate %427, %410 in 1 : vector<2x32xf32>, vector<2x32xf32> -> vector<2x64xf32>
    %430 = arith.truncf %429 : vector<2x64xf32> to vector<2x64xbf16>
    %cst_68 = arith.constant dense<0.000000e+00> : vector<2x128xf32>
    %431 = tpu.matmul %430, %315, %cst_68 {dimension_numbers = #tpu.dot_dimension_numbers<[1], [0], [0], [1], [0, 0, 1, 1], [], []>} : vector<2x64xbf16>, vector<64x128xbf16>, vector<2x128xf32> -> vector<2x128xf32>
    %432 = arith.addf %431, %318 : vector<2x128xf32>
    %433 = arith.mulf %432, %8 : vector<2x128xf32>
    %434 = math.tanh %433 : vector<2x128xf32>
    %435 = arith.mulf %434, %8 : vector<2x128xf32>
    %436 = arith.addf %435, %11 : vector<2x128xf32>
    %437 = vector.extract_strided_slice %436 {offsets = [0, 0], sizes = [2, 32], strides = [1, 1]} : vector<2x128xf32> to vector<2x32xf32>
    %438 = vector.extract_strided_slice %436 {offsets = [0, 32], sizes = [2, 32], strides = [1, 1]} : vector<2x128xf32> to vector<2x32xf32>
    %439 = vector.extract_strided_slice %436 {offsets = [0, 64], sizes = [2, 32], strides = [1, 1]} : vector<2x128xf32> to vector<2x32xf32>
    %440 = vector.extract_strided_slice %436 {offsets = [0, 96], sizes = [2, 32], strides = [1, 1]} : vector<2x128xf32> to vector<2x32xf32>
    %441 = arith.mulf %438, %408 : vector<2x32xf32>
    %442 = arith.mulf %437, %439 : vector<2x32xf32>
    %443 = arith.addf %441, %442 : vector<2x32xf32>
    %444 = math.tanh %443 : vector<2x32xf32>
    %445 = arith.mulf %440, %444 : vector<2x32xf32>
    %446 = tpu.concatenate %445, %427 in 1 : vector<2x32xf32>, vector<2x32xf32> -> vector<2x64xf32>
    %447 = arith.truncf %446 : vector<2x64xf32> to vector<2x64xbf16>
    %cst_69 = arith.constant dense<0.000000e+00> : vector<2x128xf32>
    %448 = tpu.matmul %447, %320, %cst_69 {dimension_numbers = #tpu.dot_dimension_numbers<[1], [0], [0], [1], [0, 0, 1, 1], [], []>} : vector<2x64xbf16>, vector<64x128xbf16>, vector<2x128xf32> -> vector<2x128xf32>
    %449 = arith.addf %448, %323 : vector<2x128xf32>
    %450 = arith.mulf %449, %8 : vector<2x128xf32>
    %451 = math.tanh %450 : vector<2x128xf32>
    %452 = arith.mulf %451, %8 : vector<2x128xf32>
    %453 = arith.addf %452, %11 : vector<2x128xf32>
    %454 = vector.extract_strided_slice %453 {offsets = [0, 0], sizes = [2, 32], strides = [1, 1]} : vector<2x128xf32> to vector<2x32xf32>
    %455 = vector.extract_strided_slice %453 {offsets = [0, 32], sizes = [2, 32], strides = [1, 1]} : vector<2x128xf32> to vector<2x32xf32>
    %456 = vector.extract_strided_slice %453 {offsets = [0, 64], sizes = [2, 32], strides = [1, 1]} : vector<2x128xf32> to vector<2x32xf32>
    %457 = vector.extract_strided_slice %453 {offsets = [0, 96], sizes = [2, 32], strides = [1, 1]} : vector<2x128xf32> to vector<2x32xf32>
    %458 = arith.mulf %455, %425 : vector<2x32xf32>
    %459 = arith.mulf %454, %456 : vector<2x32xf32>
    %460 = arith.addf %458, %459 : vector<2x32xf32>
    %461 = math.tanh %460 : vector<2x32xf32>
    %462 = arith.mulf %457, %461 : vector<2x32xf32>
    %c6_70 = arith.constant 6 : index
    %c0_71 = arith.constant 0 : index
    %463 = vector.load %arg17[%c6_70, %c0_71] : memref<16x32xf32, #tpu.memory_space<vmem>>, vector<2x32xf32>
    tpu.vector_store %arg17[%c6_70, %c0_71], %462 {strides = array<i32>} : memref<16x32xf32, #tpu.memory_space<vmem>>, vector<2x32xf32>,
    %464 = tpu.concatenate %462, %445 in 1 : vector<2x32xf32>, vector<2x32xf32> -> vector<2x64xf32>
    %465 = arith.truncf %464 : vector<2x64xf32> to vector<2x64xbf16>
    %cst_72 = arith.constant dense<0.000000e+00> : vector<2x128xf32>
    %466 = tpu.matmul %465, %315, %cst_72 {dimension_numbers = #tpu.dot_dimension_numbers<[1], [0], [0], [1], [0, 0, 1, 1], [], []>} : vector<2x64xbf16>, vector<64x128xbf16>, vector<2x128xf32> -> vector<2x128xf32>
    %467 = arith.addf %466, %318 : vector<2x128xf32>
    %468 = arith.mulf %467, %8 : vector<2x128xf32>
    %469 = math.tanh %468 : vector<2x128xf32>
    %470 = arith.mulf %469, %8 : vector<2x128xf32>
    %471 = arith.addf %470, %11 : vector<2x128xf32>
    %472 = vector.extract_strided_slice %471 {offsets = [0, 0], sizes = [2, 32], strides = [1, 1]} : vector<2x128xf32> to vector<2x32xf32>
    %473 = vector.extract_strided_slice %471 {offsets = [0, 32], sizes = [2, 32], strides = [1, 1]} : vector<2x128xf32> to vector<2x32xf32>
    %474 = vector.extract_strided_slice %471 {offsets = [0, 64], sizes = [2, 32], strides = [1, 1]} : vector<2x128xf32> to vector<2x32xf32>
    %475 = vector.extract_strided_slice %471 {offsets = [0, 96], sizes = [2, 32], strides = [1, 1]} : vector<2x128xf32> to vector<2x32xf32>
    %476 = arith.mulf %473, %443 : vector<2x32xf32>
    %477 = arith.mulf %472, %474 : vector<2x32xf32>
    %478 = arith.addf %476, %477 : vector<2x32xf32>
    %479 = math.tanh %478 : vector<2x32xf32>
    %480 = arith.mulf %475, %479 : vector<2x32xf32>
    %481 = tpu.concatenate %480, %462 in 1 : vector<2x32xf32>, vector<2x32xf32> -> vector<2x64xf32>
    %482 = arith.truncf %481 : vector<2x64xf32> to vector<2x64xbf16>
    %cst_73 = arith.constant dense<0.000000e+00> : vector<2x128xf32>
    %483 = tpu.matmul %482, %320, %cst_73 {dimension_numbers = #tpu.dot_dimension_numbers<[1], [0], [0], [1], [0, 0, 1, 1], [], []>} : vector<2x64xbf16>, vector<64x128xbf16>, vector<2x128xf32> -> vector<2x128xf32>
    %484 = arith.addf %483, %323 : vector<2x128xf32>
    %485 = arith.mulf %484, %8 : vector<2x128xf32>
    %486 = math.tanh %485 : vector<2x128xf32>
    %487 = arith.mulf %486, %8 : vector<2x128xf32>
    %488 = arith.addf %487, %11 : vector<2x128xf32>
    %489 = vector.extract_strided_slice %488 {offsets = [0, 0], sizes = [2, 32], strides = [1, 1]} : vector<2x128xf32> to vector<2x32xf32>
    %490 = vector.extract_strided_slice %488 {offsets = [0, 32], sizes = [2, 32], strides = [1, 1]} : vector<2x128xf32> to vector<2x32xf32>
    %491 = vector.extract_strided_slice %488 {offsets = [0, 64], sizes = [2, 32], strides = [1, 1]} : vector<2x128xf32> to vector<2x32xf32>
    %492 = vector.extract_strided_slice %488 {offsets = [0, 96], sizes = [2, 32], strides = [1, 1]} : vector<2x128xf32> to vector<2x32xf32>
    %493 = arith.mulf %490, %460 : vector<2x32xf32>
    %494 = arith.mulf %489, %491 : vector<2x32xf32>
    %495 = arith.addf %493, %494 : vector<2x32xf32>
    %496 = math.tanh %495 : vector<2x32xf32>
    %497 = arith.mulf %492, %496 : vector<2x32xf32>
    %c8_74 = arith.constant 8 : index
    %c0_75 = arith.constant 0 : index
    %498 = vector.load %arg17[%c8_74, %c0_75] : memref<16x32xf32, #tpu.memory_space<vmem>>, vector<2x32xf32>
    tpu.vector_store %arg17[%c8_74, %c0_75], %497 {strides = array<i32>} : memref<16x32xf32, #tpu.memory_space<vmem>>, vector<2x32xf32>,
    %499 = tpu.concatenate %497, %480 in 1 : vector<2x32xf32>, vector<2x32xf32> -> vector<2x64xf32>
    %500 = arith.truncf %499 : vector<2x64xf32> to vector<2x64xbf16>
    %cst_76 = arith.constant dense<0.000000e+00> : vector<2x128xf32>
    %501 = tpu.matmul %500, %315, %cst_76 {dimension_numbers = #tpu.dot_dimension_numbers<[1], [0], [0], [1], [0, 0, 1, 1], [], []>} : vector<2x64xbf16>, vector<64x128xbf16>, vector<2x128xf32> -> vector<2x128xf32>
    %502 = arith.addf %501, %318 : vector<2x128xf32>
    %503 = arith.mulf %502, %8 : vector<2x128xf32>
    %504 = math.tanh %503 : vector<2x128xf32>
    %505 = arith.mulf %504, %8 : vector<2x128xf32>
    %506 = arith.addf %505, %11 : vector<2x128xf32>
    %507 = vector.extract_strided_slice %506 {offsets = [0, 0], sizes = [2, 32], strides = [1, 1]} : vector<2x128xf32> to vector<2x32xf32>
    %508 = vector.extract_strided_slice %506 {offsets = [0, 32], sizes = [2, 32], strides = [1, 1]} : vector<2x128xf32> to vector<2x32xf32>
    %509 = vector.extract_strided_slice %506 {offsets = [0, 64], sizes = [2, 32], strides = [1, 1]} : vector<2x128xf32> to vector<2x32xf32>
    %510 = vector.extract_strided_slice %506 {offsets = [0, 96], sizes = [2, 32], strides = [1, 1]} : vector<2x128xf32> to vector<2x32xf32>
    %511 = arith.mulf %508, %478 : vector<2x32xf32>
    %512 = arith.mulf %507, %509 : vector<2x32xf32>
    %513 = arith.addf %511, %512 : vector<2x32xf32>
    %514 = math.tanh %513 : vector<2x32xf32>
    %515 = arith.mulf %510, %514 : vector<2x32xf32>
    %516 = tpu.concatenate %515, %497 in 1 : vector<2x32xf32>, vector<2x32xf32> -> vector<2x64xf32>
    %517 = arith.truncf %516 : vector<2x64xf32> to vector<2x64xbf16>
    %cst_77 = arith.constant dense<0.000000e+00> : vector<2x128xf32>
    %518 = tpu.matmul %517, %320, %cst_77 {dimension_numbers = #tpu.dot_dimension_numbers<[1], [0], [0], [1], [0, 0, 1, 1], [], []>} : vector<2x64xbf16>, vector<64x128xbf16>, vector<2x128xf32> -> vector<2x128xf32>
    %519 = arith.addf %518, %323 : vector<2x128xf32>
    %520 = arith.mulf %519, %8 : vector<2x128xf32>
    %521 = math.tanh %520 : vector<2x128xf32>
    %522 = arith.mulf %521, %8 : vector<2x128xf32>
    %523 = arith.addf %522, %11 : vector<2x128xf32>
    %524 = vector.extract_strided_slice %523 {offsets = [0, 0], sizes = [2, 32], strides = [1, 1]} : vector<2x128xf32> to vector<2x32xf32>
    %525 = vector.extract_strided_slice %523 {offsets = [0, 32], sizes = [2, 32], strides = [1, 1]} : vector<2x128xf32> to vector<2x32xf32>
    %526 = vector.extract_strided_slice %523 {offsets = [0, 64], sizes = [2, 32], strides = [1, 1]} : vector<2x128xf32> to vector<2x32xf32>
    %527 = vector.extract_strided_slice %523 {offsets = [0, 96], sizes = [2, 32], strides = [1, 1]} : vector<2x128xf32> to vector<2x32xf32>
    %528 = arith.mulf %525, %495 : vector<2x32xf32>
    %529 = arith.mulf %524, %526 : vector<2x32xf32>
    %530 = arith.addf %528, %529 : vector<2x32xf32>
    %531 = math.tanh %530 : vector<2x32xf32>
    %532 = arith.mulf %527, %531 : vector<2x32xf32>
    %c10_78 = arith.constant 10 : index
    %c0_79 = arith.constant 0 : index
    %533 = vector.load %arg17[%c10_78, %c0_79] : memref<16x32xf32, #tpu.memory_space<vmem>>, vector<2x32xf32>
    tpu.vector_store %arg17[%c10_78, %c0_79], %532 {strides = array<i32>} : memref<16x32xf32, #tpu.memory_space<vmem>>, vector<2x32xf32>,
    %534 = tpu.concatenate %532, %515 in 1 : vector<2x32xf32>, vector<2x32xf32> -> vector<2x64xf32>
    %535 = arith.truncf %534 : vector<2x64xf32> to vector<2x64xbf16>
    %cst_80 = arith.constant dense<0.000000e+00> : vector<2x128xf32>
    %536 = tpu.matmul %535, %315, %cst_80 {dimension_numbers = #tpu.dot_dimension_numbers<[1], [0], [0], [1], [0, 0, 1, 1], [], []>} : vector<2x64xbf16>, vector<64x128xbf16>, vector<2x128xf32> -> vector<2x128xf32>
    %537 = arith.addf %536, %318 : vector<2x128xf32>
    %538 = arith.mulf %537, %8 : vector<2x128xf32>
    %539 = math.tanh %538 : vector<2x128xf32>
    %540 = arith.mulf %539, %8 : vector<2x128xf32>
    %541 = arith.addf %540, %11 : vector<2x128xf32>
    %542 = vector.extract_strided_slice %541 {offsets = [0, 0], sizes = [2, 32], strides = [1, 1]} : vector<2x128xf32> to vector<2x32xf32>
    %543 = vector.extract_strided_slice %541 {offsets = [0, 32], sizes = [2, 32], strides = [1, 1]} : vector<2x128xf32> to vector<2x32xf32>
    %544 = vector.extract_strided_slice %541 {offsets = [0, 64], sizes = [2, 32], strides = [1, 1]} : vector<2x128xf32> to vector<2x32xf32>
    %545 = vector.extract_strided_slice %541 {offsets = [0, 96], sizes = [2, 32], strides = [1, 1]} : vector<2x128xf32> to vector<2x32xf32>
    %546 = arith.mulf %543, %513 : vector<2x32xf32>
    %547 = arith.mulf %542, %544 : vector<2x32xf32>
    %548 = arith.addf %546, %547 : vector<2x32xf32>
    %549 = math.tanh %548 : vector<2x32xf32>
    %550 = arith.mulf %545, %549 : vector<2x32xf32>
    %551 = tpu.concatenate %550, %532 in 1 : vector<2x32xf32>, vector<2x32xf32> -> vector<2x64xf32>
    %552 = arith.truncf %551 : vector<2x64xf32> to vector<2x64xbf16>
    %cst_81 = arith.constant dense<0.000000e+00> : vector<2x128xf32>
    %553 = tpu.matmul %552, %320, %cst_81 {dimension_numbers = #tpu.dot_dimension_numbers<[1], [0], [0], [1], [0, 0, 1, 1], [], []>} : vector<2x64xbf16>, vector<64x128xbf16>, vector<2x128xf32> -> vector<2x128xf32>
    %554 = arith.addf %553, %323 : vector<2x128xf32>
    %555 = arith.mulf %554, %8 : vector<2x128xf32>
    %556 = math.tanh %555 : vector<2x128xf32>
    %557 = arith.mulf %556, %8 : vector<2x128xf32>
    %558 = arith.addf %557, %11 : vector<2x128xf32>
    %559 = vector.extract_strided_slice %558 {offsets = [0, 0], sizes = [2, 32], strides = [1, 1]} : vector<2x128xf32> to vector<2x32xf32>
    %560 = vector.extract_strided_slice %558 {offsets = [0, 32], sizes = [2, 32], strides = [1, 1]} : vector<2x128xf32> to vector<2x32xf32>
    %561 = vector.extract_strided_slice %558 {offsets = [0, 64], sizes = [2, 32], strides = [1, 1]} : vector<2x128xf32> to vector<2x32xf32>
    %562 = vector.extract_strided_slice %558 {offsets = [0, 96], sizes = [2, 32], strides = [1, 1]} : vector<2x128xf32> to vector<2x32xf32>
    %563 = arith.mulf %560, %530 : vector<2x32xf32>
    %564 = arith.mulf %559, %561 : vector<2x32xf32>
    %565 = arith.addf %563, %564 : vector<2x32xf32>
    %566 = math.tanh %565 : vector<2x32xf32>
    %567 = arith.mulf %562, %566 : vector<2x32xf32>
    %c12_82 = arith.constant 12 : index
    %c0_83 = arith.constant 0 : index
    %568 = vector.load %arg17[%c12_82, %c0_83] : memref<16x32xf32, #tpu.memory_space<vmem>>, vector<2x32xf32>
    tpu.vector_store %arg17[%c12_82, %c0_83], %567 {strides = array<i32>} : memref<16x32xf32, #tpu.memory_space<vmem>>, vector<2x32xf32>,
    %569 = tpu.concatenate %567, %550 in 1 : vector<2x32xf32>, vector<2x32xf32> -> vector<2x64xf32>
    %570 = arith.truncf %569 : vector<2x64xf32> to vector<2x64xbf16>
    %cst_84 = arith.constant dense<0.000000e+00> : vector<2x128xf32>
    %571 = tpu.matmul %570, %315, %cst_84 {dimension_numbers = #tpu.dot_dimension_numbers<[1], [0], [0], [1], [0, 0, 1, 1], [], []>} : vector<2x64xbf16>, vector<64x128xbf16>, vector<2x128xf32> -> vector<2x128xf32>
    %572 = arith.addf %571, %318 : vector<2x128xf32>
    %573 = arith.mulf %572, %8 : vector<2x128xf32>
    %574 = math.tanh %573 : vector<2x128xf32>
    %575 = arith.mulf %574, %8 : vector<2x128xf32>
    %576 = arith.addf %575, %11 : vector<2x128xf32>
    %577 = vector.extract_strided_slice %576 {offsets = [0, 0], sizes = [2, 32], strides = [1, 1]} : vector<2x128xf32> to vector<2x32xf32>
    %578 = vector.extract_strided_slice %576 {offsets = [0, 32], sizes = [2, 32], strides = [1, 1]} : vector<2x128xf32> to vector<2x32xf32>
    %579 = vector.extract_strided_slice %576 {offsets = [0, 64], sizes = [2, 32], strides = [1, 1]} : vector<2x128xf32> to vector<2x32xf32>
    %580 = vector.extract_strided_slice %576 {offsets = [0, 96], sizes = [2, 32], strides = [1, 1]} : vector<2x128xf32> to vector<2x32xf32>
    %581 = arith.mulf %578, %548 : vector<2x32xf32>
    %582 = arith.mulf %577, %579 : vector<2x32xf32>
    %583 = arith.addf %581, %582 : vector<2x32xf32>
    %584 = math.tanh %583 : vector<2x32xf32>
    %585 = arith.mulf %580, %584 : vector<2x32xf32>
    %586 = tpu.concatenate %585, %567 in 1 : vector<2x32xf32>, vector<2x32xf32> -> vector<2x64xf32>
    %587 = arith.truncf %586 : vector<2x64xf32> to vector<2x64xbf16>
    %cst_85 = arith.constant dense<0.000000e+00> : vector<2x128xf32>
    %588 = tpu.matmul %587, %320, %cst_85 {dimension_numbers = #tpu.dot_dimension_numbers<[1], [0], [0], [1], [0, 0, 1, 1], [], []>} : vector<2x64xbf16>, vector<64x128xbf16>, vector<2x128xf32> -> vector<2x128xf32>
    %589 = arith.addf %588, %323 : vector<2x128xf32>
    %590 = arith.mulf %589, %8 : vector<2x128xf32>
    %591 = math.tanh %590 : vector<2x128xf32>
    %592 = arith.mulf %591, %8 : vector<2x128xf32>
    %593 = arith.addf %592, %11 : vector<2x128xf32>
    %594 = vector.extract_strided_slice %593 {offsets = [0, 0], sizes = [2, 32], strides = [1, 1]} : vector<2x128xf32> to vector<2x32xf32>
    %595 = vector.extract_strided_slice %593 {offsets = [0, 32], sizes = [2, 32], strides = [1, 1]} : vector<2x128xf32> to vector<2x32xf32>
    %596 = vector.extract_strided_slice %593 {offsets = [0, 64], sizes = [2, 32], strides = [1, 1]} : vector<2x128xf32> to vector<2x32xf32>
    %597 = vector.extract_strided_slice %593 {offsets = [0, 96], sizes = [2, 32], strides = [1, 1]} : vector<2x128xf32> to vector<2x32xf32>
    %598 = arith.mulf %595, %565 : vector<2x32xf32>
    %599 = arith.mulf %594, %596 : vector<2x32xf32>
    %600 = arith.addf %598, %599 : vector<2x32xf32>
    %601 = math.tanh %600 : vector<2x32xf32>
    %602 = arith.mulf %597, %601 : vector<2x32xf32>
    %c14_86 = arith.constant 14 : index
    %c0_87 = arith.constant 0 : index
    %603 = vector.load %arg17[%c14_86, %c0_87] : memref<16x32xf32, #tpu.memory_space<vmem>>, vector<2x32xf32>
    tpu.vector_store %arg17[%c14_86, %c0_87], %602 {strides = array<i32>} : memref<16x32xf32, #tpu.memory_space<vmem>>, vector<2x32xf32>,
    %c0_88 = arith.constant 0 : index
    %c0_89 = arith.constant 0 : index
    %604 = vector.load %arg17[%c0_88, %c0_89] : memref<16x32xf32, #tpu.memory_space<vmem>>, vector<16x32xf32>
    %c0_90 = arith.constant 0 : index
    %c0_91 = arith.constant 0 : index
    %605 = vector.load %arg11[%c0_90, %c0_91] : memref<32x16xf32, #tpu.memory_space<vmem>>, vector<32x16xf32>
    %606 = arith.truncf %605 : vector<32x16xf32> to vector<32x16xbf16>
    %c0_92 = arith.constant 0 : index
    %c0_93 = arith.constant 0 : index
    %607 = vector.load %arg12[%c0_92, %c0_93] : memref<1x16xf32, #tpu.memory_space<vmem>>, vector<1x16xf32>
    %608 = arith.truncf %604 : vector<16x32xf32> to vector<16x32xbf16>
    %cst_94 = arith.constant dense<0.000000e+00> : vector<16x16xf32>
    %609 = tpu.matmul %608, %606, %cst_94 {dimension_numbers = #tpu.dot_dimension_numbers<[1], [0], [0], [1], [0, 0, 1, 1], [], []>} : vector<16x32xbf16>, vector<32x16xbf16>, vector<16x16xf32> -> vector<16x16xf32>
    %610 = vector.broadcast %607 : vector<1x16xf32> to vector<16x16xf32>
    %611 = arith.addf %609, %610 : vector<16x16xf32>
    %612 = math.tanh %611 : vector<16x16xf32>
    %c0_95 = arith.constant 0 : index
    %c0_96 = arith.constant 0 : index
    %613 = vector.load %arg13[%c0_95, %c0_96] : memref<16x5xf32, #tpu.memory_space<vmem>>, vector<16x5xf32>
    %614 = arith.truncf %613 : vector<16x5xf32> to vector<16x5xbf16>
    %c0_97 = arith.constant 0 : index
    %c0_98 = arith.constant 0 : index
    %615 = vector.load %arg14[%c0_97, %c0_98] : memref<1x5xf32, #tpu.memory_space<vmem>>, vector<1x5xf32>
    %616 = arith.truncf %612 : vector<16x16xf32> to vector<16x16xbf16>
    %cst_99 = arith.constant dense<0.000000e+00> : vector<16x5xf32>
    %617 = tpu.matmul %616, %614, %cst_99 {dimension_numbers = #tpu.dot_dimension_numbers<[1], [0], [0], [1], [0, 0, 1, 1], [], []>} : vector<16x16xbf16>, vector<16x5xbf16>, vector<16x5xf32> -> vector<16x5xf32>
    %618 = vector.broadcast %615 : vector<1x5xf32> to vector<16x5xf32>
    %619 = arith.addf %617, %618 : vector<16x5xf32>
    %c0_100 = arith.constant 0 : index
    %c0_101 = arith.constant 0 : index
    %620 = vector.load %arg16[%c0_100, %c0_101] : memref<16x5xf32, #tpu.memory_space<vmem>>, vector<16x5xf32>
    tpu.vector_store %arg16[%c0_100, %c0_101], %619 {strides = array<i32>} : memref<16x5xf32, #tpu.memory_space<vmem>>, vector<16x5xf32>,
    return
  }
}

</mosaic_0001>

<llo_original>
// kernel: lstm_ae_forward.1
$region0: #{lstm_ae_forward.1}
  #allocation0 [shape = 'u32[]', space=smem, size = 0x4, offset = 0x4, fixed_abs, tag = 'smem constant byte address 0x4 - core index']
  #allocation1 [shape = 'u32[144,128]{1,0:T(1,128)}', space=vmem, size = 0x12000, scoped, tag = 'internal scratch']
  #allocation2 [shape = 'f32[16,32]{1,0:T(8,128)}', space=vmem, size = 0x2000, scoped, tag = 'scratch operand']
  %s0 = inlined_call_operand.vmem [shape: f32[16,4], index: 0, kind: input, shape index: {}]
  %s1 = inlined_call_operand.vmem [shape: f32[4,128], index: 1, kind: input, shape index: {}]
  %s2 = inlined_call_operand.vmem [shape: f32[32,128], index: 2, kind: input, shape index: {}]
  %s3 = inlined_call_operand.vmem [shape: f32[1,128], index: 3, kind: input, shape index: {}]
  %s4 = inlined_call_operand.vmem [shape: f32[32,128], index: 4, kind: input, shape index: {}]
  %s5 = inlined_call_operand.vmem [shape: f32[32,128], index: 5, kind: input, shape index: {}]
  %s6 = inlined_call_operand.vmem [shape: f32[1,128], index: 6, kind: input, shape index: {}]
  %s7 = inlined_call_operand.vmem [shape: f32[64,128], index: 7, kind: input, shape index: {}]
  %s8 = inlined_call_operand.vmem [shape: f32[1,128], index: 8, kind: input, shape index: {}]
  %s9 = inlined_call_operand.vmem [shape: f32[64,128], index: 9, kind: input, shape index: {}]
  %s10 = inlined_call_operand.vmem [shape: f32[1,128], index: 10, kind: input, shape index: {}]
  %s11 = inlined_call_operand.vmem [shape: f32[32,16], index: 11, kind: input, shape index: {}]
  %s12 = inlined_call_operand.vmem [shape: f32[1,16], index: 12, kind: input, shape index: {}]
  %s13 = inlined_call_operand.vmem [shape: f32[16,5], index: 13, kind: input, shape index: {}]
  %s14 = inlined_call_operand.vmem [shape: f32[1,5], index: 14, kind: input, shape index: {}]
  %s15 = inlined_call_operand.hbm [shape: f32[2,32], index: 15, kind: output, shape index: {0}]
  %s16 = inlined_call_operand.vmem [shape: f32[16,5], index: 16, kind: output, shape index: {1}]
  %17 = xla_tuple %s15, %s16
  %s18 = sld [smem:[#allocation0]]
  $region78: #{lstm_ae_forward.1} parent=0
    _
  %s20 = ssub.s32 1, %s18
  %s21 = scalar_select 0, %s20, %s18
  $region1: #{lstm_ae_forward.1} parent=0
    #allocation3 [shape = 'u8[1024]{0}', space=vmem, size = 0x400, scoped, tag = 'output window, operand 0, single buffered']
    #allocation4 [shape = 's32[1]{0}', space=sflag, size = 0x4, scoped, tag = 'scoped memory for lstm_ae_forward.1']
    %22 = vsyncpa [#allocation4], 0
    // Predicated region
    $region2: #{lstm_ae_forward.1} parent=1 // pred_check
      _
    $region3: #{lstm_ae_forward.1} parent=1 // pred_check_branch
      %24 = sbr.rel (0) target = $region5
    $region4: #{lstm_ae_forward.1} parent=1 // pred_region
      _
    $region5: #{lstm_ae_forward.1} parent=1 // pred_fallthru
      _
    // Predicated region
    $region6: #{lstm_ae_forward.1} parent=1 // pred_check
      _
    $region7: #{lstm_ae_forward.1} parent=1 // pred_check_branch
      %26 = sbr.rel (0) target = $region9
    $region8: #{lstm_ae_forward.1} parent=1 // pred_region
      _
    $region9: #{lstm_ae_forward.1} parent=1 // pred_fallthru
      _
    // Predicated region
    $region10: #{lstm_ae_forward.1} parent=1 // pred_check
      _
    $region11: #{lstm_ae_forward.1} parent=1 // pred_check_branch
      %28 = sbr.rel (0) target = $region13
    $region12: #{lstm_ae_forward.1} parent=1 // pred_region
      _
    $region13: #{lstm_ae_forward.1} parent=1 // pred_fallthru
      _
    // Predicated region
    $region14: #{lstm_ae_forward.1} parent=1 // pred_check
      _
    $region15: #{lstm_ae_forward.1} parent=1 // pred_check_branch
      %30 = sbr.rel (0) target = $region17
    $region16: #{lstm_ae_forward.1} parent=1 // pred_region
      _
    $region17: #{lstm_ae_forward.1} parent=1 // pred_fallthru
      _
    // Predicated region
    $region18: #{lstm_ae_forward.1} parent=1 // pred_check
      _
    $region19: #{lstm_ae_forward.1} parent=1 // pred_check_branch
      %32 = sbr.rel (0) target = $region21
    $region20: #{lstm_ae_forward.1} parent=1 // pred_region
      _
    $region21: #{lstm_ae_forward.1} parent=1 // pred_fallthru
      _
    // Predicated region
    $region22: #{lstm_ae_forward.1} parent=1 // pred_check
      _
    $region23: #{lstm_ae_forward.1} parent=1 // pred_check_branch
      %34 = sbr.rel (0) target = $region25
    $region24: #{lstm_ae_forward.1} parent=1 // pred_region
      _
    $region25: #{lstm_ae_forward.1} parent=1 // pred_fallthru
      _
    // Predicated region
    $region26: #{lstm_ae_forward.1} parent=1 // pred_check
      _
    $region27: #{lstm_ae_forward.1} parent=1 // pred_check_branch
      %36 = sbr.rel (0) target = $region29
    $region28: #{lstm_ae_forward.1} parent=1 // pred_region
      _
    $region29: #{lstm_ae_forward.1} parent=1 // pred_fallthru
      _
    // Predicated region
    $region30: #{lstm_ae_forward.1} parent=1 // pred_check
      _
    $region31: #{lstm_ae_forward.1} parent=1 // pred_check_branch
      %38 = sbr.rel (0) target = $region33
    $region32: #{lstm_ae_forward.1} parent=1 // pred_region
      _
    $region33: #{lstm_ae_forward.1} parent=1 // pred_fallthru
      _
    // Predicated region
    $region34: #{lstm_ae_forward.1} parent=1 // pred_check
      _
    $region35: #{lstm_ae_forward.1} parent=1 // pred_check_branch
      %40 = sbr.rel (0) target = $region37
    $region36: #{lstm_ae_forward.1} parent=1 // pred_region
      _
    $region37: #{lstm_ae_forward.1} parent=1 // pred_fallthru
      _
    // Predicated region
    $region38: #{lstm_ae_forward.1} parent=1 // pred_check
      _
    $region39: #{lstm_ae_forward.1} parent=1 // pred_check_branch
      %42 = sbr.rel (0) target = $region41
    $region40: #{lstm_ae_forward.1} parent=1 // pred_region
      _
    $region41: #{lstm_ae_forward.1} parent=1 // pred_fallthru
      _
    // Predicated region
    $region42: #{lstm_ae_forward.1} parent=1 // pred_check
      _
    $region43: #{lstm_ae_forward.1} parent=1 // pred_check_branch
      %44 = sbr.rel (0) target = $region45
    $region44: #{lstm_ae_forward.1} parent=1 // pred_region
      _
    $region45: #{lstm_ae_forward.1} parent=1 // pred_fallthru
      _
    // Predicated region
    $region46: #{lstm_ae_forward.1} parent=1 // pred_check
      _
    $region47: #{lstm_ae_forward.1} parent=1 // pred_check_branch
      %46 = sbr.rel (0) target = $region49
    $region48: #{lstm_ae_forward.1} parent=1 // pred_region
      _
    $region49: #{lstm_ae_forward.1} parent=1 // pred_fallthru
      _
    // Predicated region
    $region50: #{lstm_ae_forward.1} parent=1 // pred_check
      _
    $region51: #{lstm_ae_forward.1} parent=1 // pred_check_branch
      %48 = sbr.rel (0) target = $region53
    $region52: #{lstm_ae_forward.1} parent=1 // pred_region
      _
    $region53: #{lstm_ae_forward.1} parent=1 // pred_fallthru
      _
    // Predicated region
    $region54: #{lstm_ae_forward.1} parent=1 // pred_check
      _
    $region55: #{lstm_ae_forward.1} parent=1 // pred_check_branch
      %50 = sbr.rel (0) target = $region57
    $region56: #{lstm_ae_forward.1} parent=1 // pred_region
      _
    $region57: #{lstm_ae_forward.1} parent=1 // pred_fallthru
      _
    // Predicated region
    $region58: #{lstm_ae_forward.1} parent=1 // pred_check
      _
    $region59: #{lstm_ae_forward.1} parent=1 // pred_check_branch
      %52 = sbr.rel (0) target = $region61
    $region60: #{lstm_ae_forward.1} parent=1 // pred_region
      _
    $region61: #{lstm_ae_forward.1} parent=1 // pred_fallthru
      _
    %v54 = vlaneseq
    %v55 = vand.u32 %v54, 127
    %vm56 = vcmp.ge.s32.totalorder %v55, 64
    %vm57 = vcmp.lt.s32.totalorder %v55, 96
    %vm58 = vmand %vm56, %vm57
    %v59 = vsel %vm58, 1.0, 0.5
    %v60 = vsel %vm58, 0.0, 0.5
    %v61 = vld [vmem:[%s1] sm:$0xf]
    %v62 = vpack.c.bf16 %v61, %v61
    %v63 = vld [vmem:[%s2] sm:$0xff]
    %v64 = vld [vmem:[%s2 + $0x8] sm:$0xff]
    %v65 = vld [vmem:[%s2 + $0x10] sm:$0xff]
    %v66 = vld [vmem:[%s2 + $0x18] sm:$0xff]
    %v67 = vpack.c.bf16 %v64, %v63
    %v68 = vpack.c.bf16 %v66, %v65
    %v69 = vld [vmem:[%s3] sm:$0x1]
    %v70 = vld [vmem:[%s0] sm:$0xff]
    %v71 = vld [vmem:[%s0 + $0x8] sm:$0xff]
    %v72 = vpack.c.bf16 %v71, %v70
    %v74 = vlaneseq
    %v75 = vshrl.u32 %v74, 7
    %v76 = vsub.s32 0, %v75
    %v77 = vrot.slane %v69, %v76
    %vm79 = vcmask 31744
    %v81 = vsel %vm79, %v72, 0
    %vm83 = vcmask 1041408
    %v85 = vsel %vm83, %v62, 0
    %87 = vmatprep.subr.bf16.mxu0 0
    %88 = vmatpush1.bf16.msra.mxu0 %v85
    %89 = vmatprep.subr.bf16.mxu0 0
    %90 = vmatpush1.bf16.msra.mxu0 0
    %91 = vmatprep.subr.bf16.mxu0 0
    %92 = vmatpush1.bf16.msra.mxu0 0
    %93 = vmatprep.subr.bf16.mxu0 0
    %94 = vmatpush1.bf16.msra.mxu0 0
    %95 = vmatprep.subr.bf16.mxu0 0
    %96 = vmatpush1.bf16.msra.mxu0 0
    %97 = vmatprep.subr.bf16.mxu0 0
    %98 = vmatpush1.bf16.msra.mxu0 0
    %99 = vmatprep.subr.bf16.mxu0 0
    %100 = vmatpush1.bf16.msra.mxu0 0
    %101 = vmatprep.subr.bf16.mxu0 0
    %102 = vmatpush1.bf16.msra.mxu0 0
    %103 = vmatprep.subr.bf16.mxu0 0
    %104 = vmatpush1.bf16.msra.mxu0 0
    %105 = vmatprep.subr.bf16.mxu0 0
    %106 = vmatpush1.bf16.msra.mxu0 0
    %107 = vmatprep.subr.bf16.mxu0 0
    %108 = vmatpush1.bf16.msra.mxu0 0
    %109 = vmatprep.subr.bf16.mxu0 0
    %110 = vmatpush1.bf16.msra.mxu0 0
    %111 = vmatprep.subr.bf16.mxu0 0
    %112 = vmatpush1.bf16.msra.mxu0 0
    %113 = vmatprep.subr.bf16.mxu0 0
    %114 = vmatpush1.bf16.msra.mxu0 0
    %115 = vmatprep.subr.bf16.mxu0 0
    %116 = vmatpush1.bf16.msra.mxu0 0
    %117 = vmatprep.subr.bf16.mxu0 0
    %118 = vmatpush1.bf16.msra.mxu0 0
    %119 = vmatprep.mubr.bf16.mxu0 0
    %120 = vmatmul.mubr.bf16.gmra.mrb[0].mxu0 %v81
    %v121 = vpop.f32.mrb[0].mxu0
    %v122 = vadd.f32 %v77, %v121
    %v123 = vpop.f32.mrb[0].mxu0
    %v124 = vpop.f32.mrb[0].mxu0
    %v125 = vadd.f32 %v77, %v124
    %v126 = vpop.f32.mrb[0].mxu0
    %127 = vdwg.mxu0
    %vm128 = vcmask 261120
    %v130 = vsel %vm128, 0, 0
    %132 = vmatprep.subr.bf16.mxu0 0
    %133 = vmatpush1.bf16.msra.mxu0 %v67
    %134 = vmatprep.subr.bf16.mxu0 0
    %135 = vmatpush1.bf16.msra.mxu0 %v68
    %136 = vmatprep.subr.bf16.mxu0 0
    %137 = vmatpush1.bf16.msra.mxu0 0
    %138 = vmatprep.subr.bf16.mxu0 0
    %139 = vmatpush1.bf16.msra.mxu0 0
    %140 = vmatprep.subr.bf16.mxu0 0
    %141 = vmatpush1.bf16.msra.mxu0 0
    %142 = vmatprep.subr.bf16.mxu0 0
    %143 = vmatpush1.bf16.msra.mxu0 0
    %144 = vmatprep.subr.bf16.mxu0 0
    %145 = vmatpush1.bf16.msra.mxu0 0
    %146 = vmatprep.subr.bf16.mxu0 0
    %147 = vmatpush1.bf16.msra.mxu0 0
    %148 = vmatprep.subr.bf16.mxu0 0
    %149 = vmatpush1.bf16.msra.mxu0 0
    %150 = vmatprep.subr.bf16.mxu0 0
    %151 = vmatpush1.bf16.msra.mxu0 0
    %152 = vmatprep.subr.bf16.mxu0 0
    %153 = vmatpush1.bf16.msra.mxu0 0
    %154 = vmatprep.subr.bf16.mxu0 0
    %155 = vmatpush1.bf16.msra.mxu0 0
    %156 = vmatprep.subr.bf16.mxu0 0
    %157 = vmatpush1.bf16.msra.mxu0 0
    %158 = vmatprep.subr.bf16.mxu0 0
    %159 = vmatpush1.bf16.msra.mxu0 0
    %160 = vmatprep.subr.bf16.mxu0 0
    %161 = vmatpush1.bf16.msra.mxu0 0
    %162 = vmatprep.subr.bf16.mxu0 0
    %163 = vmatpush1.bf16.msra.mxu0 0
    %164 = vmatprep.mubr.bf16.mxu0 0
    %165 = vmatmul.mubr.bf16.gmra.mrb[0].mxu0 %v130
    %v166 = vpop.f32.mrb[0].mxu0
    %v167 = vadd.f32 0.0, %v166
    %v168 = vpop.f32.mrb[0].mxu0
    %v169 = vpop.f32.mrb[0].mxu0
    %v170 = vpop.f32.mrb[0].mxu0
    %171 = vdwg.mxu0
    %v172 = vadd.f32 %v122, %v167
    %v173 = vmul.f32 %v172, %v59
    %v174 = vtanh.pop %v173
    %v175 = vmul.f32 %v174, %v59
    %v176 = vadd.f32 %v175, %v60
    %v177 = vmul.f32 %v176, 0.0
    %179 = vrot.lane.b32.xlu0 %v176, 64
    %v180 = vpop.permute.xlu0 %179
    %v182 = vmul.f32 %v176, %v180
    %184 = vrot.lane.b32.xlu0 %v182, 32
    %v185 = vpop.permute.xlu0 %184
    %v187 = vadd.f32 %v177, %v185
    %v188 = vtanh.pop %v187
    %190 = vrot.lane.b32.xlu0 %v188, 64
    %v191 = vpop.permute.xlu0 %190
    %v193 = vmul.f32 %v176, %v191
    %195 = vrot.lane.b32.xlu0 %v193, 32
    %v196 = vpop.permute.xlu0 %195
    %vm198 = vcmask 254976
    %199 = vst.msk [vmem:[#allocation2] sm:$0x3] %vm198, %v196
    %v200 = vpack.c.bf16 %v193, %v193
    %202 = vrot.lane.b32.xlu0 %v200, 32
    %v203 = vpop.permute.xlu0 %202
    %v205 = vsel %vm128, %v203, 0
    %207 = vmatprep.subr.bf16.mxu0 0
    %208 = vmatpush1.bf16.msra.mxu0 %v67
    %209 = vmatprep.subr.bf16.mxu0 0
    %210 = vmatpush1.bf16.msra.mxu0 %v68
    %211 = vmatprep.subr.bf16.mxu0 0
    %212 = vmatpush1.bf16.msra.mxu0 0
    %213 = vmatprep.subr.bf16.mxu0 0
    %214 = vmatpush1.bf16.msra.mxu0 0
    %215 = vmatprep.subr.bf16.mxu0 0
    %216 = vmatpush1.bf16.msra.mxu0 0
    %217 = vmatprep.subr.bf16.mxu0 0
    %218 = vmatpush1.bf16.msra.mxu0 0
    %219 = vmatprep.subr.bf16.mxu0 0
    %220 = vmatpush1.bf16.msra.mxu0 0
    %221 = vmatprep.subr.bf16.mxu0 0
    %222 = vmatpush1.bf16.msra.mxu0 0
    %223 = vmatprep.subr.bf16.mxu0 0
    %224 = vmatpush1.bf16.msra.mxu0 0
    %225 = vmatprep.subr.bf16.mxu0 0
    %226 = vmatpush1.bf16.msra.mxu0 0
    %227 = vmatprep.subr.bf16.mxu0 0
    %228 = vmatpush1.bf16.msra.mxu0 0
    %229 = vmatprep.subr.bf16.mxu0 0
    %230 = vmatpush1.bf16.msra.mxu0 0
    %231 = vmatprep.subr.bf16.mxu0 0
    %232 = vmatpush1.bf16.msra.mxu0 0
    %233 = vmatprep.subr.bf16.mxu0 0
    %234 = vmatpush1.bf16.msra.mxu0 0
    %235 = vmatprep.subr.bf16.mxu0 0
    %236 = vmatpush1.bf16.msra.mxu0 0
    %237 = vmatprep.subr.bf16.mxu0 0
    %238 = vmatpush1.bf16.msra.mxu0 0
    %239 = vmatprep.mubr.bf16.mxu0 0
    %240 = vmatmul.mubr.bf16.gmra.mrb[0].mxu0 %v205
    %v241 = vpop.f32.mrb[0].mxu0
    %v242 = vadd.f32 0.0, %v241
    %v243 = vpop.f32.mrb[0].mxu0
    %v244 = vpop.f32.mrb[0].mxu0
    %v245 = vpop.f32.mrb[0].mxu0
    %246 = vdwg.mxu0
    %v248 = vrot.slane %v242, 6
    %v250 = vadd.f32 %v122, %v248
    %v251 = vmul.f32 %v250, %v59
    %v252 = vtanh.pop %v251
    %v253 = vmul.f32 %v252, %v59
    %v254 = vadd.f32 %v253, %v60
    %v256 = vrot.slane %v187, 6
    %v258 = vmul.f32 %v254, %v256
    %260 = vrot.lane.b32.xlu0 %v254, 64
    %v261 = vpop.permute.xlu0 %260
    %v263 = vmul.f32 %v254, %v261
    %265 = vrot.lane.b32.xlu0 %v263, 32
    %v266 = vpop.permute.xlu0 %265
    %v268 = vadd.f32 %v258, %v266
    %v269 = vtanh.pop %v268
    %271 = vrot.lane.b32.xlu0 %v269, 64
    %v272 = vpop.permute.xlu0 %271
    %v274 = vmul.f32 %v254, %v272
    %276 = vrot.lane.b32.xlu0 %v274, 32
    %v277 = vpop.permute.xlu0 %276
    %vm279 = vcmask 257026
    %280 = vst.msk [vmem:[#allocation2] sm:$0xc] %vm279, %v277
    %v281 = vpack.c.bf16 %v274, %v274
    %v283 = vrot.slane %v281, 1
    %284 = vrot.lane.b32.xlu0 %v283, 32
    %v285 = vpop.permute.xlu0 %284
    %v287 = vsel %vm128, %v285, 0
    %289 = vmatprep.subr.bf16.mxu0 0
    %290 = vmatpush1.bf16.msra.mxu0 %v67
    %291 = vmatprep.subr.bf16.mxu0 0
    %292 = vmatpush1.bf16.msra.mxu0 %v68
    %293 = vmatprep.subr.bf16.mxu0 0
    %294 = vmatpush1.bf16.msra.mxu0 0
    %295 = vmatprep.subr.bf16.mxu0 0
    %296 = vmatpush1.bf16.msra.mxu0 0
    %297 = vmatprep.subr.bf16.mxu0 0
    %298 = vmatpush1.bf16.msra.mxu0 0
    %299 = vmatprep.subr.bf16.mxu0 0
    %300 = vmatpush1.bf16.msra.mxu0 0
    %301 = vmatprep.subr.bf16.mxu0 0
    %302 = vmatpush1.bf16.msra.mxu0 0
    %303 = vmatprep.subr.bf16.mxu0 0
    %304 = vmatpush1.bf16.msra.mxu0 0
    %305 = vmatprep.subr.bf16.mxu0 0
    %306 = vmatpush1.bf16.msra.mxu0 0
    %307 = vmatprep.subr.bf16.mxu0 0
    %308 = vmatpush1.bf16.msra.mxu0 0
    %309 = vmatprep.subr.bf16.mxu0 0
    %310 = vmatpush1.bf16.msra.mxu0 0
    %311 = vmatprep.subr.bf16.mxu0 0
    %312 = vmatpush1.bf16.msra.mxu0 0
    %313 = vmatprep.subr.bf16.mxu0 0
    %314 = vmatpush1.bf16.msra.mxu0 0
    %315 = vmatprep.subr.bf16.mxu0 0
    %316 = vmatpush1.bf16.msra.mxu0 0
    %317 = vmatprep.subr.bf16.mxu0 0
    %318 = vmatpush1.bf16.msra.mxu0 0
    %319 = vmatprep.subr.bf16.mxu0 0
    %320 = vmatpush1.bf16.msra.mxu0 0
    %321 = vmatprep.mubr.bf16.mxu0 0
    %322 = vmatmul.mubr.bf16.gmra.mrb[0].mxu0 %v287
    %v323 = vpop.f32.mrb[0].mxu0
    %v324 = vadd.f32 0.0, %v323
    %v325 = vpop.f32.mrb[0].mxu0
    %v326 = vpop.f32.mrb[0].mxu0
    %v327 = vpop.f32.mrb[0].mxu0
    %328 = vdwg.mxu0
    %v330 = vrot.slane %v324, 4
    %v332 = vadd.f32 %v122, %v330
    %v333 = vmul.f32 %v332, %v59
    %v334 = vtanh.pop %v333
    %v335 = vmul.f32 %v334, %v59
    %v336 = vadd.f32 %v335, %v60
    %v338 = vrot.slane %v268, 6
    %v340 = vmul.f32 %v336, %v338
    %342 = vrot.lane.b32.xlu0 %v336, 64
    %v343 = vpop.permute.xlu0 %342
    %v345 = vmul.f32 %v336, %v343
    %347 = vrot.lane.b32.xlu0 %v345, 32
    %v348 = vpop.permute.xlu0 %347
    %v350 = vadd.f32 %v340, %v348
    %v351 = vtanh.pop %v350
    %353 = vrot.lane.b32.xlu0 %v351, 64
    %v354 = vpop.permute.xlu0 %353
    %v356 = vmul.f32 %v336, %v354
    %358 = vrot.lane.b32.xlu0 %v356, 32
    %v359 = vpop.permute.xlu0 %358
    %vm361 = vcmask 259076
    %362 = vst.msk [vmem:[#allocation2] sm:$0x30] %vm361, %v359
    %v363 = vpack.c.bf16 %v356, %v356
    %v365 = vrot.slane %v363, 2
    %366 = vrot.lane.b32.xlu0 %v365, 32
    %v367 = vpop.permute.xlu0 %366
    %v369 = vsel %vm128, %v367, 0
    %371 = vmatprep.subr.bf16.mxu0 0
    %372 = vmatpush1.bf16.msra.mxu0 %v67
    %373 = vmatprep.subr.bf16.mxu0 0
    %374 = vmatpush1.bf16.msra.mxu0 %v68
    %375 = vmatprep.subr.bf16.mxu0 0
    %376 = vmatpush1.bf16.msra.mxu0 0
    %377 = vmatprep.subr.bf16.mxu0 0
    %378 = vmatpush1.bf16.msra.mxu0 0
    %379 = vmatprep.subr.bf16.mxu0 0
    %380 = vmatpush1.bf16.msra.mxu0 0
    %381 = vmatprep.subr.bf16.mxu0 0
    %382 = vmatpush1.bf16.msra.mxu0 0
    %383 = vmatprep.subr.bf16.mxu0 0
    %384 = vmatpush1.bf16.msra.mxu0 0
    %385 = vmatprep.subr.bf16.mxu0 0
    %386 = vmatpush1.bf16.msra.mxu0 0
    %387 = vmatprep.subr.bf16.mxu0 0
    %388 = vmatpush1.bf16.msra.mxu0 0
    %389 = vmatprep.subr.bf16.mxu0 0
    %390 = vmatpush1.bf16.msra.mxu0 0
    %391 = vmatprep.subr.bf16.mxu0 0
    %392 = vmatpush1.bf16.msra.mxu0 0
    %393 = vmatprep.subr.bf16.mxu0 0
    %394 = vmatpush1.bf16.msra.mxu0 0
    %395 = vmatprep.subr.bf16.mxu0 0
    %396 = vmatpush1.bf16.msra.mxu0 0
    %397 = vmatprep.subr.bf16.mxu0 0
    %398 = vmatpush1.bf16.msra.mxu0 0
    %399 = vmatprep.subr.bf16.mxu0 0
    %400 = vmatpush1.bf16.msra.mxu0 0
    %401 = vmatprep.subr.bf16.mxu0 0
    %402 = vmatpush1.bf16.msra.mxu0 0
    %403 = vmatprep.mubr.bf16.mxu0 0
    %404 = vmatmul.mubr.bf16.gmra.mrb[0].mxu0 %v369
    %v405 = vpop.f32.mrb[0].mxu0
    %v406 = vadd.f32 0.0, %v405
    %v407 = vpop.f32.mrb[0].mxu0
    %v408 = vpop.f32.mrb[0].mxu0
    %v409 = vpop.f32.mrb[0].mxu0
    %410 = vdwg.mxu0
    %v412 = vrot.slane %v406, 2
    %v414 = vadd.f32 %v122, %v412
    %v415 = vmul.f32 %v414, %v59
    %v416 = vtanh.pop %v415
    %v417 = vmul.f32 %v416, %v59
    %v418 = vadd.f32 %v417, %v60
    %v420 = vrot.slane %v350, 6
    %v422 = vmul.f32 %v418, %v420
    %424 = vrot.lane.b32.xlu0 %v418, 64
    %v425 = vpop.permute.xlu0 %424
    %v427 = vmul.f32 %v418, %v425
    %429 = vrot.lane.b32.xlu0 %v427, 32
    %v430 = vpop.permute.xlu0 %429
    %v432 = vadd.f32 %v422, %v430
    %v433 = vtanh.pop %v432
    %435 = vrot.lane.b32.xlu0 %v433, 64
    %v436 = vpop.permute.xlu0 %435
    %v438 = vmul.f32 %v418, %v436
    %440 = vrot.lane.b32.xlu0 %v438, 32
    %v441 = vpop.permute.xlu0 %440
    %vm443 = vcmask 261126
    %444 = vst.msk [vmem:[#allocation2] sm:$0xc0] %vm443, %v441
    %v445 = vpack.c.bf16 %v438, %v438
    %v447 = vrot.slane %v445, 3
    %448 = vrot.lane.b32.xlu0 %v447, 32
    %v449 = vpop.permute.xlu0 %448
    %v451 = vsel %vm128, %v449, 0
    %453 = vmatprep.subr.bf16.mxu0 0
    %454 = vmatpush1.bf16.msra.mxu0 %v67
    %455 = vmatprep.subr.bf16.mxu0 0
    %456 = vmatpush1.bf16.msra.mxu0 %v68
    %457 = vmatprep.subr.bf16.mxu0 0
    %458 = vmatpush1.bf16.msra.mxu0 0
    %459 = vmatprep.subr.bf16.mxu0 0
    %460 = vmatpush1.bf16.msra.mxu0 0
    %461 = vmatprep.subr.bf16.mxu0 0
    %462 = vmatpush1.bf16.msra.mxu0 0
    %463 = vmatprep.subr.bf16.mxu0 0
    %464 = vmatpush1.bf16.msra.mxu0 0
    %465 = vmatprep.subr.bf16.mxu0 0
    %466 = vmatpush1.bf16.msra.mxu0 0
    %467 = vmatprep.subr.bf16.mxu0 0
    %468 = vmatpush1.bf16.msra.mxu0 0
    %469 = vmatprep.subr.bf16.mxu0 0
    %470 = vmatpush1.bf16.msra.mxu0 0
    %471 = vmatprep.subr.bf16.mxu0 0
    %472 = vmatpush1.bf16.msra.mxu0 0
    %473 = vmatprep.subr.bf16.mxu0 0
    %474 = vmatpush1.bf16.msra.mxu0 0
    %475 = vmatprep.subr.bf16.mxu0 0
    %476 = vmatpush1.bf16.msra.mxu0 0
    %477 = vmatprep.subr.bf16.mxu0 0
    %478 = vmatpush1.bf16.msra.mxu0 0
    %479 = vmatprep.subr.bf16.mxu0 0
    %480 = vmatpush1.bf16.msra.mxu0 0
    %481 = vmatprep.subr.bf16.mxu0 0
    %482 = vmatpush1.bf16.msra.mxu0 0
    %483 = vmatprep.subr.bf16.mxu0 0
    %484 = vmatpush1.bf16.msra.mxu0 0
    %485 = vmatprep.mubr.bf16.mxu0 0
    %486 = vmatmul.mubr.bf16.gmra.mrb[0].mxu0 %v451
    %v487 = vpop.f32.mrb[0].mxu0
    %v488 = vadd.f32 0.0, %v487
    %v489 = vpop.f32.mrb[0].mxu0
    %v490 = vpop.f32.mrb[0].mxu0
    %v491 = vpop.f32.mrb[0].mxu0
    %492 = vdwg.mxu0
    %v493 = vadd.f32 %v125, %v488
    %v494 = vmul.f32 %v493, %v59
    %v495 = vtanh.pop %v494
    %v496 = vmul.f32 %v495, %v59
    %v497 = vadd.f32 %v496, %v60
    %v499 = vrot.slane %v432, 6
    %v501 = vmul.f32 %v497, %v499
    %503 = vrot.lane.b32.xlu0 %v497, 64
    %v504 = vpop.permute.xlu0 %503
    %v506 = vmul.f32 %v497, %v504
    %508 = vrot.lane.b32.xlu0 %v506, 32
    %v509 = vpop.permute.xlu0 %508
    %v511 = vadd.f32 %v501, %v509
    %v512 = vtanh.pop %v511
    %514 = vrot.lane.b32.xlu0 %v512, 64
    %v515 = vpop.permute.xlu0 %514
    %v517 = vmul.f32 %v497, %v515
    %519 = vrot.lane.b32.xlu0 %v517, 32
    %v520 = vpop.permute.xlu0 %519
    %522 = vst.msk [vmem:[#allocation2 + $0x8] sm:$0x3] %vm198, %v520
    %v523 = vpack.c.bf16 %v517, %v517
    %525 = vrot.lane.b32.xlu0 %v523, 32
    %v526 = vpop.permute.xlu0 %525
    %v528 = vsel %vm128, %v526, 0
    %530 = vmatprep.subr.bf16.mxu0 0
    %531 = vmatpush1.bf16.msra.mxu0 %v67
    %532 = vmatprep.subr.bf16.mxu0 0
    %533 = vmatpush1.bf16.msra.mxu0 %v68
    %534 = vmatprep.subr.bf16.mxu0 0
    %535 = vmatpush1.bf16.msra.mxu0 0
    %536 = vmatprep.subr.bf16.mxu0 0
    %537 = vmatpush1.bf16.msra.mxu0 0
    %538 = vmatprep.subr.bf16.mxu0 0
    %539 = vmatpush1.bf16.msra.mxu0 0
    %540 = vmatprep.subr.bf16.mxu0 0
    %541 = vmatpush1.bf16.msra.mxu0 0
    %542 = vmatprep.subr.bf16.mxu0 0
    %543 = vmatpush1.bf16.msra.mxu0 0
    %544 = vmatprep.subr.bf16.mxu0 0
    %545 = vmatpush1.bf16.msra.mxu0 0
    %546 = vmatprep.subr.bf16.mxu0 0
    %547 = vmatpush1.bf16.msra.mxu0 0
    %548 = vmatprep.subr.bf16.mxu0 0
    %549 = vmatpush1.bf16.msra.mxu0 0
    %550 = vmatprep.subr.bf16.mxu0 0
    %551 = vmatpush1.bf16.msra.mxu0 0
    %552 = vmatprep.subr.bf16.mxu0 0
    %553 = vmatpush1.bf16.msra.mxu0 0
    %554 = vmatprep.subr.bf16.mxu0 0
    %555 = vmatpush1.bf16.msra.mxu0 0
    %556 = vmatprep.subr.bf16.mxu0 0
    %557 = vmatpush1.bf16.msra.mxu0 0
    %558 = vmatprep.subr.bf16.mxu0 0
    %559 = vmatpush1.bf16.msra.mxu0 0
    %560 = vmatprep.subr.bf16.mxu0 0
    %561 = vmatpush1.bf16.msra.mxu0 0
    %562 = vmatprep.mubr.bf16.mxu0 0
    %563 = vmatmul.mubr.bf16.gmra.mrb[0].mxu0 %v528
    %v564 = vpop.f32.mrb[0].mxu0
    %v565 = vadd.f32 0.0, %v564
    %v566 = vpop.f32.mrb[0].mxu0
    %v567 = vpop.f32.mrb[0].mxu0
    %v568 = vpop.f32.mrb[0].mxu0
    %569 = vdwg.mxu0
    %v571 = vrot.slane %v565, 6
    %v573 = vadd.f32 %v125, %v571
    %v574 = vmul.f32 %v573, %v59
    %v575 = vtanh.pop %v574
    %v576 = vmul.f32 %v575, %v59
    %v577 = vadd.f32 %v576, %v60
    %v579 = vrot.slane %v511, 6
    %v581 = vmul.f32 %v577, %v579
    %583 = vrot.lane.b32.xlu0 %v577, 64
    %v584 = vpop.permute.xlu0 %583
    %v586 = vmul.f32 %v577, %v584
    %588 = vrot.lane.b32.xlu0 %v586, 32
    %v589 = vpop.permute.xlu0 %588
    %v591 = vadd.f32 %v581, %v589
    %v592 = vtanh.pop %v591
    %594 = vrot.lane.b32.xlu0 %v592, 64
    %v595 = vpop.permute.xlu0 %594
    %v597 = vmul.f32 %v577, %v595
    %599 = vrot.lane.b32.xlu0 %v597, 32
    %v600 = vpop.permute.xlu0 %599
    %602 = vst.msk [vmem:[#allocation2 + $0x8] sm:$0xc] %vm279, %v600
    %v603 = vpack.c.bf16 %v597, %v597
    %v605 = vrot.slane %v603, 1
    %606 = vrot.lane.b32.xlu0 %v605, 32
    %v607 = vpop.permute.xlu0 %606
    %v609 = vsel %vm128, %v607, 0
    %611 = vmatprep.subr.bf16.mxu0 0
    %612 = vmatpush1.bf16.msra.mxu0 %v67
    %613 = vmatprep.subr.bf16.mxu0 0
    %614 = vmatpush1.bf16.msra.mxu0 %v68
    %615 = vmatprep.subr.bf16.mxu0 0
    %616 = vmatpush1.bf16.msra.mxu0 0
    %617 = vmatprep.subr.bf16.mxu0 0
    %618 = vmatpush1.bf16.msra.mxu0 0
    %619 = vmatprep.subr.bf16.mxu0 0
    %620 = vmatpush1.bf16.msra.mxu0 0
    %621 = vmatprep.subr.bf16.mxu0 0
    %622 = vmatpush1.bf16.msra.mxu0 0
    %623 = vmatprep.subr.bf16.mxu0 0
    %624 = vmatpush1.bf16.msra.mxu0 0
    %625 = vmatprep.subr.bf16.mxu0 0
    %626 = vmatpush1.bf16.msra.mxu0 0
    %627 = vmatprep.subr.bf16.mxu0 0
    %628 = vmatpush1.bf16.msra.mxu0 0
    %629 = vmatprep.subr.bf16.mxu0 0
    %630 = vmatpush1.bf16.msra.mxu0 0
    %631 = vmatprep.subr.bf16.mxu0 0
    %632 = vmatpush1.bf16.msra.mxu0 0
    %633 = vmatprep.subr.bf16.mxu0 0
    %634 = vmatpush1.bf16.msra.mxu0 0
    %635 = vmatprep.subr.bf16.mxu0 0
    %636 = vmatpush1.bf16.msra.mxu0 0
    %637 = vmatprep.subr.bf16.mxu0 0
    %638 = vmatpush1.bf16.msra.mxu0 0
    %639 = vmatprep.subr.bf16.mxu0 0
    %640 = vmatpush1.bf16.msra.mxu0 0
    %641 = vmatprep.subr.bf16.mxu0 0
    %642 = vmatpush1.bf16.msra.mxu0 0
    %643 = vmatprep.mubr.bf16.mxu0 0
    %644 = vmatmul.mubr.bf16.gmra.mrb[0].mxu0 %v609
    %v645 = vpop.f32.mrb[0].mxu0
    %v646 = vadd.f32 0.0, %v645
    %v647 = vpop.f32.mrb[0].mxu0
    %v648 = vpop.f32.mrb[0].mxu0
    %v649 = vpop.f32.mrb[0].mxu0
    %650 = vdwg.mxu0
    %v652 = vrot.slane %v646, 4
    %v654 = vadd.f32 %v125, %v652
    %v655 = vmul.f32 %v654, %v59
    %v656 = vtanh.pop %v655
    %v657 = vmul.f32 %v656, %v59
    %v658 = vadd.f32 %v657, %v60
    %v660 = vrot.slane %v591, 6
    %v662 = vmul.f32 %v658, %v660
    %664 = vrot.lane.b32.xlu0 %v658, 64
    %v665 = vpop.permute.xlu0 %664
    %v667 = vmul.f32 %v658, %v665
    %669 = vrot.lane.b32.xlu0 %v667, 32
    %v670 = vpop.permute.xlu0 %669
    %v672 = vadd.f32 %v662, %v670
    %v673 = vtanh.pop %v672
    %675 = vrot.lane.b32.xlu0 %v673, 64
    %v676 = vpop.permute.xlu0 %675
    %v678 = vmul.f32 %v658, %v676
    %680 = vrot.lane.b32.xlu0 %v678, 32
    %v681 = vpop.permute.xlu0 %680
    %683 = vst.msk [vmem:[#allocation2 + $0x8] sm:$0x30] %vm361, %v681
    %v684 = vpack.c.bf16 %v678, %v678
    %v686 = vrot.slane %v684, 2
    %687 = vrot.lane.b32.xlu0 %v686, 32
    %v688 = vpop.permute.xlu0 %687
    %v690 = vsel %vm128, %v688, 0
    %692 = vmatprep.subr.bf16.mxu0 0
    %693 = vmatpush1.bf16.msra.mxu0 %v67
    %694 = vmatprep.subr.bf16.mxu0 0
    %695 = vmatpush1.bf16.msra.mxu0 %v68
    %696 = vmatprep.subr.bf16.mxu0 0
    %697 = vmatpush1.bf16.msra.mxu0 0
    %698 = vmatprep.subr.bf16.mxu0 0
    %699 = vmatpush1.bf16.msra.mxu0 0
    %700 = vmatprep.subr.bf16.mxu0 0
    %701 = vmatpush1.bf16.msra.mxu0 0
    %702 = vmatprep.subr.bf16.mxu0 0
    %703 = vmatpush1.bf16.msra.mxu0 0
    %704 = vmatprep.subr.bf16.mxu0 0
    %705 = vmatpush1.bf16.msra.mxu0 0
    %706 = vmatprep.subr.bf16.mxu0 0
    %707 = vmatpush1.bf16.msra.mxu0 0
    %708 = vmatprep.subr.bf16.mxu0 0
    %709 = vmatpush1.bf16.msra.mxu0 0
    %710 = vmatprep.subr.bf16.mxu0 0
    %711 = vmatpush1.bf16.msra.mxu0 0
    %712 = vmatprep.subr.bf16.mxu0 0
    %713 = vmatpush1.bf16.msra.mxu0 0
    %714 = vmatprep.subr.bf16.mxu0 0
    %715 = vmatpush1.bf16.msra.mxu0 0
    %716 = vmatprep.subr.bf16.mxu0 0
    %717 = vmatpush1.bf16.msra.mxu0 0
    %718 = vmatprep.subr.bf16.mxu0 0
    %719 = vmatpush1.bf16.msra.mxu0 0
    %720 = vmatprep.subr.bf16.mxu0 0
    %721 = vmatpush1.bf16.msra.mxu0 0
    %722 = vmatprep.subr.bf16.mxu0 0
    %723 = vmatpush1.bf16.msra.mxu0 0
    %724 = vmatprep.mubr.bf16.mxu0 0
    %725 = vmatmul.mubr.bf16.gmra.mrb[0].mxu0 %v690
    %v726 = vpop.f32.mrb[0].mxu0
    %v727 = vadd.f32 0.0, %v726
    %v728 = vpop.f32.mrb[0].mxu0
    %v729 = vpop.f32.mrb[0].mxu0
    %v730 = vpop.f32.mrb[0].mxu0
    %731 = vdwg.mxu0
    %v733 = vrot.slane %v727, 2
    %v735 = vadd.f32 %v125, %v733
    %v736 = vmul.f32 %v735, %v59
    %v737 = vtanh.pop %v736
    %v738 = vmul.f32 %v737, %v59
    %v739 = vadd.f32 %v738, %v60
    %v741 = vrot.slane %v672, 6
    %v743 = vmul.f32 %v739, %v741
    %745 = vrot.lane.b32.xlu0 %v739, 64
    %v746 = vpop.permute.xlu0 %745
    %v748 = vmul.f32 %v739, %v746
    %750 = vrot.lane.b32.xlu0 %v748, 32
    %v751 = vpop.permute.xlu0 %750
    %v753 = vadd.f32 %v743, %v751
    %v754 = vtanh.pop %v753
    %756 = vrot.lane.b32.xlu0 %v754, 64
    %v757 = vpop.permute.xlu0 %756
    %v759 = vmul.f32 %v739, %v757
    %761 = vrot.lane.b32.xlu0 %v759, 32
    %v762 = vpop.permute.xlu0 %761
    %764 = vst.msk [vmem:[#allocation2 + $0x8] sm:$0xc0] %vm443, %v762
    %v765 = vld [vmem:[%s4] sm:$0xff]
    %v766 = vld [vmem:[%s4 + $0x8] sm:$0xff]
    %v767 = vld [vmem:[%s4 + $0x10] sm:$0xff]
    %v768 = vld [vmem:[%s4 + $0x18] sm:$0xff]
    %v769 = vpack.c.bf16 %v766, %v765
    %v770 = vpack.c.bf16 %v768, %v767
    %v771 = vld [vmem:[%s5] sm:$0xff]
    %v772 = vld [vmem:[%s5 + $0x8] sm:$0xff]
    %v773 = vld [vmem:[%s5 + $0x10] sm:$0xff]
    %v774 = vld [vmem:[%s5 + $0x18] sm:$0xff]
    %v775 = vpack.c.bf16 %v772, %v771
    %v776 = vpack.c.bf16 %v774, %v773
    %v777 = vld [vmem:[%s6] sm:$0x1]
    %v778 = vld [vmem:[#allocation2] sm:$0xff]
    %v779 = vld [vmem:[#allocation2 + $0x8] sm:$0xff]
    %v780 = vpack.c.bf16 %v779, %v778
    %v782 = vlaneseq
    %v783 = vshrl.u32 %v782, 7
    %v784 = vsub.s32 0, %v783
    %v785 = vrot.slane %v777, %v784
    %v788 = vsel %vm128, %v780, 0
    %790 = vmatprep.subr.bf16.mxu0 0
    %791 = vmatpush1.bf16.msra.mxu0 %v769
    %792 = vmatprep.subr.bf16.mxu0 0
    %793 = vmatpush1.bf16.msra.mxu0 %v770
    %794 = vmatprep.subr.bf16.mxu0 0
    %795 = vmatpush1.bf16.msra.mxu0 0
    %796 = vmatprep.subr.bf16.mxu0 0
    %797 = vmatpush1.bf16.msra.mxu0 0
    %798 = vmatprep.subr.bf16.mxu0 0
    %799 = vmatpush1.bf16.msra.mxu0 0
    %800 = vmatprep.subr.bf16.mxu0 0
    %801 = vmatpush1.bf16.msra.mxu0 0
    %802 = vmatprep.subr.bf16.mxu0 0
    %803 = vmatpush1.bf16.msra.mxu0 0
    %804 = vmatprep.subr.bf16.mxu0 0
    %805 = vmatpush1.bf16.msra.mxu0 0
    %806 = vmatprep.subr.bf16.mxu0 0
    %807 = vmatpush1.bf16.msra.mxu0 0
    %808 = vmatprep.subr.bf16.mxu0 0
    %809 = vmatpush1.bf16.msra.mxu0 0
    %810 = vmatprep.subr.bf16.mxu0 0
    %811 = vmatpush1.bf16.msra.mxu0 0
    %812 = vmatprep.subr.bf16.mxu0 0
    %813 = vmatpush1.bf16.msra.mxu0 0
    %814 = vmatprep.subr.bf16.mxu0 0
    %815 = vmatpush1.bf16.msra.mxu0 0
    %816 = vmatprep.subr.bf16.mxu0 0
    %817 = vmatpush1.bf16.msra.mxu0 0
    %818 = vmatprep.subr.bf16.mxu0 0
    %819 = vmatpush1.bf16.msra.mxu0 0
    %820 = vmatprep.subr.bf16.mxu0 0
    %821 = vmatpush1.bf16.msra.mxu0 0
    %822 = vmatprep.mubr.bf16.mxu0 0
    %823 = vmatmul.mubr.bf16.gmra.mrb[0].mxu0 %v788
    %v824 = vpop.f32.mrb[0].mxu0
    %v825 = vadd.f32 %v785, %v824
    %v826 = vpop.f32.mrb[0].mxu0
    %v827 = vpop.f32.mrb[0].mxu0
    %v828 = vadd.f32 %v785, %v827
    %v829 = vpop.f32.mrb[0].mxu0
    %830 = vdwg.mxu0
    %831 = vmatprep.subr.bf16.mxu0 0
    %832 = vmatpush1.bf16.msra.mxu0 %v775
    %833 = vmatprep.subr.bf16.mxu0 0
    %834 = vmatpush1.bf16.msra.mxu0 %v776
    %835 = vmatprep.subr.bf16.mxu0 0
    %836 = vmatpush1.bf16.msra.mxu0 0
    %837 = vmatprep.subr.bf16.mxu0 0
    %838 = vmatpush1.bf16.msra.mxu0 0
    %839 = vmatprep.subr.bf16.mxu0 0
    %840 = vmatpush1.bf16.msra.mxu0 0
    %841 = vmatprep.subr.bf16.mxu0 0
    %842 = vmatpush1.bf16.msra.mxu0 0
    %843 = vmatprep.subr.bf16.mxu0 0
    %844 = vmatpush1.bf16.msra.mxu0 0
    %845 = vmatprep.subr.bf16.mxu0 0
    %846 = vmatpush1.bf16.msra.mxu0 0
    %847 = vmatprep.subr.bf16.mxu0 0
    %848 = vmatpush1.bf16.msra.mxu0 0
    %849 = vmatprep.subr.bf16.mxu0 0
    %850 = vmatpush1.bf16.msra.mxu0 0
    %851 = vmatprep.subr.bf16.mxu0 0
    %852 = vmatpush1.bf16.msra.mxu0 0
    %853 = vmatprep.subr.bf16.mxu0 0
    %854 = vmatpush1.bf16.msra.mxu0 0
    %855 = vmatprep.subr.bf16.mxu0 0
    %856 = vmatpush1.bf16.msra.mxu0 0
    %857 = vmatprep.subr.bf16.mxu0 0
    %858 = vmatpush1.bf16.msra.mxu0 0
    %859 = vmatprep.subr.bf16.mxu0 0
    %860 = vmatpush1.bf16.msra.mxu0 0
    %861 = vmatprep.subr.bf16.mxu0 0
    %862 = vmatpush1.bf16.msra.mxu0 0
    %863 = vmatprep.mubr.bf16.mxu0 0
    %864 = vmatmul.mubr.bf16.gmra.mrb[0].mxu0 %v130
    %v865 = vpop.f32.mrb[0].mxu0
    %v866 = vadd.f32 0.0, %v865
    %v867 = vpop.f32.mrb[0].mxu0
    %v868 = vpop.f32.mrb[0].mxu0
    %v869 = vpop.f32.mrb[0].mxu0
    %870 = vdwg.mxu0
    %v871 = vadd.f32 %v825, %v866
    %v872 = vmul.f32 %v871, %v59
    %v873 = vtanh.pop %v872
    %v874 = vmul.f32 %v873, %v59
    %v875 = vadd.f32 %v874, %v60
    %v876 = vmul.f32 %v875, 0.0
    %878 = vrot.lane.b32.xlu0 %v875, 64
    %v879 = vpop.permute.xlu0 %878
    %v881 = vmul.f32 %v875, %v879
    %883 = vrot.lane.b32.xlu0 %v881, 32
    %v884 = vpop.permute.xlu0 %883
    %v886 = vadd.f32 %v876, %v884
    %v887 = vtanh.pop %v886
    %889 = vrot.lane.b32.xlu0 %v887, 64
    %v890 = vpop.permute.xlu0 %889
    %v892 = vmul.f32 %v875, %v890
    %v893 = vpack.c.bf16 %v892, %v892
    %895 = vrot.lane.b32.xlu0 %v893, 32
    %v896 = vpop.permute.xlu0 %895
    %v898 = vsel %vm128, %v896, 0
    %900 = vmatprep.subr.bf16.mxu0 0
    %901 = vmatpush1.bf16.msra.mxu0 %v775
    %902 = vmatprep.subr.bf16.mxu0 0
    %903 = vmatpush1.bf16.msra.mxu0 %v776
    %904 = vmatprep.subr.bf16.mxu0 0
    %905 = vmatpush1.bf16.msra.mxu0 0
    %906 = vmatprep.subr.bf16.mxu0 0
    %907 = vmatpush1.bf16.msra.mxu0 0
    %908 = vmatprep.subr.bf16.mxu0 0
    %909 = vmatpush1.bf16.msra.mxu0 0
    %910 = vmatprep.subr.bf16.mxu0 0
    %911 = vmatpush1.bf16.msra.mxu0 0
    %912 = vmatprep.subr.bf16.mxu0 0
    %913 = vmatpush1.bf16.msra.mxu0 0
    %914 = vmatprep.subr.bf16.mxu0 0
    %915 = vmatpush1.bf16.msra.mxu0 0
    %916 = vmatprep.subr.bf16.mxu0 0
    %917 = vmatpush1.bf16.msra.mxu0 0
    %918 = vmatprep.subr.bf16.mxu0 0
    %919 = vmatpush1.bf16.msra.mxu0 0
    %920 = vmatprep.subr.bf16.mxu0 0
    %921 = vmatpush1.bf16.msra.mxu0 0
    %922 = vmatprep.subr.bf16.mxu0 0
    %923 = vmatpush1.bf16.msra.mxu0 0
    %924 = vmatprep.subr.bf16.mxu0 0
    %925 = vmatpush1.bf16.msra.mxu0 0
    %926 = vmatprep.subr.bf16.mxu0 0
    %927 = vmatpush1.bf16.msra.mxu0 0
    %928 = vmatprep.subr.bf16.mxu0 0
    %929 = vmatpush1.bf16.msra.mxu0 0
    %930 = vmatprep.subr.bf16.mxu0 0
    %931 = vmatpush1.bf16.msra.mxu0 0
    %932 = vmatprep.mubr.bf16.mxu0 0
    %933 = vmatmul.mubr.bf16.gmra.mrb[0].mxu0 %v898
    %v934 = vpop.f32.mrb[0].mxu0
    %v935 = vadd.f32 0.0, %v934
    %v936 = vpop.f32.mrb[0].mxu0
    %v937 = vpop.f32.mrb[0].mxu0
    %v938 = vpop.f32.mrb[0].mxu0
    %939 = vdwg.mxu0
    %v941 = vrot.slane %v935, 6
    %v943 = vadd.f32 %v825, %v941
    %v944 = vmul.f32 %v943, %v59
    %v945 = vtanh.pop %v944
    %v946 = vmul.f32 %v945, %v59
    %v947 = vadd.f32 %v946, %v60
    %v949 = vrot.slane %v886, 6
    %v951 = vmul.f32 %v947, %v949
    %953 = vrot.lane.b32.xlu0 %v947, 64
    %v954 = vpop.permute.xlu0 %953
    %v956 = vmul.f32 %v947, %v954
    %958 = vrot.lane.b32.xlu0 %v956, 32
    %v959 = vpop.permute.xlu0 %958
    %v961 = vadd.f32 %v951, %v959
    %v962 = vtanh.pop %v961
    %964 = vrot.lane.b32.xlu0 %v962, 64
    %v965 = vpop.permute.xlu0 %964
    %v967 = vmul.f32 %v947, %v965
    %v968 = vpack.c.bf16 %v967, %v967
    %v970 = vrot.slane %v968, 1
    %971 = vrot.lane.b32.xlu0 %v970, 32
    %v972 = vpop.permute.xlu0 %971
    %v974 = vsel %vm128, %v972, 0
    %976 = vmatprep.subr.bf16.mxu0 0
    %977 = vmatpush1.bf16.msra.mxu0 %v775
    %978 = vmatprep.subr.bf16.mxu0 0
    %979 = vmatpush1.bf16.msra.mxu0 %v776
    %980 = vmatprep.subr.bf16.mxu0 0
    %981 = vmatpush1.bf16.msra.mxu0 0
    %982 = vmatprep.subr.bf16.mxu0 0
    %983 = vmatpush1.bf16.msra.mxu0 0
    %984 = vmatprep.subr.bf16.mxu0 0
    %985 = vmatpush1.bf16.msra.mxu0 0
    %986 = vmatprep.subr.bf16.mxu0 0
    %987 = vmatpush1.bf16.msra.mxu0 0
    %988 = vmatprep.subr.bf16.mxu0 0
    %989 = vmatpush1.bf16.msra.mxu0 0
    %990 = vmatprep.subr.bf16.mxu0 0
    %991 = vmatpush1.bf16.msra.mxu0 0
    %992 = vmatprep.subr.bf16.mxu0 0
    %993 = vmatpush1.bf16.msra.mxu0 0
    %994 = vmatprep.subr.bf16.mxu0 0
    %995 = vmatpush1.bf16.msra.mxu0 0
    %996 = vmatprep.subr.bf16.mxu0 0
    %997 = vmatpush1.bf16.msra.mxu0 0
    %998 = vmatprep.subr.bf16.mxu0 0
    %999 = vmatpush1.bf16.msra.mxu0 0
    %1000 = vmatprep.subr.bf16.mxu0 0
    %1001 = vmatpush1.bf16.msra.mxu0 0
    %1002 = vmatprep.subr.bf16.mxu0 0
    %1003 = vmatpush1.bf16.msra.mxu0 0
    %1004 = vmatprep.subr.bf16.mxu0 0
    %1005 = vmatpush1.bf16.msra.mxu0 0
    %1006 = vmatprep.subr.bf16.mxu0 0
    %1007 = vmatpush1.bf16.msra.mxu0 0
    %1008 = vmatprep.mubr.bf16.mxu0 0
    %1009 = vmatmul.mubr.bf16.gmra.mrb[0].mxu0 %v974
    %v1010 = vpop.f32.mrb[0].mxu0
    %v1011 = vadd.f32 0.0, %v1010
    %v1012 = vpop.f32.mrb[0].mxu0
    %v1013 = vpop.f32.mrb[0].mxu0
    %v1014 = vpop.f32.mrb[0].mxu0
    %1015 = vdwg.mxu0
    %v1017 = vrot.slane %v1011, 4
    %v1019 = vadd.f32 %v825, %v1017
    %v1020 = vmul.f32 %v1019, %v59
    %v1021 = vtanh.pop %v1020
    %v1022 = vmul.f32 %v1021, %v59
    %v1023 = vadd.f32 %v1022, %v60
    %v1025 = vrot.slane %v961, 6
    %v1027 = vmul.f32 %v1023, %v1025
    %1029 = vrot.lane.b32.xlu0 %v1023, 64
    %v1030 = vpop.permute.xlu0 %1029
    %v1032 = vmul.f32 %v1023, %v1030
    %1034 = vrot.lane.b32.xlu0 %v1032, 32
    %v1035 = vpop.permute.xlu0 %1034
    %v1037 = vadd.f32 %v1027, %v1035
    %v1038 = vtanh.pop %v1037
    %1040 = vrot.lane.b32.xlu0 %v1038, 64
    %v1041 = vpop.permute.xlu0 %1040
    %v1043 = vmul.f32 %v1023, %v1041
    %v1044 = vpack.c.bf16 %v1043, %v1043
    %v1046 = vrot.slane %v1044, 2
    %1047 = vrot.lane.b32.xlu0 %v1046, 32
    %v1048 = vpop.permute.xlu0 %1047
    %v1050 = vsel %vm128, %v1048, 0
    %1052 = vmatprep.subr.bf16.mxu0 0
    %1053 = vmatpush1.bf16.msra.mxu0 %v775
    %1054 = vmatprep.subr.bf16.mxu0 0
    %1055 = vmatpush1.bf16.msra.mxu0 %v776
    %1056 = vmatprep.subr.bf16.mxu0 0
    %1057 = vmatpush1.bf16.msra.mxu0 0
    %1058 = vmatprep.subr.bf16.mxu0 0
    %1059 = vmatpush1.bf16.msra.mxu0 0
    %1060 = vmatprep.subr.bf16.mxu0 0
    %1061 = vmatpush1.bf16.msra.mxu0 0
    %1062 = vmatprep.subr.bf16.mxu0 0
    %1063 = vmatpush1.bf16.msra.mxu0 0
    %1064 = vmatprep.subr.bf16.mxu0 0
    %1065 = vmatpush1.bf16.msra.mxu0 0
    %1066 = vmatprep.subr.bf16.mxu0 0
    %1067 = vmatpush1.bf16.msra.mxu0 0
    %1068 = vmatprep.subr.bf16.mxu0 0
    %1069 = vmatpush1.bf16.msra.mxu0 0
    %1070 = vmatprep.subr.bf16.mxu0 0
    %1071 = vmatpush1.bf16.msra.mxu0 0
    %1072 = vmatprep.subr.bf16.mxu0 0
    %1073 = vmatpush1.bf16.msra.mxu0 0
    %1074 = vmatprep.subr.bf16.mxu0 0
    %1075 = vmatpush1.bf16.msra.mxu0 0
    %1076 = vmatprep.subr.bf16.mxu0 0
    %1077 = vmatpush1.bf16.msra.mxu0 0
    %1078 = vmatprep.subr.bf16.mxu0 0
    %1079 = vmatpush1.bf16.msra.mxu0 0
    %1080 = vmatprep.subr.bf16.mxu0 0
    %1081 = vmatpush1.bf16.msra.mxu0 0
    %1082 = vmatprep.subr.bf16.mxu0 0
    %1083 = vmatpush1.bf16.msra.mxu0 0
    %1084 = vmatprep.mubr.bf16.mxu0 0
    %1085 = vmatmul.mubr.bf16.gmra.mrb[0].mxu0 %v1050
    %v1086 = vpop.f32.mrb[0].mxu0
    %v1087 = vadd.f32 0.0, %v1086
    %v1088 = vpop.f32.mrb[0].mxu0
    %v1089 = vpop.f32.mrb[0].mxu0
    %v1090 = vpop.f32.mrb[0].mxu0
    %1091 = vdwg.mxu0
    %v1093 = vrot.slane %v1087, 2
    %v1095 = vadd.f32 %v825, %v1093
    %v1096 = vmul.f32 %v1095, %v59
    %v1097 = vtanh.pop %v1096
    %v1098 = vmul.f32 %v1097, %v59
    %v1099 = vadd.f32 %v1098, %v60
    %v1101 = vrot.slane %v1037, 6
    %v1103 = vmul.f32 %v1099, %v1101
    %1105 = vrot.lane.b32.xlu0 %v1099, 64
    %v1106 = vpop.permute.xlu0 %1105
    %v1108 = vmul.f32 %v1099, %v1106
    %1110 = vrot.lane.b32.xlu0 %v1108, 32
    %v1111 = vpop.permute.xlu0 %1110
    %v1113 = vadd.f32 %v1103, %v1111
    %v1114 = vtanh.pop %v1113
    %1116 = vrot.lane.b32.xlu0 %v1114, 64
    %v1117 = vpop.permute.xlu0 %1116
    %v1119 = vmul.f32 %v1099, %v1117
    %v1120 = vpack.c.bf16 %v1119, %v1119
    %v1122 = vrot.slane %v1120, 3
    %1123 = vrot.lane.b32.xlu0 %v1122, 32
    %v1124 = vpop.permute.xlu0 %1123
    %v1126 = vsel %vm128, %v1124, 0
    %1128 = vmatprep.subr.bf16.mxu0 0
    %1129 = vmatpush1.bf16.msra.mxu0 %v775
    %1130 = vmatprep.subr.bf16.mxu0 0
    %1131 = vmatpush1.bf16.msra.mxu0 %v776
    %1132 = vmatprep.subr.bf16.mxu0 0
    %1133 = vmatpush1.bf16.msra.mxu0 0
    %1134 = vmatprep.subr.bf16.mxu0 0
    %1135 = vmatpush1.bf16.msra.mxu0 0
    %1136 = vmatprep.subr.bf16.mxu0 0
    %1137 = vmatpush1.bf16.msra.mxu0 0
    %1138 = vmatprep.subr.bf16.mxu0 0
    %1139 = vmatpush1.bf16.msra.mxu0 0
    %1140 = vmatprep.subr.bf16.mxu0 0
    %1141 = vmatpush1.bf16.msra.mxu0 0
    %1142 = vmatprep.subr.bf16.mxu0 0
    %1143 = vmatpush1.bf16.msra.mxu0 0
    %1144 = vmatprep.subr.bf16.mxu0 0
    %1145 = vmatpush1.bf16.msra.mxu0 0
    %1146 = vmatprep.subr.bf16.mxu0 0
    %1147 = vmatpush1.bf16.msra.mxu0 0
    %1148 = vmatprep.subr.bf16.mxu0 0
    %1149 = vmatpush1.bf16.msra.mxu0 0
    %1150 = vmatprep.subr.bf16.mxu0 0
    %1151 = vmatpush1.bf16.msra.mxu0 0
    %1152 = vmatprep.subr.bf16.mxu0 0
    %1153 = vmatpush1.bf16.msra.mxu0 0
    %1154 = vmatprep.subr.bf16.mxu0 0
    %1155 = vmatpush1.bf16.msra.mxu0 0
    %1156 = vmatprep.subr.bf16.mxu0 0
    %1157 = vmatpush1.bf16.msra.mxu0 0
    %1158 = vmatprep.subr.bf16.mxu0 0
    %1159 = vmatpush1.bf16.msra.mxu0 0
    %1160 = vmatprep.mubr.bf16.mxu0 0
    %1161 = vmatmul.mubr.bf16.gmra.mrb[0].mxu0 %v1126
    %v1162 = vpop.f32.mrb[0].mxu0
    %v1163 = vadd.f32 0.0, %v1162
    %v1164 = vpop.f32.mrb[0].mxu0
    %v1165 = vpop.f32.mrb[0].mxu0
    %v1166 = vpop.f32.mrb[0].mxu0
    %1167 = vdwg.mxu0
    %v1168 = vadd.f32 %v828, %v1163
    %v1169 = vmul.f32 %v1168, %v59
    %v1170 = vtanh.pop %v1169
    %v1171 = vmul.f32 %v1170, %v59
    %v1172 = vadd.f32 %v1171, %v60
    %v1174 = vrot.slane %v1113, 6
    %v1176 = vmul.f32 %v1172, %v1174
    %1178 = vrot.lane.b32.xlu0 %v1172, 64
    %v1179 = vpop.permute.xlu0 %1178
    %v1181 = vmul.f32 %v1172, %v1179
    %1183 = vrot.lane.b32.xlu0 %v1181, 32
    %v1184 = vpop.permute.xlu0 %1183
    %v1186 = vadd.f32 %v1176, %v1184
    %v1187 = vtanh.pop %v1186
    %1189 = vrot.lane.b32.xlu0 %v1187, 64
    %v1190 = vpop.permute.xlu0 %1189
    %v1192 = vmul.f32 %v1172, %v1190
    %v1193 = vpack.c.bf16 %v1192, %v1192
    %1195 = vrot.lane.b32.xlu0 %v1193, 32
    %v1196 = vpop.permute.xlu0 %1195
    %v1198 = vsel %vm128, %v1196, 0
    %1200 = vmatprep.subr.bf16.mxu0 0
    %1201 = vmatpush1.bf16.msra.mxu0 %v775
    %1202 = vmatprep.subr.bf16.mxu0 0
    %1203 = vmatpush1.bf16.msra.mxu0 %v776
    %1204 = vmatprep.subr.bf16.mxu0 0
    %1205 = vmatpush1.bf16.msra.mxu0 0
    %1206 = vmatprep.subr.bf16.mxu0 0
    %1207 = vmatpush1.bf16.msra.mxu0 0
    %1208 = vmatprep.subr.bf16.mxu0 0
    %1209 = vmatpush1.bf16.msra.mxu0 0
    %1210 = vmatprep.subr.bf16.mxu0 0
    %1211 = vmatpush1.bf16.msra.mxu0 0
    %1212 = vmatprep.subr.bf16.mxu0 0
    %1213 = vmatpush1.bf16.msra.mxu0 0
    %1214 = vmatprep.subr.bf16.mxu0 0
    %1215 = vmatpush1.bf16.msra.mxu0 0
    %1216 = vmatprep.subr.bf16.mxu0 0
    %1217 = vmatpush1.bf16.msra.mxu0 0
    %1218 = vmatprep.subr.bf16.mxu0 0
    %1219 = vmatpush1.bf16.msra.mxu0 0
    %1220 = vmatprep.subr.bf16.mxu0 0
    %1221 = vmatpush1.bf16.msra.mxu0 0
    %1222 = vmatprep.subr.bf16.mxu0 0
    %1223 = vmatpush1.bf16.msra.mxu0 0
    %1224 = vmatprep.subr.bf16.mxu0 0
    %1225 = vmatpush1.bf16.msra.mxu0 0
    %1226 = vmatprep.subr.bf16.mxu0 0
    %1227 = vmatpush1.bf16.msra.mxu0 0
    %1228 = vmatprep.subr.bf16.mxu0 0
    %1229 = vmatpush1.bf16.msra.mxu0 0
    %1230 = vmatprep.subr.bf16.mxu0 0
    %1231 = vmatpush1.bf16.msra.mxu0 0
    %1232 = vmatprep.mubr.bf16.mxu0 0
    %1233 = vmatmul.mubr.bf16.gmra.mrb[0].mxu0 %v1198
    %v1234 = vpop.f32.mrb[0].mxu0
    %v1235 = vadd.f32 0.0, %v1234
    %v1236 = vpop.f32.mrb[0].mxu0
    %v1237 = vpop.f32.mrb[0].mxu0
    %v1238 = vpop.f32.mrb[0].mxu0
    %1239 = vdwg.mxu0
    %v1241 = vrot.slane %v1235, 6
    %v1243 = vadd.f32 %v828, %v1241
    %v1244 = vmul.f32 %v1243, %v59
    %v1245 = vtanh.pop %v1244
    %v1246 = vmul.f32 %v1245, %v59
    %v1247 = vadd.f32 %v1246, %v60
    %v1249 = vrot.slane %v1186, 6
    %v1251 = vmul.f32 %v1247, %v1249
    %1253 = vrot.lane.b32.xlu0 %v1247, 64
    %v1254 = vpop.permute.xlu0 %1253
    %v1256 = vmul.f32 %v1247, %v1254
    %1258 = vrot.lane.b32.xlu0 %v1256, 32
    %v1259 = vpop.permute.xlu0 %1258
    %v1261 = vadd.f32 %v1251, %v1259
    %v1262 = vtanh.pop %v1261
    %1264 = vrot.lane.b32.xlu0 %v1262, 64
    %v1265 = vpop.permute.xlu0 %1264
    %v1267 = vmul.f32 %v1247, %v1265
    %v1268 = vpack.c.bf16 %v1267, %v1267
    %v1270 = vrot.slane %v1268, 1
    %1271 = vrot.lane.b32.xlu0 %v1270, 32
    %v1272 = vpop.permute.xlu0 %1271
    %v1274 = vsel %vm128, %v1272, 0
    %1276 = vmatprep.subr.bf16.mxu0 0
    %1277 = vmatpush1.bf16.msra.mxu0 %v775
    %1278 = vmatprep.subr.bf16.mxu0 0
    %1279 = vmatpush1.bf16.msra.mxu0 %v776
    %1280 = vmatprep.subr.bf16.mxu0 0
    %1281 = vmatpush1.bf16.msra.mxu0 0
    %1282 = vmatprep.subr.bf16.mxu0 0
    %1283 = vmatpush1.bf16.msra.mxu0 0
    %1284 = vmatprep.subr.bf16.mxu0 0
    %1285 = vmatpush1.bf16.msra.mxu0 0
    %1286 = vmatprep.subr.bf16.mxu0 0
    %1287 = vmatpush1.bf16.msra.mxu0 0
    %1288 = vmatprep.subr.bf16.mxu0 0
    %1289 = vmatpush1.bf16.msra.mxu0 0
    %1290 = vmatprep.subr.bf16.mxu0 0
    %1291 = vmatpush1.bf16.msra.mxu0 0
    %1292 = vmatprep.subr.bf16.mxu0 0
    %1293 = vmatpush1.bf16.msra.mxu0 0
    %1294 = vmatprep.subr.bf16.mxu0 0
    %1295 = vmatpush1.bf16.msra.mxu0 0
    %1296 = vmatprep.subr.bf16.mxu0 0
    %1297 = vmatpush1.bf16.msra.mxu0 0
    %1298 = vmatprep.subr.bf16.mxu0 0
    %1299 = vmatpush1.bf16.msra.mxu0 0
    %1300 = vmatprep.subr.bf16.mxu0 0
    %1301 = vmatpush1.bf16.msra.mxu0 0
    %1302 = vmatprep.subr.bf16.mxu0 0
    %1303 = vmatpush1.bf16.msra.mxu0 0
    %1304 = vmatprep.subr.bf16.mxu0 0
    %1305 = vmatpush1.bf16.msra.mxu0 0
    %1306 = vmatprep.subr.bf16.mxu0 0
    %1307 = vmatpush1.bf16.msra.mxu0 0
    %1308 = vmatprep.mubr.bf16.mxu0 0
    %1309 = vmatmul.mubr.bf16.gmra.mrb[0].mxu0 %v1274
    %v1310 = vpop.f32.mrb[0].mxu0
    %v1311 = vadd.f32 0.0, %v1310
    %v1312 = vpop.f32.mrb[0].mxu0
    %v1313 = vpop.f32.mrb[0].mxu0
    %v1314 = vpop.f32.mrb[0].mxu0
    %1315 = vdwg.mxu0
    %v1317 = vrot.slane %v1311, 4
    %v1319 = vadd.f32 %v828, %v1317
    %v1320 = vmul.f32 %v1319, %v59
    %v1321 = vtanh.pop %v1320
    %v1322 = vmul.f32 %v1321, %v59
    %v1323 = vadd.f32 %v1322, %v60
    %v1325 = vrot.slane %v1261, 6
    %v1327 = vmul.f32 %v1323, %v1325
    %1329 = vrot.lane.b32.xlu0 %v1323, 64
    %v1330 = vpop.permute.xlu0 %1329
    %v1332 = vmul.f32 %v1323, %v1330
    %1334 = vrot.lane.b32.xlu0 %v1332, 32
    %v1335 = vpop.permute.xlu0 %1334
    %v1337 = vadd.f32 %v1327, %v1335
    %v1338 = vtanh.pop %v1337
    %1340 = vrot.lane.b32.xlu0 %v1338, 64
    %v1341 = vpop.permute.xlu0 %1340
    %v1343 = vmul.f32 %v1323, %v1341
    %v1344 = vpack.c.bf16 %v1343, %v1343
    %v1346 = vrot.slane %v1344, 2
    %1347 = vrot.lane.b32.xlu0 %v1346, 32
    %v1348 = vpop.permute.xlu0 %1347
    %v1350 = vsel %vm128, %v1348, 0
    %1352 = vmatprep.subr.bf16.mxu0 0
    %1353 = vmatpush1.bf16.msra.mxu0 %v775
    %1354 = vmatprep.subr.bf16.mxu0 0
    %1355 = vmatpush1.bf16.msra.mxu0 %v776
    %1356 = vmatprep.subr.bf16.mxu0 0
    %1357 = vmatpush1.bf16.msra.mxu0 0
    %1358 = vmatprep.subr.bf16.mxu0 0
    %1359 = vmatpush1.bf16.msra.mxu0 0
    %1360 = vmatprep.subr.bf16.mxu0 0
    %1361 = vmatpush1.bf16.msra.mxu0 0
    %1362 = vmatprep.subr.bf16.mxu0 0
    %1363 = vmatpush1.bf16.msra.mxu0 0
    %1364 = vmatprep.subr.bf16.mxu0 0
    %1365 = vmatpush1.bf16.msra.mxu0 0
    %1366 = vmatprep.subr.bf16.mxu0 0
    %1367 = vmatpush1.bf16.msra.mxu0 0
    %1368 = vmatprep.subr.bf16.mxu0 0
    %1369 = vmatpush1.bf16.msra.mxu0 0
    %1370 = vmatprep.subr.bf16.mxu0 0
    %1371 = vmatpush1.bf16.msra.mxu0 0
    %1372 = vmatprep.subr.bf16.mxu0 0
    %1373 = vmatpush1.bf16.msra.mxu0 0
    %1374 = vmatprep.subr.bf16.mxu0 0
    %1375 = vmatpush1.bf16.msra.mxu0 0
    %1376 = vmatprep.subr.bf16.mxu0 0
    %1377 = vmatpush1.bf16.msra.mxu0 0
    %1378 = vmatprep.subr.bf16.mxu0 0
    %1379 = vmatpush1.bf16.msra.mxu0 0
    %1380 = vmatprep.subr.bf16.mxu0 0
    %1381 = vmatpush1.bf16.msra.mxu0 0
    %1382 = vmatprep.subr.bf16.mxu0 0
    %1383 = vmatpush1.bf16.msra.mxu0 0
    %1384 = vmatprep.mubr.bf16.mxu0 0
    %1385 = vmatmul.mubr.bf16.gmra.mrb[0].mxu0 %v1350
    %v1386 = vpop.f32.mrb[0].mxu0
    %v1387 = vadd.f32 0.0, %v1386
    %v1388 = vpop.f32.mrb[0].mxu0
    %v1389 = vpop.f32.mrb[0].mxu0
    %v1390 = vpop.f32.mrb[0].mxu0
    %1391 = vdwg.mxu0
    %v1393 = vrot.slane %v1387, 2
    %v1395 = vadd.f32 %v828, %v1393
    %v1396 = vmul.f32 %v1395, %v59
    %v1397 = vtanh.pop %v1396
    %v1398 = vmul.f32 %v1397, %v59
    %v1399 = vadd.f32 %v1398, %v60
    %v1401 = vrot.slane %v1337, 6
    %v1403 = vmul.f32 %v1399, %v1401
    %1405 = vrot.lane.b32.xlu0 %v1399, 64
    %v1406 = vpop.permute.xlu0 %1405
    %v1408 = vmul.f32 %v1399, %v1406
    %1410 = vrot.lane.b32.xlu0 %v1408, 32
    %v1411 = vpop.permute.xlu0 %1410
    %v1413 = vadd.f32 %v1403, %v1411
    %v1414 = vtanh.pop %v1413
    %1416 = vrot.lane.b32.xlu0 %v1414, 64
    %v1417 = vpop.permute.xlu0 %1416
    %v1419 = vmul.f32 %v1399, %v1417
    %1421 = vrot.lane.b32.xlu0 %v1419, 32
    %v1422 = vpop.permute.xlu0 %1421
    %1424 = vst.msk [vmem:[#allocation3 - $0x6] sm:$0xc0] %vm443, %v1422
    %v1425 = vld [vmem:[%s7] sm:$0xff]
    %v1426 = vld [vmem:[%s7 + $0x8] sm:$0xff]
    %v1427 = vld [vmem:[%s7 + $0x10] sm:$0xff]
    %v1428 = vld [vmem:[%s7 + $0x18] sm:$0xff]
    %v1429 = vld [vmem:[%s7 + $0x20] sm:$0xff]
    %v1430 = vld [vmem:[%s7 + $0x28] sm:$0xff]
    %v1431 = vld [vmem:[%s7 + $0x30] sm:$0xff]
    %v1432 = vld [vmem:[%s7 + $0x38] sm:$0xff]
    %v1433 = vpack.c.bf16 %v1426, %v1425
    %v1434 = vpack.c.bf16 %v1428, %v1427
    %v1435 = vpack.c.bf16 %v1430, %v1429
    %v1436 = vpack.c.bf16 %v1432, %v1431
    %v1437 = vld [vmem:[%s8] sm:$0x1]
    %v1439 = vlaneseq
    %v1440 = vshrl.u32 %v1439, 7
    %v1441 = vsub.s32 0, %v1440
    %v1442 = vrot.slane %v1437, %v1441
    %v1444 = vld [vmem:[%s9] sm:$0xff]
    %v1445 = vld [vmem:[%s9 + $0x8] sm:$0xff]
    %v1446 = vld [vmem:[%s9 + $0x10] sm:$0xff]
    %v1447 = vld [vmem:[%s9 + $0x18] sm:$0xff]
    %v1448 = vld [vmem:[%s9 + $0x20] sm:$0xff]
    %v1449 = vld [vmem:[%s9 + $0x28] sm:$0xff]
    %v1450 = vld [vmem:[%s9 + $0x30] sm:$0xff]
    %v1451 = vld [vmem:[%s9 + $0x38] sm:$0xff]
    %v1452 = vpack.c.bf16 %v1445, %v1444
    %v1453 = vpack.c.bf16 %v1447, %v1446
    %v1454 = vpack.c.bf16 %v1449, %v1448
    %v1455 = vpack.c.bf16 %v1451, %v1450
    %v1456 = vld [vmem:[%s10] sm:$0x1]
    %v1458 = vlaneseq
    %v1459 = vshrl.u32 %v1458, 7
    %v1460 = vsub.s32 0, %v1459
    %v1461 = vrot.slane %v1456, %v1460
    %v1463 = vsel %vm128, %v1422, 0.0
    %v1464 = vpack.c.bf16 %v1463, %v1463
    %v1466 = vrot.slane %v1464, 3
    %vm1467 = vcmask 523264
    %v1469 = vsel %vm1467, %v1466, 0
    %1471 = vmatprep.subr.bf16.mxu0 0
    %1472 = vmatpush1.bf16.msra.mxu0 %v1433
    %1473 = vmatprep.subr.bf16.mxu0 0
    %1474 = vmatpush1.bf16.msra.mxu0 %v1434
    %1475 = vmatprep.subr.bf16.mxu0 0
    %1476 = vmatpush1.bf16.msra.mxu0 %v1435
    %1477 = vmatprep.subr.bf16.mxu0 0
    %1478 = vmatpush1.bf16.msra.mxu0 %v1436
    %1479 = vmatprep.subr.bf16.mxu0 0
    %1480 = vmatpush1.bf16.msra.mxu0 0
    %1481 = vmatprep.subr.bf16.mxu0 0
    %1482 = vmatpush1.bf16.msra.mxu0 0
    %1483 = vmatprep.subr.bf16.mxu0 0
    %1484 = vmatpush1.bf16.msra.mxu0 0
    %1485 = vmatprep.subr.bf16.mxu0 0
    %1486 = vmatpush1.bf16.msra.mxu0 0
    %1487 = vmatprep.subr.bf16.mxu0 0
    %1488 = vmatpush1.bf16.msra.mxu0 0
    %1489 = vmatprep.subr.bf16.mxu0 0
    %1490 = vmatpush1.bf16.msra.mxu0 0
    %1491 = vmatprep.subr.bf16.mxu0 0
    %1492 = vmatpush1.bf16.msra.mxu0 0
    %1493 = vmatprep.subr.bf16.mxu0 0
    %1494 = vmatpush1.bf16.msra.mxu0 0
    %1495 = vmatprep.subr.bf16.mxu0 0
    %1496 = vmatpush1.bf16.msra.mxu0 0
    %1497 = vmatprep.subr.bf16.mxu0 0
    %1498 = vmatpush1.bf16.msra.mxu0 0
    %1499 = vmatprep.subr.bf16.mxu0 0
    %1500 = vmatpush1.bf16.msra.mxu0 0
    %1501 = vmatprep.subr.bf16.mxu0 0
    %1502 = vmatpush1.bf16.msra.mxu0 0
    %1503 = vmatprep.mubr.bf16.mxu0 0
    %1504 = vmatmul.mubr.bf16.gmra.mrb[0].mxu0 %v1469
    %v1505 = vpop.f32.mrb[0].mxu0
    %v1506 = vadd.f32 %v1442, %v1505
    %v1507 = vpop.f32.mrb[0].mxu0
    %v1508 = vpop.f32.mrb[0].mxu0
    %v1509 = vpop.f32.mrb[0].mxu0
    %1510 = vdwg.mxu0
    %v1511 = vmul.f32 %v1506, %v59
    %v1512 = vtanh.pop %v1511
    %v1513 = vmul.f32 %v1512, %v59
    %v1514 = vadd.f32 %v1513, %v60
    %v1515 = vmul.f32 %v1514, 0.0
    %1517 = vrot.lane.b32.xlu0 %v1514, 64
    %v1518 = vpop.permute.xlu0 %1517
    %v1520 = vmul.f32 %v1514, %v1518
    %1522 = vrot.lane.b32.xlu0 %v1520, 32
    %v1523 = vpop.permute.xlu0 %1522
    %v1525 = vadd.f32 %v1515, %v1523
    %v1526 = vtanh.pop %v1525
    %1528 = vrot.lane.b32.xlu0 %v1526, 64
    %v1529 = vpop.permute.xlu0 %1528
    %v1531 = vmul.f32 %v1514, %v1529
    %1533 = vrot.lane.b32.xlu0 %v1531, 32
    %v1534 = vpop.permute.xlu0 %1533
    %v1536 = vsel %vm128, %v1534, 0.0
    %v1537 = vpack.c.bf16 %v1536, %v1536
    %v1539 = vsel %vm1467, %v1537, 0
    %1541 = vmatprep.subr.bf16.mxu0 0
    %1542 = vmatpush1.bf16.msra.mxu0 %v1452
    %1543 = vmatprep.subr.bf16.mxu0 0
    %1544 = vmatpush1.bf16.msra.mxu0 %v1453
    %1545 = vmatprep.subr.bf16.mxu0 0
    %1546 = vmatpush1.bf16.msra.mxu0 %v1454
    %1547 = vmatprep.subr.bf16.mxu0 0
    %1548 = vmatpush1.bf16.msra.mxu0 %v1455
    %1549 = vmatprep.subr.bf16.mxu0 0
    %1550 = vmatpush1.bf16.msra.mxu0 0
    %1551 = vmatprep.subr.bf16.mxu0 0
    %1552 = vmatpush1.bf16.msra.mxu0 0
    %1553 = vmatprep.subr.bf16.mxu0 0
    %1554 = vmatpush1.bf16.msra.mxu0 0
    %1555 = vmatprep.subr.bf16.mxu0 0
    %1556 = vmatpush1.bf16.msra.mxu0 0
    %1557 = vmatprep.subr.bf16.mxu0 0
    %1558 = vmatpush1.bf16.msra.mxu0 0
    %1559 = vmatprep.subr.bf16.mxu0 0
    %1560 = vmatpush1.bf16.msra.mxu0 0
    %1561 = vmatprep.subr.bf16.mxu0 0
    %1562 = vmatpush1.bf16.msra.mxu0 0
    %1563 = vmatprep.subr.bf16.mxu0 0
    %1564 = vmatpush1.bf16.msra.mxu0 0
    %1565 = vmatprep.subr.bf16.mxu0 0
    %1566 = vmatpush1.bf16.msra.mxu0 0
    %1567 = vmatprep.subr.bf16.mxu0 0
    %1568 = vmatpush1.bf16.msra.mxu0 0
    %1569 = vmatprep.subr.bf16.mxu0 0
    %1570 = vmatpush1.bf16.msra.mxu0 0
    %1571 = vmatprep.subr.bf16.mxu0 0
    %1572 = vmatpush1.bf16.msra.mxu0 0
    %1573 = vmatprep.mubr.bf16.mxu0 0
    %1574 = vmatmul.mubr.bf16.gmra.mrb[0].mxu0 %v1539
    %v1575 = vpop.f32.mrb[0].mxu0
    %v1576 = vadd.f32 %v1461, %v1575
    %v1577 = vpop.f32.mrb[0].mxu0
    %v1578 = vpop.f32.mrb[0].mxu0
    %v1579 = vpop.f32.mrb[0].mxu0
    %1580 = vdwg.mxu0
    %v1581 = vmul.f32 %v1576, %v59
    %v1582 = vtanh.pop %v1581
    %v1583 = vmul.f32 %v1582, %v59
    %v1584 = vadd.f32 %v1583, %v60
    %v1585 = vmul.f32 %v1584, 0.0
    %1587 = vrot.lane.b32.xlu0 %v1584, 64
    %v1588 = vpop.permute.xlu0 %1587
    %v1590 = vmul.f32 %v1584, %v1588
    %1592 = vrot.lane.b32.xlu0 %v1590, 32
    %v1593 = vpop.permute.xlu0 %1592
    %v1595 = vadd.f32 %v1585, %v1593
    %v1596 = vtanh.pop %v1595
    %1598 = vrot.lane.b32.xlu0 %v1596, 64
    %v1599 = vpop.permute.xlu0 %1598
    %v1601 = vmul.f32 %v1584, %v1599
    %1603 = vrot.lane.b32.xlu0 %v1601, 32
    %v1604 = vpop.permute.xlu0 %1603
    %1606 = vst.msk [vmem:[#allocation2] sm:$0x3] %vm198, %v1604
    %1607 = vrot.lane.b32.xlu0 %v1531, 64
    %v1608 = vpop.permute.xlu0 %1607
    %v1610 = vsel %vm128, %v1604, %v1608
    %v1611 = vpack.c.bf16 %v1610, %v1610
    %v1613 = vsel %vm1467, %v1611, 0
    %1615 = vmatprep.subr.bf16.mxu0 0
    %1616 = vmatpush1.bf16.msra.mxu0 %v1433
    %1617 = vmatprep.subr.bf16.mxu0 0
    %1618 = vmatpush1.bf16.msra.mxu0 %v1434
    %1619 = vmatprep.subr.bf16.mxu0 0
    %1620 = vmatpush1.bf16.msra.mxu0 %v1435
    %1621 = vmatprep.subr.bf16.mxu0 0
    %1622 = vmatpush1.bf16.msra.mxu0 %v1436
    %1623 = vmatprep.subr.bf16.mxu0 0
    %1624 = vmatpush1.bf16.msra.mxu0 0
    %1625 = vmatprep.subr.bf16.mxu0 0
    %1626 = vmatpush1.bf16.msra.mxu0 0
    %1627 = vmatprep.subr.bf16.mxu0 0
    %1628 = vmatpush1.bf16.msra.mxu0 0
    %1629 = vmatprep.subr.bf16.mxu0 0
    %1630 = vmatpush1.bf16.msra.mxu0 0
    %1631 = vmatprep.subr.bf16.mxu0 0
    %1632 = vmatpush1.bf16.msra.mxu0 0
    %1633 = vmatprep.subr.bf16.mxu0 0
    %1634 = vmatpush1.bf16.msra.mxu0 0
    %1635 = vmatprep.subr.bf16.mxu0 0
    %1636 = vmatpush1.bf16.msra.mxu0 0
    %1637 = vmatprep.subr.bf16.mxu0 0
    %1638 = vmatpush1.bf16.msra.mxu0 0
    %1639 = vmatprep.subr.bf16.mxu0 0
    %1640 = vmatpush1.bf16.msra.mxu0 0
    %1641 = vmatprep.subr.bf16.mxu0 0
    %1642 = vmatpush1.bf16.msra.mxu0 0
    %1643 = vmatprep.subr.bf16.mxu0 0
    %1644 = vmatpush1.bf16.msra.mxu0 0
    %1645 = vmatprep.subr.bf16.mxu0 0
    %1646 = vmatpush1.bf16.msra.mxu0 0
    %1647 = vmatprep.mubr.bf16.mxu0 0
    %1648 = vmatmul.mubr.bf16.gmra.mrb[0].mxu0 %v1613
    %v1649 = vpop.f32.mrb[0].mxu0
    %v1650 = vadd.f32 %v1442, %v1649
    %v1651 = vpop.f32.mrb[0].mxu0
    %v1652 = vpop.f32.mrb[0].mxu0
    %v1653 = vpop.f32.mrb[0].mxu0
    %1654 = vdwg.mxu0
    %v1655 = vmul.f32 %v1650, %v59
    %v1656 = vtanh.pop %v1655
    %v1657 = vmul.f32 %v1656, %v59
    %v1658 = vadd.f32 %v1657, %v60
    %v1659 = vmul.f32 %v1658, %v1525
    %1661 = vrot.lane.b32.xlu0 %v1658, 64
    %v1662 = vpop.permute.xlu0 %1661
    %v1664 = vmul.f32 %v1658, %v1662
    %1666 = vrot.lane.b32.xlu0 %v1664, 32
    %v1667 = vpop.permute.xlu0 %1666
    %v1669 = vadd.f32 %v1659, %v1667
    %v1670 = vtanh.pop %v1669
    %1672 = vrot.lane.b32.xlu0 %v1670, 64
    %v1673 = vpop.permute.xlu0 %1672
    %v1675 = vmul.f32 %v1658, %v1673
    %1677 = vrot.lane.b32.xlu0 %v1675, 32
    %v1678 = vpop.permute.xlu0 %1677
    %1680 = vrot.lane.b32.xlu0 %v1601, 64
    %v1681 = vpop.permute.xlu0 %1680
    %v1683 = vsel %vm128, %v1678, %v1681
    %v1684 = vpack.c.bf16 %v1683, %v1683
    %v1686 = vsel %vm1467, %v1684, 0
    %1688 = vmatprep.subr.bf16.mxu0 0
    %1689 = vmatpush1.bf16.msra.mxu0 %v1452
    %1690 = vmatprep.subr.bf16.mxu0 0
    %1691 = vmatpush1.bf16.msra.mxu0 %v1453
    %1692 = vmatprep.subr.bf16.mxu0 0
    %1693 = vmatpush1.bf16.msra.mxu0 %v1454
    %1694 = vmatprep.subr.bf16.mxu0 0
    %1695 = vmatpush1.bf16.msra.mxu0 %v1455
    %1696 = vmatprep.subr.bf16.mxu0 0
    %1697 = vmatpush1.bf16.msra.mxu0 0
    %1698 = vmatprep.subr.bf16.mxu0 0
    %1699 = vmatpush1.bf16.msra.mxu0 0
    %1700 = vmatprep.subr.bf16.mxu0 0
    %1701 = vmatpush1.bf16.msra.mxu0 0
    %1702 = vmatprep.subr.bf16.mxu0 0
    %1703 = vmatpush1.bf16.msra.mxu0 0
    %1704 = vmatprep.subr.bf16.mxu0 0
    %1705 = vmatpush1.bf16.msra.mxu0 0
    %1706 = vmatprep.subr.bf16.mxu0 0
    %1707 = vmatpush1.bf16.msra.mxu0 0
    %1708 = vmatprep.subr.bf16.mxu0 0
    %1709 = vmatpush1.bf16.msra.mxu0 0
    %1710 = vmatprep.subr.bf16.mxu0 0
    %1711 = vmatpush1.bf16.msra.mxu0 0
    %1712 = vmatprep.subr.bf16.mxu0 0
    %1713 = vmatpush1.bf16.msra.mxu0 0
    %1714 = vmatprep.subr.bf16.mxu0 0
    %1715 = vmatpush1.bf16.msra.mxu0 0
    %1716 = vmatprep.subr.bf16.mxu0 0
    %1717 = vmatpush1.bf16.msra.mxu0 0
    %1718 = vmatprep.subr.bf16.mxu0 0
    %1719 = vmatpush1.bf16.msra.mxu0 0
    %1720 = vmatprep.mubr.bf16.mxu0 0
    %1721 = vmatmul.mubr.bf16.gmra.mrb[0].mxu0 %v1686
    %v1722 = vpop.f32.mrb[0].mxu0
    %v1723 = vadd.f32 %v1461, %v1722
    %v1724 = vpop.f32.mrb[0].mxu0
    %v1725 = vpop.f32.mrb[0].mxu0
    %v1726 = vpop.f32.mrb[0].mxu0
    %1727 = vdwg.mxu0
    %v1728 = vmul.f32 %v1723, %v59
    %v1729 = vtanh.pop %v1728
    %v1730 = vmul.f32 %v1729, %v59
    %v1731 = vadd.f32 %v1730, %v60
    %v1732 = vmul.f32 %v1731, %v1595
    %1734 = vrot.lane.b32.xlu0 %v1731, 64
    %v1735 = vpop.permute.xlu0 %1734
    %v1737 = vmul.f32 %v1731, %v1735
    %1739 = vrot.lane.b32.xlu0 %v1737, 32
    %v1740 = vpop.permute.xlu0 %1739
    %v1742 = vadd.f32 %v1732, %v1740
    %v1743 = vtanh.pop %v1742
    %1745 = vrot.lane.b32.xlu0 %v1743, 64
    %v1746 = vpop.permute.xlu0 %1745
    %v1748 = vmul.f32 %v1731, %v1746
    %1750 = vrot.lane.b32.xlu0 %v1748, 32
    %v1751 = vpop.permute.xlu0 %1750
    %1753 = vst.msk [vmem:[#allocation2 + $0x2] sm:$0x3] %vm198, %v1751
    %1754 = vrot.lane.b32.xlu0 %v1675, 64
    %v1755 = vpop.permute.xlu0 %1754
    %v1757 = vsel %vm128, %v1751, %v1755
    %v1758 = vpack.c.bf16 %v1757, %v1757
    %v1760 = vsel %vm1467, %v1758, 0
    %1762 = vmatprep.subr.bf16.mxu0 0
    %1763 = vmatpush1.bf16.msra.mxu0 %v1433
    %1764 = vmatprep.subr.bf16.mxu0 0
    %1765 = vmatpush1.bf16.msra.mxu0 %v1434
    %1766 = vmatprep.subr.bf16.mxu0 0
    %1767 = vmatpush1.bf16.msra.mxu0 %v1435
    %1768 = vmatprep.subr.bf16.mxu0 0
    %1769 = vmatpush1.bf16.msra.mxu0 %v1436
    %1770 = vmatprep.subr.bf16.mxu0 0
    %1771 = vmatpush1.bf16.msra.mxu0 0
    %1772 = vmatprep.subr.bf16.mxu0 0
    %1773 = vmatpush1.bf16.msra.mxu0 0
    %1774 = vmatprep.subr.bf16.mxu0 0
    %1775 = vmatpush1.bf16.msra.mxu0 0
    %1776 = vmatprep.subr.bf16.mxu0 0
    %1777 = vmatpush1.bf16.msra.mxu0 0
    %1778 = vmatprep.subr.bf16.mxu0 0
    %1779 = vmatpush1.bf16.msra.mxu0 0
    %1780 = vmatprep.subr.bf16.mxu0 0
    %1781 = vmatpush1.bf16.msra.mxu0 0
    %1782 = vmatprep.subr.bf16.mxu0 0
    %1783 = vmatpush1.bf16.msra.mxu0 0
    %1784 = vmatprep.subr.bf16.mxu0 0
    %1785 = vmatpush1.bf16.msra.mxu0 0
    %1786 = vmatprep.subr.bf16.mxu0 0
    %1787 = vmatpush1.bf16.msra.mxu0 0
    %1788 = vmatprep.subr.bf16.mxu0 0
    %1789 = vmatpush1.bf16.msra.mxu0 0
    %1790 = vmatprep.subr.bf16.mxu0 0
    %1791 = vmatpush1.bf16.msra.mxu0 0
    %1792 = vmatprep.subr.bf16.mxu0 0
    %1793 = vmatpush1.bf16.msra.mxu0 0
    %1794 = vmatprep.mubr.bf16.mxu0 0
    %1795 = vmatmul.mubr.bf16.gmra.mrb[0].mxu0 %v1760
    %v1796 = vpop.f32.mrb[0].mxu0
    %v1797 = vadd.f32 %v1442, %v1796
    %v1798 = vpop.f32.mrb[0].mxu0
    %v1799 = vpop.f32.mrb[0].mxu0
    %v1800 = vpop.f32.mrb[0].mxu0
    %1801 = vdwg.mxu0
    %v1802 = vmul.f32 %v1797, %v59
    %v1803 = vtanh.pop %v1802
    %v1804 = vmul.f32 %v1803, %v59
    %v1805 = vadd.f32 %v1804, %v60
    %v1806 = vmul.f32 %v1805, %v1669
    %1808 = vrot.lane.b32.xlu0 %v1805, 64
    %v1809 = vpop.permute.xlu0 %1808
    %v1811 = vmul.f32 %v1805, %v1809
    %1813 = vrot.lane.b32.xlu0 %v1811, 32
    %v1814 = vpop.permute.xlu0 %1813
    %v1816 = vadd.f32 %v1806, %v1814
    %v1817 = vtanh.pop %v1816
    %1819 = vrot.lane.b32.xlu0 %v1817, 64
    %v1820 = vpop.permute.xlu0 %1819
    %v1822 = vmul.f32 %v1805, %v1820
    %1824 = vrot.lane.b32.xlu0 %v1822, 32
    %v1825 = vpop.permute.xlu0 %1824
    %1827 = vrot.lane.b32.xlu0 %v1748, 64
    %v1828 = vpop.permute.xlu0 %1827
    %v1830 = vsel %vm128, %v1825, %v1828
    %v1831 = vpack.c.bf16 %v1830, %v1830
    %v1833 = vsel %vm1467, %v1831, 0
    %1835 = vmatprep.subr.bf16.mxu0 0
    %1836 = vmatpush1.bf16.msra.mxu0 %v1452
    %1837 = vmatprep.subr.bf16.mxu0 0
    %1838 = vmatpush1.bf16.msra.mxu0 %v1453
    %1839 = vmatprep.subr.bf16.mxu0 0
    %1840 = vmatpush1.bf16.msra.mxu0 %v1454
    %1841 = vmatprep.subr.bf16.mxu0 0
    %1842 = vmatpush1.bf16.msra.mxu0 %v1455
    %1843 = vmatprep.subr.bf16.mxu0 0
    %1844 = vmatpush1.bf16.msra.mxu0 0
    %1845 = vmatprep.subr.bf16.mxu0 0
    %1846 = vmatpush1.bf16.msra.mxu0 0
    %1847 = vmatprep.subr.bf16.mxu0 0
    %1848 = vmatpush1.bf16.msra.mxu0 0
    %1849 = vmatprep.subr.bf16.mxu0 0
    %1850 = vmatpush1.bf16.msra.mxu0 0
    %1851 = vmatprep.subr.bf16.mxu0 0
    %1852 = vmatpush1.bf16.msra.mxu0 0
    %1853 = vmatprep.subr.bf16.mxu0 0
    %1854 = vmatpush1.bf16.msra.mxu0 0
    %1855 = vmatprep.subr.bf16.mxu0 0
    %1856 = vmatpush1.bf16.msra.mxu0 0
    %1857 = vmatprep.subr.bf16.mxu0 0
    %1858 = vmatpush1.bf16.msra.mxu0 0
    %1859 = vmatprep.subr.bf16.mxu0 0
    %1860 = vmatpush1.bf16.msra.mxu0 0
    %1861 = vmatprep.subr.bf16.mxu0 0
    %1862 = vmatpush1.bf16.msra.mxu0 0
    %1863 = vmatprep.subr.bf16.mxu0 0
    %1864 = vmatpush1.bf16.msra.mxu0 0
    %1865 = vmatprep.subr.bf16.mxu0 0
    %1866 = vmatpush1.bf16.msra.mxu0 0
    %1867 = vmatprep.mubr.bf16.mxu0 0
    %1868 = vmatmul.mubr.bf16.gmra.mrb[0].mxu0 %v1833
    %v1869 = vpop.f32.mrb[0].mxu0
    %v1870 = vadd.f32 %v1461, %v1869
    %v1871 = vpop.f32.mrb[0].mxu0
    %v1872 = vpop.f32.mrb[0].mxu0
    %v1873 = vpop.f32.mrb[0].mxu0
    %1874 = vdwg.mxu0
    %v1875 = vmul.f32 %v1870, %v59
    %v1876 = vtanh.pop %v1875
    %v1877 = vmul.f32 %v1876, %v59
    %v1878 = vadd.f32 %v1877, %v60
    %v1879 = vmul.f32 %v1878, %v1742
    %1881 = vrot.lane.b32.xlu0 %v1878, 64
    %v1882 = vpop.permute.xlu0 %1881
    %v1884 = vmul.f32 %v1878, %v1882
    %1886 = vrot.lane.b32.xlu0 %v1884, 32
    %v1887 = vpop.permute.xlu0 %1886
    %v1889 = vadd.f32 %v1879, %v1887
    %v1890 = vtanh.pop %v1889
    %1892 = vrot.lane.b32.xlu0 %v1890, 64
    %v1893 = vpop.permute.xlu0 %1892
    %v1895 = vmul.f32 %v1878, %v1893
    %1897 = vrot.lane.b32.xlu0 %v1895, 32
    %v1898 = vpop.permute.xlu0 %1897
    %1900 = vst.msk [vmem:[#allocation2 + $0x4] sm:$0x3] %vm198, %v1898
    %1901 = vrot.lane.b32.xlu0 %v1822, 64
    %v1902 = vpop.permute.xlu0 %1901
    %v1904 = vsel %vm128, %v1898, %v1902
    %v1905 = vpack.c.bf16 %v1904, %v1904
    %v1907 = vsel %vm1467, %v1905, 0
    %1909 = vmatprep.subr.bf16.mxu0 0
    %1910 = vmatpush1.bf16.msra.mxu0 %v1433
    %1911 = vmatprep.subr.bf16.mxu0 0
    %1912 = vmatpush1.bf16.msra.mxu0 %v1434
    %1913 = vmatprep.subr.bf16.mxu0 0
    %1914 = vmatpush1.bf16.msra.mxu0 %v1435
    %1915 = vmatprep.subr.bf16.mxu0 0
    %1916 = vmatpush1.bf16.msra.mxu0 %v1436
    %1917 = vmatprep.subr.bf16.mxu0 0
    %1918 = vmatpush1.bf16.msra.mxu0 0
    %1919 = vmatprep.subr.bf16.mxu0 0
    %1920 = vmatpush1.bf16.msra.mxu0 0
    %1921 = vmatprep.subr.bf16.mxu0 0
    %1922 = vmatpush1.bf16.msra.mxu0 0
    %1923 = vmatprep.subr.bf16.mxu0 0
    %1924 = vmatpush1.bf16.msra.mxu0 0
    %1925 = vmatprep.subr.bf16.mxu0 0
    %1926 = vmatpush1.bf16.msra.mxu0 0
    %1927 = vmatprep.subr.bf16.mxu0 0
    %1928 = vmatpush1.bf16.msra.mxu0 0
    %1929 = vmatprep.subr.bf16.mxu0 0
    %1930 = vmatpush1.bf16.msra.mxu0 0
    %1931 = vmatprep.subr.bf16.mxu0 0
    %1932 = vmatpush1.bf16.msra.mxu0 0
    %1933 = vmatprep.subr.bf16.mxu0 0
    %1934 = vmatpush1.bf16.msra.mxu0 0
    %1935 = vmatprep.subr.bf16.mxu0 0
    %1936 = vmatpush1.bf16.msra.mxu0 0
    %1937 = vmatprep.subr.bf16.mxu0 0
    %1938 = vmatpush1.bf16.msra.mxu0 0
    %1939 = vmatprep.subr.bf16.mxu0 0
    %1940 = vmatpush1.bf16.msra.mxu0 0
    %1941 = vmatprep.mubr.bf16.mxu0 0
    %1942 = vmatmul.mubr.bf16.gmra.mrb[0].mxu0 %v1907
    %v1943 = vpop.f32.mrb[0].mxu0
    %v1944 = vadd.f32 %v1442, %v1943
    %v1945 = vpop.f32.mrb[0].mxu0
    %v1946 = vpop.f32.mrb[0].mxu0
    %v1947 = vpop.f32.mrb[0].mxu0
    %1948 = vdwg.mxu0
    %v1949 = vmul.f32 %v1944, %v59
    %v1950 = vtanh.pop %v1949
    %v1951 = vmul.f32 %v1950, %v59
    %v1952 = vadd.f32 %v1951, %v60
    %v1953 = vmul.f32 %v1952, %v1816
    %1955 = vrot.lane.b32.xlu0 %v1952, 64
    %v1956 = vpop.permute.xlu0 %1955
    %v1958 = vmul.f32 %v1952, %v1956
    %1960 = vrot.lane.b32.xlu0 %v1958, 32
    %v1961 = vpop.permute.xlu0 %1960
    %v1963 = vadd.f32 %v1953, %v1961
    %v1964 = vtanh.pop %v1963
    %1966 = vrot.lane.b32.xlu0 %v1964, 64
    %v1967 = vpop.permute.xlu0 %1966
    %v1969 = vmul.f32 %v1952, %v1967
    %1971 = vrot.lane.b32.xlu0 %v1969, 32
    %v1972 = vpop.permute.xlu0 %1971
    %1974 = vrot.lane.b32.xlu0 %v1895, 64
    %v1975 = vpop.permute.xlu0 %1974
    %v1977 = vsel %vm128, %v1972, %v1975
    %v1978 = vpack.c.bf16 %v1977, %v1977
    %v1980 = vsel %vm1467, %v1978, 0
    %1982 = vmatprep.subr.bf16.mxu0 0
    %1983 = vmatpush1.bf16.msra.mxu0 %v1452
    %1984 = vmatprep.subr.bf16.mxu0 0
    %1985 = vmatpush1.bf16.msra.mxu0 %v1453
    %1986 = vmatprep.subr.bf16.mxu0 0
    %1987 = vmatpush1.bf16.msra.mxu0 %v1454
    %1988 = vmatprep.subr.bf16.mxu0 0
    %1989 = vmatpush1.bf16.msra.mxu0 %v1455
    %1990 = vmatprep.subr.bf16.mxu0 0
    %1991 = vmatpush1.bf16.msra.mxu0 0
    %1992 = vmatprep.subr.bf16.mxu0 0
    %1993 = vmatpush1.bf16.msra.mxu0 0
    %1994 = vmatprep.subr.bf16.mxu0 0
    %1995 = vmatpush1.bf16.msra.mxu0 0
    %1996 = vmatprep.subr.bf16.mxu0 0
    %1997 = vmatpush1.bf16.msra.mxu0 0
    %1998 = vmatprep.subr.bf16.mxu0 0
    %1999 = vmatpush1.bf16.msra.mxu0 0
    %2000 = vmatprep.subr.bf16.mxu0 0
    %2001 = vmatpush1.bf16.msra.mxu0 0
    %2002 = vmatprep.subr.bf16.mxu0 0
    %2003 = vmatpush1.bf16.msra.mxu0 0
    %2004 = vmatprep.subr.bf16.mxu0 0
    %2005 = vmatpush1.bf16.msra.mxu0 0
    %2006 = vmatprep.subr.bf16.mxu0 0
    %2007 = vmatpush1.bf16.msra.mxu0 0
    %2008 = vmatprep.subr.bf16.mxu0 0
    %2009 = vmatpush1.bf16.msra.mxu0 0
    %2010 = vmatprep.subr.bf16.mxu0 0
    %2011 = vmatpush1.bf16.msra.mxu0 0
    %2012 = vmatprep.subr.bf16.mxu0 0
    %2013 = vmatpush1.bf16.msra.mxu0 0
    %2014 = vmatprep.mubr.bf16.mxu0 0
    %2015 = vmatmul.mubr.bf16.gmra.mrb[0].mxu0 %v1980
    %v2016 = vpop.f32.mrb[0].mxu0
    %v2017 = vadd.f32 %v1461, %v2016
    %v2018 = vpop.f32.mrb[0].mxu0
    %v2019 = vpop.f32.mrb[0].mxu0
    %v2020 = vpop.f32.mrb[0].mxu0
    %2021 = vdwg.mxu0
    %v2022 = vmul.f32 %v2017, %v59
    %v2023 = vtanh.pop %v2022
    %v2024 = vmul.f32 %v2023, %v59
    %v2025 = vadd.f32 %v2024, %v60
    %v2026 = vmul.f32 %v2025, %v1889
    %2028 = vrot.lane.b32.xlu0 %v2025, 64
    %v2029 = vpop.permute.xlu0 %2028
    %v2031 = vmul.f32 %v2025, %v2029
    %2033 = vrot.lane.b32.xlu0 %v2031, 32
    %v2034 = vpop.permute.xlu0 %2033
    %v2036 = vadd.f32 %v2026, %v2034
    %v2037 = vtanh.pop %v2036
    %2039 = vrot.lane.b32.xlu0 %v2037, 64
    %v2040 = vpop.permute.xlu0 %2039
    %v2042 = vmul.f32 %v2025, %v2040
    %2044 = vrot.lane.b32.xlu0 %v2042, 32
    %v2045 = vpop.permute.xlu0 %2044
    %2047 = vst.msk [vmem:[#allocation2 + $0x6] sm:$0x3] %vm198, %v2045
    %2048 = vrot.lane.b32.xlu0 %v1969, 64
    %v2049 = vpop.permute.xlu0 %2048
    %v2051 = vsel %vm128, %v2045, %v2049
    %v2052 = vpack.c.bf16 %v2051, %v2051
    %v2054 = vsel %vm1467, %v2052, 0
    %2056 = vmatprep.subr.bf16.mxu0 0
    %2057 = vmatpush1.bf16.msra.mxu0 %v1433
    %2058 = vmatprep.subr.bf16.mxu0 0
    %2059 = vmatpush1.bf16.msra.mxu0 %v1434
    %2060 = vmatprep.subr.bf16.mxu0 0
    %2061 = vmatpush1.bf16.msra.mxu0 %v1435
    %2062 = vmatprep.subr.bf16.mxu0 0
    %2063 = vmatpush1.bf16.msra.mxu0 %v1436
    %2064 = vmatprep.subr.bf16.mxu0 0
    %2065 = vmatpush1.bf16.msra.mxu0 0
    %2066 = vmatprep.subr.bf16.mxu0 0
    %2067 = vmatpush1.bf16.msra.mxu0 0
    %2068 = vmatprep.subr.bf16.mxu0 0
    %2069 = vmatpush1.bf16.msra.mxu0 0
    %2070 = vmatprep.subr.bf16.mxu0 0
    %2071 = vmatpush1.bf16.msra.mxu0 0
    %2072 = vmatprep.subr.bf16.mxu0 0
    %2073 = vmatpush1.bf16.msra.mxu0 0
    %2074 = vmatprep.subr.bf16.mxu0 0
    %2075 = vmatpush1.bf16.msra.mxu0 0
    %2076 = vmatprep.subr.bf16.mxu0 0
    %2077 = vmatpush1.bf16.msra.mxu0 0
    %2078 = vmatprep.subr.bf16.mxu0 0
    %2079 = vmatpush1.bf16.msra.mxu0 0
    %2080 = vmatprep.subr.bf16.mxu0 0
    %2081 = vmatpush1.bf16.msra.mxu0 0
    %2082 = vmatprep.subr.bf16.mxu0 0
    %2083 = vmatpush1.bf16.msra.mxu0 0
    %2084 = vmatprep.subr.bf16.mxu0 0
    %2085 = vmatpush1.bf16.msra.mxu0 0
    %2086 = vmatprep.subr.bf16.mxu0 0
    %2087 = vmatpush1.bf16.msra.mxu0 0
    %2088 = vmatprep.mubr.bf16.mxu0 0
    %2089 = vmatmul.mubr.bf16.gmra.mrb[0].mxu0 %v2054
    %v2090 = vpop.f32.mrb[0].mxu0
    %v2091 = vadd.f32 %v1442, %v2090
    %v2092 = vpop.f32.mrb[0].mxu0
    %v2093 = vpop.f32.mrb[0].mxu0
    %v2094 = vpop.f32.mrb[0].mxu0
    %2095 = vdwg.mxu0
    %v2096 = vmul.f32 %v2091, %v59
    %v2097 = vtanh.pop %v2096
    %v2098 = vmul.f32 %v2097, %v59
    %v2099 = vadd.f32 %v2098, %v60
    %v2100 = vmul.f32 %v2099, %v1963
    %2102 = vrot.lane.b32.xlu0 %v2099, 64
    %v2103 = vpop.permute.xlu0 %2102
    %v2105 = vmul.f32 %v2099, %v2103
    %2107 = vrot.lane.b32.xlu0 %v2105, 32
    %v2108 = vpop.permute.xlu0 %2107
    %v2110 = vadd.f32 %v2100, %v2108
    %v2111 = vtanh.pop %v2110
    %2113 = vrot.lane.b32.xlu0 %v2111, 64
    %v2114 = vpop.permute.xlu0 %2113
    %v2116 = vmul.f32 %v2099, %v2114
    %2118 = vrot.lane.b32.xlu0 %v2116, 32
    %v2119 = vpop.permute.xlu0 %2118
    %2121 = vrot.lane.b32.xlu0 %v2042, 64
    %v2122 = vpop.permute.xlu0 %2121
    %v2124 = vsel %vm128, %v2119, %v2122
    %v2125 = vpack.c.bf16 %v2124, %v2124
    %v2127 = vsel %vm1467, %v2125, 0
    %2129 = vmatprep.subr.bf16.mxu0 0
    %2130 = vmatpush1.bf16.msra.mxu0 %v1452
    %2131 = vmatprep.subr.bf16.mxu0 0
    %2132 = vmatpush1.bf16.msra.mxu0 %v1453
    %2133 = vmatprep.subr.bf16.mxu0 0
    %2134 = vmatpush1.bf16.msra.mxu0 %v1454
    %2135 = vmatprep.subr.bf16.mxu0 0
    %2136 = vmatpush1.bf16.msra.mxu0 %v1455
    %2137 = vmatprep.subr.bf16.mxu0 0
    %2138 = vmatpush1.bf16.msra.mxu0 0
    %2139 = vmatprep.subr.bf16.mxu0 0
    %2140 = vmatpush1.bf16.msra.mxu0 0
    %2141 = vmatprep.subr.bf16.mxu0 0
    %2142 = vmatpush1.bf16.msra.mxu0 0
    %2143 = vmatprep.subr.bf16.mxu0 0
    %2144 = vmatpush1.bf16.msra.mxu0 0
    %2145 = vmatprep.subr.bf16.mxu0 0
    %2146 = vmatpush1.bf16.msra.mxu0 0
    %2147 = vmatprep.subr.bf16.mxu0 0
    %2148 = vmatpush1.bf16.msra.mxu0 0
    %2149 = vmatprep.subr.bf16.mxu0 0
    %2150 = vmatpush1.bf16.msra.mxu0 0
    %2151 = vmatprep.subr.bf16.mxu0 0
    %2152 = vmatpush1.bf16.msra.mxu0 0
    %2153 = vmatprep.subr.bf16.mxu0 0
    %2154 = vmatpush1.bf16.msra.mxu0 0
    %2155 = vmatprep.subr.bf16.mxu0 0
    %2156 = vmatpush1.bf16.msra.mxu0 0
    %2157 = vmatprep.subr.bf16.mxu0 0
    %2158 = vmatpush1.bf16.msra.mxu0 0
    %2159 = vmatprep.subr.bf16.mxu0 0
    %2160 = vmatpush1.bf16.msra.mxu0 0
    %2161 = vmatprep.mubr.bf16.mxu0 0
    %2162 = vmatmul.mubr.bf16.gmra.mrb[0].mxu0 %v2127
    %v2163 = vpop.f32.mrb[0].mxu0
    %v2164 = vadd.f32 %v1461, %v2163
    %v2165 = vpop.f32.mrb[0].mxu0
    %v2166 = vpop.f32.mrb[0].mxu0
    %v2167 = vpop.f32.mrb[0].mxu0
    %2168 = vdwg.mxu0
    %v2169 = vmul.f32 %v2164, %v59
    %v2170 = vtanh.pop %v2169
    %v2171 = vmul.f32 %v2170, %v59
    %v2172 = vadd.f32 %v2171, %v60
    %v2173 = vmul.f32 %v2172, %v2036
    %2175 = vrot.lane.b32.xlu0 %v2172, 64
    %v2176 = vpop.permute.xlu0 %2175
    %v2178 = vmul.f32 %v2172, %v2176
    %2180 = vrot.lane.b32.xlu0 %v2178, 32
    %v2181 = vpop.permute.xlu0 %2180
    %v2183 = vadd.f32 %v2173, %v2181
    %v2184 = vtanh.pop %v2183
    %2186 = vrot.lane.b32.xlu0 %v2184, 64
    %v2187 = vpop.permute.xlu0 %2186
    %v2189 = vmul.f32 %v2172, %v2187
    %2191 = vrot.lane.b32.xlu0 %v2189, 32
    %v2192 = vpop.permute.xlu0 %2191
    %2194 = vst.msk [vmem:[#allocation2 + $0x8] sm:$0x3] %vm198, %v2192
    %2195 = vrot.lane.b32.xlu0 %v2116, 64
    %v2196 = vpop.permute.xlu0 %2195
    %v2198 = vsel %vm128, %v2192, %v2196
    %v2199 = vpack.c.bf16 %v2198, %v2198
    %v2201 = vsel %vm1467, %v2199, 0
    %2203 = vmatprep.subr.bf16.mxu0 0
    %2204 = vmatpush1.bf16.msra.mxu0 %v1433
    %2205 = vmatprep.subr.bf16.mxu0 0
    %2206 = vmatpush1.bf16.msra.mxu0 %v1434
    %2207 = vmatprep.subr.bf16.mxu0 0
    %2208 = vmatpush1.bf16.msra.mxu0 %v1435
    %2209 = vmatprep.subr.bf16.mxu0 0
    %2210 = vmatpush1.bf16.msra.mxu0 %v1436
    %2211 = vmatprep.subr.bf16.mxu0 0
    %2212 = vmatpush1.bf16.msra.mxu0 0
    %2213 = vmatprep.subr.bf16.mxu0 0
    %2214 = vmatpush1.bf16.msra.mxu0 0
    %2215 = vmatprep.subr.bf16.mxu0 0
    %2216 = vmatpush1.bf16.msra.mxu0 0
    %2217 = vmatprep.subr.bf16.mxu0 0
    %2218 = vmatpush1.bf16.msra.mxu0 0
    %2219 = vmatprep.subr.bf16.mxu0 0
    %2220 = vmatpush1.bf16.msra.mxu0 0
    %2221 = vmatprep.subr.bf16.mxu0 0
    %2222 = vmatpush1.bf16.msra.mxu0 0
    %2223 = vmatprep.subr.bf16.mxu0 0
    %2224 = vmatpush1.bf16.msra.mxu0 0
    %2225 = vmatprep.subr.bf16.mxu0 0
    %2226 = vmatpush1.bf16.msra.mxu0 0
    %2227 = vmatprep.subr.bf16.mxu0 0
    %2228 = vmatpush1.bf16.msra.mxu0 0
    %2229 = vmatprep.subr.bf16.mxu0 0
    %2230 = vmatpush1.bf16.msra.mxu0 0
    %2231 = vmatprep.subr.bf16.mxu0 0
    %2232 = vmatpush1.bf16.msra.mxu0 0
    %2233 = vmatprep.subr.bf16.mxu0 0
    %2234 = vmatpush1.bf16.msra.mxu0 0
    %2235 = vmatprep.mubr.bf16.mxu0 0
    %2236 = vmatmul.mubr.bf16.gmra.mrb[0].mxu0 %v2201
    %v2237 = vpop.f32.mrb[0].mxu0
    %v2238 = vadd.f32 %v1442, %v2237
    %v2239 = vpop.f32.mrb[0].mxu0
    %v2240 = vpop.f32.mrb[0].mxu0
    %v2241 = vpop.f32.mrb[0].mxu0
    %2242 = vdwg.mxu0
    %v2243 = vmul.f32 %v2238, %v59
    %v2244 = vtanh.pop %v2243
    %v2245 = vmul.f32 %v2244, %v59
    %v2246 = vadd.f32 %v2245, %v60
    %v2247 = vmul.f32 %v2246, %v2110
    %2249 = vrot.lane.b32.xlu0 %v2246, 64
    %v2250 = vpop.permute.xlu0 %2249
    %v2252 = vmul.f32 %v2246, %v2250
    %2254 = vrot.lane.b32.xlu0 %v2252, 32
    %v2255 = vpop.permute.xlu0 %2254
    %v2257 = vadd.f32 %v2247, %v2255
    %v2258 = vtanh.pop %v2257
    %2260 = vrot.lane.b32.xlu0 %v2258, 64
    %v2261 = vpop.permute.xlu0 %2260
    %v2263 = vmul.f32 %v2246, %v2261
    %2265 = vrot.lane.b32.xlu0 %v2263, 32
    %v2266 = vpop.permute.xlu0 %2265
    %2268 = vrot.lane.b32.xlu0 %v2189, 64
    %v2269 = vpop.permute.xlu0 %2268
    %v2271 = vsel %vm128, %v2266, %v2269
    %v2272 = vpack.c.bf16 %v2271, %v2271
    %v2274 = vsel %vm1467, %v2272, 0
    %2276 = vmatprep.subr.bf16.mxu0 0
    %2277 = vmatpush1.bf16.msra.mxu0 %v1452
    %2278 = vmatprep.subr.bf16.mxu0 0
    %2279 = vmatpush1.bf16.msra.mxu0 %v1453
    %2280 = vmatprep.subr.bf16.mxu0 0
    %2281 = vmatpush1.bf16.msra.mxu0 %v1454
    %2282 = vmatprep.subr.bf16.mxu0 0
    %2283 = vmatpush1.bf16.msra.mxu0 %v1455
    %2284 = vmatprep.subr.bf16.mxu0 0
    %2285 = vmatpush1.bf16.msra.mxu0 0
    %2286 = vmatprep.subr.bf16.mxu0 0
    %2287 = vmatpush1.bf16.msra.mxu0 0
    %2288 = vmatprep.subr.bf16.mxu0 0
    %2289 = vmatpush1.bf16.msra.mxu0 0
    %2290 = vmatprep.subr.bf16.mxu0 0
    %2291 = vmatpush1.bf16.msra.mxu0 0
    %2292 = vmatprep.subr.bf16.mxu0 0
    %2293 = vmatpush1.bf16.msra.mxu0 0
    %2294 = vmatprep.subr.bf16.mxu0 0
    %2295 = vmatpush1.bf16.msra.mxu0 0
    %2296 = vmatprep.subr.bf16.mxu0 0
    %2297 = vmatpush1.bf16.msra.mxu0 0
    %2298 = vmatprep.subr.bf16.mxu0 0
    %2299 = vmatpush1.bf16.msra.mxu0 0
    %2300 = vmatprep.subr.bf16.mxu0 0
    %2301 = vmatpush1.bf16.msra.mxu0 0
    %2302 = vmatprep.subr.bf16.mxu0 0
    %2303 = vmatpush1.bf16.msra.mxu0 0
    %2304 = vmatprep.subr.bf16.mxu0 0
    %2305 = vmatpush1.bf16.msra.mxu0 0
    %2306 = vmatprep.subr.bf16.mxu0 0
    %2307 = vmatpush1.bf16.msra.mxu0 0
    %2308 = vmatprep.mubr.bf16.mxu0 0
    %2309 = vmatmul.mubr.bf16.gmra.mrb[0].mxu0 %v2274
    %v2310 = vpop.f32.mrb[0].mxu0
    %v2311 = vadd.f32 %v1461, %v2310
    %v2312 = vpop.f32.mrb[0].mxu0
    %v2313 = vpop.f32.mrb[0].mxu0
    %v2314 = vpop.f32.mrb[0].mxu0
    %2315 = vdwg.mxu0
    %v2316 = vmul.f32 %v2311, %v59
    %v2317 = vtanh.pop %v2316
    %v2318 = vmul.f32 %v2317, %v59
    %v2319 = vadd.f32 %v2318, %v60
    %v2320 = vmul.f32 %v2319, %v2183
    %2322 = vrot.lane.b32.xlu0 %v2319, 64
    %v2323 = vpop.permute.xlu0 %2322
    %v2325 = vmul.f32 %v2319, %v2323
    %2327 = vrot.lane.b32.xlu0 %v2325, 32
    %v2328 = vpop.permute.xlu0 %2327
    %v2330 = vadd.f32 %v2320, %v2328
    %v2331 = vtanh.pop %v2330
    %2333 = vrot.lane.b32.xlu0 %v2331, 64
    %v2334 = vpop.permute.xlu0 %2333
    %v2336 = vmul.f32 %v2319, %v2334
    %2338 = vrot.lane.b32.xlu0 %v2336, 32
    %v2339 = vpop.permute.xlu0 %2338
    %2341 = vst.msk [vmem:[#allocation2 + $0xa] sm:$0x3] %vm198, %v2339
    %2342 = vrot.lane.b32.xlu0 %v2263, 64
    %v2343 = vpop.permute.xlu0 %2342
    %v2345 = vsel %vm128, %v2339, %v2343
    %v2346 = vpack.c.bf16 %v2345, %v2345
    %v2348 = vsel %vm1467, %v2346, 0
    %2350 = vmatprep.subr.bf16.mxu0 0
    %2351 = vmatpush1.bf16.msra.mxu0 %v1433
    %2352 = vmatprep.subr.bf16.mxu0 0
    %2353 = vmatpush1.bf16.msra.mxu0 %v1434
    %2354 = vmatprep.subr.bf16.mxu0 0
    %2355 = vmatpush1.bf16.msra.mxu0 %v1435
    %2356 = vmatprep.subr.bf16.mxu0 0
    %2357 = vmatpush1.bf16.msra.mxu0 %v1436
    %2358 = vmatprep.subr.bf16.mxu0 0
    %2359 = vmatpush1.bf16.msra.mxu0 0
    %2360 = vmatprep.subr.bf16.mxu0 0
    %2361 = vmatpush1.bf16.msra.mxu0 0
    %2362 = vmatprep.subr.bf16.mxu0 0
    %2363 = vmatpush1.bf16.msra.mxu0 0
    %2364 = vmatprep.subr.bf16.mxu0 0
    %2365 = vmatpush1.bf16.msra.mxu0 0
    %2366 = vmatprep.subr.bf16.mxu0 0
    %2367 = vmatpush1.bf16.msra.mxu0 0
    %2368 = vmatprep.subr.bf16.mxu0 0
    %2369 = vmatpush1.bf16.msra.mxu0 0
    %2370 = vmatprep.subr.bf16.mxu0 0
    %2371 = vmatpush1.bf16.msra.mxu0 0
    %2372 = vmatprep.subr.bf16.mxu0 0
    %2373 = vmatpush1.bf16.msra.mxu0 0
    %2374 = vmatprep.subr.bf16.mxu0 0
    %2375 = vmatpush1.bf16.msra.mxu0 0
    %2376 = vmatprep.subr.bf16.mxu0 0
    %2377 = vmatpush1.bf16.msra.mxu0 0
    %2378 = vmatprep.subr.bf16.mxu0 0
    %2379 = vmatpush1.bf16.msra.mxu0 0
    %2380 = vmatprep.subr.bf16.mxu0 0
    %2381 = vmatpush1.bf16.msra.mxu0 0
    %2382 = vmatprep.mubr.bf16.mxu0 0
    %2383 = vmatmul.mubr.bf16.gmra.mrb[0].mxu0 %v2348
    %v2384 = vpop.f32.mrb[0].mxu0
    %v2385 = vadd.f32 %v1442, %v2384
    %v2386 = vpop.f32.mrb[0].mxu0
    %v2387 = vpop.f32.mrb[0].mxu0
    %v2388 = vpop.f32.mrb[0].mxu0
    %2389 = vdwg.mxu0
    %v2390 = vmul.f32 %v2385, %v59
    %v2391 = vtanh.pop %v2390
    %v2392 = vmul.f32 %v2391, %v59
    %v2393 = vadd.f32 %v2392, %v60
    %v2394 = vmul.f32 %v2393, %v2257
    %2396 = vrot.lane.b32.xlu0 %v2393, 64
    %v2397 = vpop.permute.xlu0 %2396
    %v2399 = vmul.f32 %v2393, %v2397
    %2401 = vrot.lane.b32.xlu0 %v2399, 32
    %v2402 = vpop.permute.xlu0 %2401
    %v2404 = vadd.f32 %v2394, %v2402
    %v2405 = vtanh.pop %v2404
    %2407 = vrot.lane.b32.xlu0 %v2405, 64
    %v2408 = vpop.permute.xlu0 %2407
    %v2410 = vmul.f32 %v2393, %v2408
    %2412 = vrot.lane.b32.xlu0 %v2410, 32
    %v2413 = vpop.permute.xlu0 %2412
    %2415 = vrot.lane.b32.xlu0 %v2336, 64
    %v2416 = vpop.permute.xlu0 %2415
    %v2418 = vsel %vm128, %v2413, %v2416
    %v2419 = vpack.c.bf16 %v2418, %v2418
    %v2421 = vsel %vm1467, %v2419, 0
    %2423 = vmatprep.subr.bf16.mxu0 0
    %2424 = vmatpush1.bf16.msra.mxu0 %v1452
    %2425 = vmatprep.subr.bf16.mxu0 0
    %2426 = vmatpush1.bf16.msra.mxu0 %v1453
    %2427 = vmatprep.subr.bf16.mxu0 0
    %2428 = vmatpush1.bf16.msra.mxu0 %v1454
    %2429 = vmatprep.subr.bf16.mxu0 0
    %2430 = vmatpush1.bf16.msra.mxu0 %v1455
    %2431 = vmatprep.subr.bf16.mxu0 0
    %2432 = vmatpush1.bf16.msra.mxu0 0
    %2433 = vmatprep.subr.bf16.mxu0 0
    %2434 = vmatpush1.bf16.msra.mxu0 0
    %2435 = vmatprep.subr.bf16.mxu0 0
    %2436 = vmatpush1.bf16.msra.mxu0 0
    %2437 = vmatprep.subr.bf16.mxu0 0
    %2438 = vmatpush1.bf16.msra.mxu0 0
    %2439 = vmatprep.subr.bf16.mxu0 0
    %2440 = vmatpush1.bf16.msra.mxu0 0
    %2441 = vmatprep.subr.bf16.mxu0 0
    %2442 = vmatpush1.bf16.msra.mxu0 0
    %2443 = vmatprep.subr.bf16.mxu0 0
    %2444 = vmatpush1.bf16.msra.mxu0 0
    %2445 = vmatprep.subr.bf16.mxu0 0
    %2446 = vmatpush1.bf16.msra.mxu0 0
    %2447 = vmatprep.subr.bf16.mxu0 0
    %2448 = vmatpush1.bf16.msra.mxu0 0
    %2449 = vmatprep.subr.bf16.mxu0 0
    %2450 = vmatpush1.bf16.msra.mxu0 0
    %2451 = vmatprep.subr.bf16.mxu0 0
    %2452 = vmatpush1.bf16.msra.mxu0 0
    %2453 = vmatprep.subr.bf16.mxu0 0
    %2454 = vmatpush1.bf16.msra.mxu0 0
    %2455 = vmatprep.mubr.bf16.mxu0 0
    %2456 = vmatmul.mubr.bf16.gmra.mrb[0].mxu0 %v2421
    %v2457 = vpop.f32.mrb[0].mxu0
    %v2458 = vadd.f32 %v1461, %v2457
    %v2459 = vpop.f32.mrb[0].mxu0
    %v2460 = vpop.f32.mrb[0].mxu0
    %v2461 = vpop.f32.mrb[0].mxu0
    %2462 = vdwg.mxu0
    %v2463 = vmul.f32 %v2458, %v59
    %v2464 = vtanh.pop %v2463
    %v2465 = vmul.f32 %v2464, %v59
    %v2466 = vadd.f32 %v2465, %v60
    %v2467 = vmul.f32 %v2466, %v2330
    %2469 = vrot.lane.b32.xlu0 %v2466, 64
    %v2470 = vpop.permute.xlu0 %2469
    %v2472 = vmul.f32 %v2466, %v2470
    %2474 = vrot.lane.b32.xlu0 %v2472, 32
    %v2475 = vpop.permute.xlu0 %2474
    %v2477 = vadd.f32 %v2467, %v2475
    %v2478 = vtanh.pop %v2477
    %2480 = vrot.lane.b32.xlu0 %v2478, 64
    %v2481 = vpop.permute.xlu0 %2480
    %v2483 = vmul.f32 %v2466, %v2481
    %2485 = vrot.lane.b32.xlu0 %v2483, 32
    %v2486 = vpop.permute.xlu0 %2485
    %2488 = vst.msk [vmem:[#allocation2 + $0xc] sm:$0x3] %vm198, %v2486
    %2489 = vrot.lane.b32.xlu0 %v2410, 64
    %v2490 = vpop.permute.xlu0 %2489
    %v2492 = vsel %vm128, %v2486, %v2490
    %v2493 = vpack.c.bf16 %v2492, %v2492
    %v2495 = vsel %vm1467, %v2493, 0
    %2497 = vmatprep.subr.bf16.mxu0 0
    %2498 = vmatpush1.bf16.msra.mxu0 %v1433
    %2499 = vmatprep.subr.bf16.mxu0 0
    %2500 = vmatpush1.bf16.msra.mxu0 %v1434
    %2501 = vmatprep.subr.bf16.mxu0 0
    %2502 = vmatpush1.bf16.msra.mxu0 %v1435
    %2503 = vmatprep.subr.bf16.mxu0 0
    %2504 = vmatpush1.bf16.msra.mxu0 %v1436
    %2505 = vmatprep.subr.bf16.mxu0 0
    %2506 = vmatpush1.bf16.msra.mxu0 0
    %2507 = vmatprep.subr.bf16.mxu0 0
    %2508 = vmatpush1.bf16.msra.mxu0 0
    %2509 = vmatprep.subr.bf16.mxu0 0
    %2510 = vmatpush1.bf16.msra.mxu0 0
    %2511 = vmatprep.subr.bf16.mxu0 0
    %2512 = vmatpush1.bf16.msra.mxu0 0
    %2513 = vmatprep.subr.bf16.mxu0 0
    %2514 = vmatpush1.bf16.msra.mxu0 0
    %2515 = vmatprep.subr.bf16.mxu0 0
    %2516 = vmatpush1.bf16.msra.mxu0 0
    %2517 = vmatprep.subr.bf16.mxu0 0
    %2518 = vmatpush1.bf16.msra.mxu0 0
    %2519 = vmatprep.subr.bf16.mxu0 0
    %2520 = vmatpush1.bf16.msra.mxu0 0
    %2521 = vmatprep.subr.bf16.mxu0 0
    %2522 = vmatpush1.bf16.msra.mxu0 0
    %2523 = vmatprep.subr.bf16.mxu0 0
    %2524 = vmatpush1.bf16.msra.mxu0 0
    %2525 = vmatprep.subr.bf16.mxu0 0
    %2526 = vmatpush1.bf16.msra.mxu0 0
    %2527 = vmatprep.subr.bf16.mxu0 0
    %2528 = vmatpush1.bf16.msra.mxu0 0
    %2529 = vmatprep.mubr.bf16.mxu0 0
    %2530 = vmatmul.mubr.bf16.gmra.mrb[0].mxu0 %v2495
    %v2531 = vpop.f32.mrb[0].mxu0
    %v2532 = vadd.f32 %v1442, %v2531
    %v2533 = vpop.f32.mrb[0].mxu0
    %v2534 = vpop.f32.mrb[0].mxu0
    %v2535 = vpop.f32.mrb[0].mxu0
    %2536 = vdwg.mxu0
    %v2537 = vmul.f32 %v2532, %v59
    %v2538 = vtanh.pop %v2537
    %v2539 = vmul.f32 %v2538, %v59
    %v2540 = vadd.f32 %v2539, %v60
    %v2541 = vmul.f32 %v2540, %v2404
    %2543 = vrot.lane.b32.xlu0 %v2540, 64
    %v2544 = vpop.permute.xlu0 %2543
    %v2546 = vmul.f32 %v2540, %v2544
    %2548 = vrot.lane.b32.xlu0 %v2546, 32
    %v2549 = vpop.permute.xlu0 %2548
    %v2551 = vadd.f32 %v2541, %v2549
    %v2552 = vtanh.pop %v2551
    %2554 = vrot.lane.b32.xlu0 %v2552, 64
    %v2555 = vpop.permute.xlu0 %2554
    %v2557 = vmul.f32 %v2540, %v2555
    %2559 = vrot.lane.b32.xlu0 %v2557, 32
    %v2560 = vpop.permute.xlu0 %2559
    %2562 = vrot.lane.b32.xlu0 %v2483, 64
    %v2563 = vpop.permute.xlu0 %2562
    %v2565 = vsel %vm128, %v2560, %v2563
    %v2566 = vpack.c.bf16 %v2565, %v2565
    %v2568 = vsel %vm1467, %v2566, 0
    %2570 = vmatprep.subr.bf16.mxu0 0
    %2571 = vmatpush1.bf16.msra.mxu0 %v1452
    %2572 = vmatprep.subr.bf16.mxu0 0
    %2573 = vmatpush1.bf16.msra.mxu0 %v1453
    %2574 = vmatprep.subr.bf16.mxu0 0
    %2575 = vmatpush1.bf16.msra.mxu0 %v1454
    %2576 = vmatprep.subr.bf16.mxu0 0
    %2577 = vmatpush1.bf16.msra.mxu0 %v1455
    %2578 = vmatprep.subr.bf16.mxu0 0
    %2579 = vmatpush1.bf16.msra.mxu0 0
    %2580 = vmatprep.subr.bf16.mxu0 0
    %2581 = vmatpush1.bf16.msra.mxu0 0
    %2582 = vmatprep.subr.bf16.mxu0 0
    %2583 = vmatpush1.bf16.msra.mxu0 0
    %2584 = vmatprep.subr.bf16.mxu0 0
    %2585 = vmatpush1.bf16.msra.mxu0 0
    %2586 = vmatprep.subr.bf16.mxu0 0
    %2587 = vmatpush1.bf16.msra.mxu0 0
    %2588 = vmatprep.subr.bf16.mxu0 0
    %2589 = vmatpush1.bf16.msra.mxu0 0
    %2590 = vmatprep.subr.bf16.mxu0 0
    %2591 = vmatpush1.bf16.msra.mxu0 0
    %2592 = vmatprep.subr.bf16.mxu0 0
    %2593 = vmatpush1.bf16.msra.mxu0 0
    %2594 = vmatprep.subr.bf16.mxu0 0
    %2595 = vmatpush1.bf16.msra.mxu0 0
    %2596 = vmatprep.subr.bf16.mxu0 0
    %2597 = vmatpush1.bf16.msra.mxu0 0
    %2598 = vmatprep.subr.bf16.mxu0 0
    %2599 = vmatpush1.bf16.msra.mxu0 0
    %2600 = vmatprep.subr.bf16.mxu0 0
    %2601 = vmatpush1.bf16.msra.mxu0 0
    %2602 = vmatprep.mubr.bf16.mxu0 0
    %2603 = vmatmul.mubr.bf16.gmra.mrb[0].mxu0 %v2568
    %v2604 = vpop.f32.mrb[0].mxu0
    %v2605 = vadd.f32 %v1461, %v2604
    %v2606 = vpop.f32.mrb[0].mxu0
    %v2607 = vpop.f32.mrb[0].mxu0
    %v2608 = vpop.f32.mrb[0].mxu0
    %2609 = vdwg.mxu0
    %v2610 = vmul.f32 %v2605, %v59
    %v2611 = vtanh.pop %v2610
    %v2612 = vmul.f32 %v2611, %v59
    %v2613 = vadd.f32 %v2612, %v60
    %v2614 = vmul.f32 %v2613, %v2477
    %2616 = vrot.lane.b32.xlu0 %v2613, 64
    %v2617 = vpop.permute.xlu0 %2616
    %v2619 = vmul.f32 %v2613, %v2617
    %2621 = vrot.lane.b32.xlu0 %v2619, 32
    %v2622 = vpop.permute.xlu0 %2621
    %v2624 = vadd.f32 %v2614, %v2622
    %v2625 = vtanh.pop %v2624
    %2627 = vrot.lane.b32.xlu0 %v2625, 64
    %v2628 = vpop.permute.xlu0 %2627
    %v2630 = vmul.f32 %v2613, %v2628
    %2632 = vrot.lane.b32.xlu0 %v2630, 32
    %v2633 = vpop.permute.xlu0 %2632
    %2635 = vst.msk [vmem:[#allocation2 + $0xe] sm:$0x3] %vm198, %v2633
    %v2636 = vld [vmem:[#allocation2] sm:$0xff]
    %v2637 = vld [vmem:[#allocation2 + $0x8] sm:$0xff]
    %v2638 = vld [vmem:[%s11] sm:$0xff]
    %v2639 = vld [vmem:[%s11 + $0x8] sm:$0xff]
    %v2640 = vld [vmem:[%s11 + $0x10] sm:$0xff]
    %v2641 = vld [vmem:[%s11 + $0x18] sm:$0xff]
    %v2642 = vpack.c.bf16 %v2639, %v2638
    %v2643 = vpack.c.bf16 %v2641, %v2640
    %v2644 = vld [vmem:[%s12] sm:$0x1]
    %v2645 = vpack.c.bf16 %v2637, %v2636
    %v2647 = vlaneseq
    %v2648 = vshrl.u32 %v2647, 7
    %v2649 = vsub.s32 0, %v2648
    %v2650 = vrot.slane %v2644, %v2649
    %v2653 = vsel %vm128, %v2645, 0
    %2655 = vmatprep.subr.bf16.mxu0 0
    %2656 = vmatpush1.bf16.msra.mxu0 %v2642
    %2657 = vmatprep.subr.bf16.mxu0 0
    %2658 = vmatpush1.bf16.msra.mxu0 %v2643
    %2659 = vmatprep.subr.bf16.mxu0 0
    %2660 = vmatpush1.bf16.msra.mxu0 0
    %2661 = vmatprep.subr.bf16.mxu0 0
    %2662 = vmatpush1.bf16.msra.mxu0 0
    %2663 = vmatprep.subr.bf16.mxu0 0
    %2664 = vmatpush1.bf16.msra.mxu0 0
    %2665 = vmatprep.subr.bf16.mxu0 0
    %2666 = vmatpush1.bf16.msra.mxu0 0
    %2667 = vmatprep.subr.bf16.mxu0 0
    %2668 = vmatpush1.bf16.msra.mxu0 0
    %2669 = vmatprep.subr.bf16.mxu0 0
    %2670 = vmatpush1.bf16.msra.mxu0 0
    %2671 = vmatprep.subr.bf16.mxu0 0
    %2672 = vmatpush1.bf16.msra.mxu0 0
    %2673 = vmatprep.subr.bf16.mxu0 0
    %2674 = vmatpush1.bf16.msra.mxu0 0
    %2675 = vmatprep.subr.bf16.mxu0 0
    %2676 = vmatpush1.bf16.msra.mxu0 0
    %2677 = vmatprep.subr.bf16.mxu0 0
    %2678 = vmatpush1.bf16.msra.mxu0 0
    %2679 = vmatprep.subr.bf16.mxu0 0
    %2680 = vmatpush1.bf16.msra.mxu0 0
    %2681 = vmatprep.subr.bf16.mxu0 0
    %2682 = vmatpush1.bf16.msra.mxu0 0
    %2683 = vmatprep.subr.bf16.mxu0 0
    %2684 = vmatpush1.bf16.msra.mxu0 0
    %2685 = vmatprep.subr.bf16.mxu0 0
    %2686 = vmatpush1.bf16.msra.mxu0 0
    %2687 = vmatprep.mubr.bf16.mxu0 0
    %2688 = vmatmul.mubr.bf16.gmra.mrb[0].mxu0 %v2653
    %v2689 = vpop.f32.mrb[0].mxu0
    %v2690 = vadd.f32 %v2650, %v2689
    %v2691 = vpop.f32.mrb[0].mxu0
    %v2692 = vpop.f32.mrb[0].mxu0
    %v2693 = vadd.f32 %v2650, %v2692
    %v2694 = vpop.f32.mrb[0].mxu0
    %2695 = vdwg.mxu0
    %v2696 = vtanh.pop %v2690
    %v2697 = vtanh.pop %v2693
    %v2698 = vld [vmem:[%s13] sm:$0xff]
    %v2699 = vld [vmem:[%s13 + $0x8] sm:$0xff]
    %v2700 = vpack.c.bf16 %v2699, %v2698
    %v2701 = vld [vmem:[%s14] sm:$0x1]
    %v2702 = vpack.c.bf16 %v2697, %v2696
    %v2704 = vlaneseq
    %v2705 = vshrl.u32 %v2704, 7
    %v2706 = vsub.s32 0, %v2705
    %v2707 = vrot.slane %v2701, %v2706
    %vm2709 = vcmask 130048
    %v2711 = vsel %vm2709, %v2702, 0
    %2713 = vmatprep.subr.bf16.mxu0 0
    %2714 = vmatpush1.bf16.msra.mxu0 %v2700
    %2715 = vmatprep.subr.bf16.mxu0 0
    %2716 = vmatpush1.bf16.msra.mxu0 0
    %2717 = vmatprep.subr.bf16.mxu0 0
    %2718 = vmatpush1.bf16.msra.mxu0 0
    %2719 = vmatprep.subr.bf16.mxu0 0
    %2720 = vmatpush1.bf16.msra.mxu0 0
    %2721 = vmatprep.subr.bf16.mxu0 0
    %2722 = vmatpush1.bf16.msra.mxu0 0
    %2723 = vmatprep.subr.bf16.mxu0 0
    %2724 = vmatpush1.bf16.msra.mxu0 0
    %2725 = vmatprep.subr.bf16.mxu0 0
    %2726 = vmatpush1.bf16.msra.mxu0 0
    %2727 = vmatprep.subr.bf16.mxu0 0
    %2728 = vmatpush1.bf16.msra.mxu0 0
    %2729 = vmatprep.subr.bf16.mxu0 0
    %2730 = vmatpush1.bf16.msra.mxu0 0
    %2731 = vmatprep.subr.bf16.mxu0 0
    %2732 = vmatpush1.bf16.msra.mxu0 0
    %2733 = vmatprep.subr.bf16.mxu0 0
    %2734 = vmatpush1.bf16.msra.mxu0 0
    %2735 = vmatprep.subr.bf16.mxu0 0
    %2736 = vmatpush1.bf16.msra.mxu0 0
    %2737 = vmatprep.subr.bf16.mxu0 0
    %2738 = vmatpush1.bf16.msra.mxu0 0
    %2739 = vmatprep.subr.bf16.mxu0 0
    %2740 = vmatpush1.bf16.msra.mxu0 0
    %2741 = vmatprep.subr.bf16.mxu0 0
    %2742 = vmatpush1.bf16.msra.mxu0 0
    %2743 = vmatprep.subr.bf16.mxu0 0
    %2744 = vmatpush1.bf16.msra.mxu0 0
    %2745 = vmatprep.mubr.bf16.mxu0 0
    %2746 = vmatmul.mubr.bf16.gmra.mrb[0].mxu0 %v2711
    %v2747 = vpop.f32.mrb[0].mxu0
    %v2748 = vadd.f32 %v2707, %v2747
    %v2749 = vpop.f32.mrb[0].mxu0
    %v2750 = vpop.f32.mrb[0].mxu0
    %v2751 = vadd.f32 %v2707, %v2750
    %v2752 = vpop.f32.mrb[0].mxu0
    %2753 = vdwg.mxu0
    %vm2754 = vcmask 39936
    %2755 = vst.msk [vmem:[%s16] sm:$0xff] %vm2754, %v2748
    %2756 = vst.msk [vmem:[%s16 + $0x8] sm:$0xff] %vm2754, %v2751
    // Predicated region
    $region62: #{lstm_ae_forward.1} parent=1 // pred_check
      _
    $region63: #{lstm_ae_forward.1} parent=1 // pred_check_branch
      %2758 = sbr.rel (0) target = $region65
    $region64: #{lstm_ae_forward.1} parent=1 // pred_region
      %s2760 = ssub.s32 32, 32
      %2761 = vsyncadd [#allocation4], %s2760
      %s2763 = sshll.u32 [#allocation3], 4
      %s2764 = int_to_ptr.vmem [resolvable:$true] %s2763
      %2766 = dma.vmem_to_hbm [thread:$0]  %s2764, 32, %s15, [#allocation4]
    $region65: #{lstm_ae_forward.1} parent=1 // pred_fallthru
      _
    // Predicated region
    $region66: #{lstm_ae_forward.1} parent=1 // pred_check
      _
    $region67: #{lstm_ae_forward.1} parent=1 // pred_check_branch
      %2768 = sbr.rel (0) target = $region69
    $region68: #{lstm_ae_forward.1} parent=1 // pred_region
      _
    $region69: #{lstm_ae_forward.1} parent=1 // pred_fallthru
      _
    // Predicated region
    $region70: #{lstm_ae_forward.1} parent=1 // pred_check
      _
    $region71: #{lstm_ae_forward.1} parent=1 // pred_check_branch
      %2770 = sbr.rel (0) target = $region73
    $region72: #{lstm_ae_forward.1} parent=1 // pred_region
      %2771 = dma.done [#allocation4], 32
    $region73: #{lstm_ae_forward.1} parent=1 // pred_fallthru
      _
    // Predicated region
    $region74: #{lstm_ae_forward.1} parent=1 // pred_check
      _
    $region75: #{lstm_ae_forward.1} parent=1 // pred_check_branch
      %2773 = sbr.rel (0) target = $region77
    $region76: #{lstm_ae_forward.1} parent=1 // pred_region
      _
    $region77: #{lstm_ae_forward.1} parent=1 // pred_fallthru
      _
    %2774 = vsyncpa [#allocation4], 1

</llo_original>
